<compile_context>
chip_gen: v7x
topology: tpu7x:2x2x1
jax: 0.10.0
libtpu: 0.0.40
codegen_flags: <defaults>
</compile_context>

<pallas_src>
import math
import functools

import numpy as np
import jax
import jax.numpy as jnp
from jax import lax
from jax.experimental import pallas as pl
from jax.experimental.pallas import tpu as pltpu

LAYER_NORM_EPS = 1e-5
NEG_INF = -1e20  # ParlAI neginf() for float32


# -----------------------------------------------------------------------------
# In-kernel helpers
# -----------------------------------------------------------------------------
def _layer_norm(x, g, b):
    """x: [M, D] f32, g/b: [1, D] f32."""
    mu = jnp.mean(x, axis=-1, keepdims=True)
    var = jnp.mean(jnp.square(x - mu), axis=-1, keepdims=True)
    return (x - mu) * lax.rsqrt(var + LAYER_NORM_EPS) * g + b


def _split_heads(t2, bsz, n_heads):
    """[bsz*tlen, D] bf16 -> [H*bsz, tlen, dh], head-major leading dim."""
    m, d = t2.shape
    tlen = m // bsz
    dh = d // n_heads
    pieces = [t2[:, h * dh:(h + 1) * dh].reshape(bsz, tlen, dh)
              for h in range(n_heads)]
    return jnp.concatenate(pieces, axis=0)


def _attn_core(q2, k2, v2, bias4, bsz, n_heads):
    """Multi-head attention batched over (head, batch) in one einsum pair.

    q2: [bsz*tq, D] bf16 (q pre-scaled by 1/sqrt(dh) via the weights)
    k2, v2: [bsz*tk, D] bf16
    bias4: additive f32 mask broadcastable to [H, bsz, tq, tk] (0 or NEG_INF)
    Returns per-head context as [H, bsz*tq, dh] f32.
    """
    q = _split_heads(q2, bsz, n_heads)          # [H*bsz, tq, dh]
    k = _split_heads(k2, bsz, n_heads)          # [H*bsz, tk, dh]
    v = _split_heads(v2, bsz, n_heads)
    tq, dh = q.shape[1], q.shape[2]
    tk = k.shape[1]

    s = jnp.einsum('bqd,bkd->bqk', q, k,
                   preferred_element_type=jnp.float32)       # [H*bsz, tq, tk]
    s = s.reshape(n_heads, bsz, tq, tk) + bias4               # additive mask
    s = s - jnp.max(s, axis=-1, keepdims=True)
    e = jnp.exp(s)
    p = e * pl.reciprocal(jnp.sum(e, axis=-1, keepdims=True), approx=True)
    p = p.reshape(n_heads * bsz, tq, tk).astype(jnp.bfloat16)
    ctx = jnp.einsum('bqk,bkd->bqd', p, v,
                     preferred_element_type=jnp.float32)      # [H*bsz, tq, dh]
    return ctx.reshape(n_heads, bsz * tq, dh)


def _out_proj(ctx_h, wo_h, bo):
    """ctx_h: [H, M, dh] f32; wo_h: [H, dh, D] bf16; bo: [1, D] f32 -> [M, D]."""
    y = jnp.einsum('hmd,hdk->hmk', ctx_h.astype(jnp.bfloat16), wo_h,
                   preferred_element_type=jnp.float32)        # [H, M, D]
    return jnp.sum(y, axis=0) + bo


# -----------------------------------------------------------------------------
# Fused decoder stack kernel: grid = (batch_blocks ["parallel"], layers ["arbitrary"])
# -----------------------------------------------------------------------------
def decoder_stack_kernel(
    n_heads, bsz,
    # data inputs (blocked by batch block)
    x_ref, enc_ref, encb_ref, causal_ref,
    # per-layer (stacked) parameters, layer dim squeezed out by pl.Squeezed()
    sa_wqkv, sa_bqkv, sa_wo, sa_bo, n1_g, n1_b,
    ea_wq, ea_bq, ea_wkv, ea_bkv, ea_wo, ea_bo, n2_g, n2_b,
    f_w1, f_b1, f_w2, f_b2, n3_g, n3_b,
    # output doubles as the VMEM-resident layer-to-layer carry
    out_ref,
):
    l = pl.program_id(1)
    d = x_ref.shape[-1]

    @pl.when(l == 0)
    def _():
        out_ref[...] = x_ref[...]        # initialise resident activations

    x = out_ref[...]                     # [bsz*T, D] f32, carried across layers
    causal_bias = causal_ref[...]        # [1, 1, T, T] f32 additive
    enc_bias = encb_ref[...][None]       # [1, bsz, 1, S] f32 additive

    # ---- causal self-attention + residual + post-LN ('aiayn') ----
    x_b = x.astype(jnp.bfloat16)
    qkv = jnp.dot(x_b, sa_wqkv[...],
                  preferred_element_type=jnp.float32) + sa_bqkv[...]
    qkv_b = qkv.astype(jnp.bfloat16)     # cast once per layer (not per head)
    ctx = _attn_core(qkv_b[:, 0:d], qkv_b[:, d:2 * d], qkv_b[:, 2 * d:],
                     causal_bias, bsz, n_heads)
    sa = _out_proj(ctx, sa_wo[...], sa_bo[...])
    x = _layer_norm(x + sa, n1_g[...], n1_b[...])

    # ---- encoder attention + residual + post-LN ----
    x_b = x.astype(jnp.bfloat16)
    q = jnp.dot(x_b, ea_wq[...],
                preferred_element_type=jnp.float32) + ea_bq[...]
    kv = jnp.dot(enc_ref[...], ea_wkv[...],
                 preferred_element_type=jnp.float32) + ea_bkv[...]
    kv_b = kv.astype(jnp.bfloat16)
    ctx = _attn_core(q.astype(jnp.bfloat16), kv_b[:, 0:d], kv_b[:, d:2 * d],
                     enc_bias, bsz, n_heads)
    ea = _out_proj(ctx, ea_wo[...], ea_bo[...])
    x = _layer_norm(x + ea, n2_g[...], n2_b[...])

    # ---- FFN (relu) + residual + post-LN ----
    x_b = x.astype(jnp.bfloat16)
    h = jnp.maximum(
        jnp.dot(x_b, f_w1[...], preferred_element_type=jnp.float32) + f_b1[...],
        0.0)
    y = jnp.dot(h.astype(jnp.bfloat16), f_w2[...],
                preferred_element_type=jnp.float32) + f_b2[...]
    x = _layer_norm(x + y, n3_g[...], n3_b[...])

    out_ref[...] = x                     # carry to next layer (VMEM resident)


def decoder_stack_pallas(x2, enc2, enc_bias, causal_bias, packed_params,
                         n_heads, batch, tq, tkv, batch_block=1):
    """x2: [B*T, D] f32, enc2: [B*S, D] bf16, enc_bias: [B,1,S] f32,
    causal_bias: [1,1,T,T] f32, packed_params: list of [L, ...] stacked arrays."""
    bt, d = x2.shape
    n_layers = packed_params[0].shape[0]
    assert batch % batch_block == 0
    n_bblocks = batch // batch_block

    def _param_spec(p):
        nd = p.ndim
        return pl.BlockSpec((pl.Squeezed(),) + tuple(p.shape[1:]),
                            lambda b, l, _nd=nd: (l,) + (0,) * (_nd - 1))

    in_specs = [
        pl.BlockSpec((batch_block * tq, d), lambda b, l: (b, 0)),      # x2
        pl.BlockSpec((batch_block * tkv, d), lambda b, l: (b, 0)),     # enc2
        pl.BlockSpec((batch_block, 1, tkv), lambda b, l: (b, 0, 0)),   # enc bias
        pl.BlockSpec((1, 1, tq, tq), lambda b, l: (0, 0, 0, 0)),       # causal
    ] + [_param_spec(p) for p in packed_params]
    out_specs = pl.BlockSpec((batch_block * tq, d), lambda b, l: (b, 0))

    # VMEM budget: double-buffered per-layer weights + data blocks + headroom
    def nbytes(a):
        return a.size * a.dtype.itemsize

    per_layer_w = sum(nbytes(p) // n_layers for p in packed_params)
    widest = max(p.shape[-1] for p in packed_params)
    x_blk = batch_block * tq * d * 4
    enc_blk = batch_block * tkv * d * 2
    mask_blk = (batch_block * tkv + tq * tq) * 4
    interm = 6 * batch_block * tq * widest * 4 \
        + 2 * n_heads * batch_block * tq * tkv * 4
    budget = 2 * per_layer_w + 2 * (x_blk + enc_blk + mask_blk) + x_blk + interm
    vmem_limit = int(min(max(budget + (4 << 20), 16 << 20), 100 << 20))

    kernel = functools.partial(decoder_stack_kernel, n_heads, batch_block)
    return pl.pallas_call(
        kernel,
        out_shape=jax.ShapeDtypeStruct((bt, d), jnp.float32),
        grid=(n_bblocks, n_layers),
        in_specs=in_specs,
        out_specs=out_specs,
        compiler_params=pltpu.CompilerParams(
            dimension_semantics=("parallel", "arbitrary"),
            vmem_limit_bytes=vmem_limit),
    )(x2, enc2, enc_bias, causal_bias, *packed_params)


# -----------------------------------------------------------------------------
# Parameter construction (deterministic, synthetic) + packing for the kernel
# -----------------------------------------------------------------------------
def create_position_codes(n_pos, dim):
    position_enc = np.array(
        [[pos / np.power(10000, 2 * j / dim) for j in range(dim // 2)]
         for pos in range(n_pos)], dtype=np.float64)
    out = np.zeros((n_pos, dim), dtype=np.float32)
    out[:, 0::2] = np.sin(position_enc)
    out[:, 1::2] = np.cos(position_enc)
    return jnp.asarray(out)


def init_layer_params(key, d, f):
    """f32 master parameters (weights stored [in, out]: y = x @ W + b)."""
    ks = jax.random.split(key, 20)

    def xavier(k, fi, fo):
        std = math.sqrt(2.0 / (fi + fo))
        return jax.random.normal(k, (fi, fo), jnp.float32) * std

    def bias(k, fi, n):
        bound = 1.0 / math.sqrt(fi)
        return jax.random.uniform(k, (1, n), jnp.float32, -bound, bound)

    ones = jnp.ones((1, d), jnp.float32)
    zeros = jnp.zeros((1, d), jnp.float32)
    return dict(
        sa_wq=xavier(ks[0], d, d), sa_bq=bias(ks[1], d, d),
        sa_wk=xavier(ks[2], d, d), sa_bk=bias(ks[3], d, d),
        sa_wv=xavier(ks[4], d, d), sa_bv=bias(ks[5], d, d),
        sa_wo=xavier(ks[6], d, d), sa_bo=bias(ks[7], d, d),
        n1_g=ones, n1_b=zeros,
        ea_wq=xavier(ks[8], d, d), ea_bq=bias(ks[9], d, d),
        ea_wk=xavier(ks[10], d, d), ea_bk=bias(ks[11], d, d),
        ea_wv=xavier(ks[12], d, d), ea_bv=bias(ks[13], d, d),
        ea_wo=xavier(ks[14], d, d), ea_bo=bias(ks[15], d, d),
        n2_g=ones, n2_b=zeros,
        f_w1=xavier(ks[16], d, f), f_b1=bias(ks[17], d, f),
        f_w2=xavier(ks[18], f, d), f_b2=bias(ks[19], f, d),
        n3_g=ones, n3_b=zeros)


def pack_params(layer_params, n_heads):
    """Stack per-layer params -> [L, ...]; bf16 weights, fused QKV / enc-KV,
    1/sqrt(dh) folded into q weight & bias, out-proj weights as [H, dh, D];
    biases & LN params stay f32."""
    d = layer_params[0]['sa_wq'].shape[0]
    dh = d // n_heads
    qscale = 1.0 / math.sqrt(dh)
    bf16 = jnp.bfloat16

    def stack(fn, dtype=None):
        a = jnp.stack([fn(p) for p in layer_params], axis=0)
        return a.astype(dtype) if dtype is not None else a

    def wo_heads(w):  # [D, D] -> [H, dh, D] (rows of W ordered head-major)
        return w.reshape(n_heads, dh, d)

    return [
        stack(lambda p: jnp.concatenate(
            [p['sa_wq'] * qscale, p['sa_wk'], p['sa_wv']], axis=1), bf16),
        stack(lambda p: jnp.concatenate(
            [p['sa_bq'] * qscale, p['sa_bk'], p['sa_bv']], axis=1)),
        stack(lambda p: wo_heads(p['sa_wo']), bf16),
        stack(lambda p: p['sa_bo']),
        stack(lambda p: p['n1_g']),
        stack(lambda p: p['n1_b']),
        stack(lambda p: p['ea_wq'] * qscale, bf16),
        stack(lambda p: p['ea_bq'] * qscale),
        stack(lambda p: jnp.concatenate([p['ea_wk'], p['ea_wv']], axis=1), bf16),
        stack(lambda p: jnp.concatenate([p['ea_bk'], p['ea_bv']], axis=1)),
        stack(lambda p: wo_heads(p['ea_wo']), bf16),
        stack(lambda p: p['ea_bo']),
        stack(lambda p: p['n2_g']),
        stack(lambda p: p['n2_b']),
        stack(lambda p: p['f_w1'], bf16),
        stack(lambda p: p['f_b1']),
        stack(lambda p: p['f_w2'], bf16),
        stack(lambda p: p['f_b2']),
        stack(lambda p: p['n3_g']),
        stack(lambda p: p['n3_b']),
    ]


# -----------------------------------------------------------------------------
# Full decoder forward (embedding / mask-bias glue in JAX, stack in Pallas)
# -----------------------------------------------------------------------------
def transformer_decoder_forward(input_ids, encoder_output, encoder_mask,
                                emb, pos_emb, packed_params, n_heads,
                                batch_block=1):
    b, t = input_ids.shape
    d = emb.shape[1]
    s = encoder_output.shape[1]

    positions = jnp.arange(t, dtype=jnp.int32)[None, :]
    x = emb[input_ids] * math.sqrt(d) + pos_emb[positions]      # [B, T, D]
    x2 = x.reshape(b * t, d).astype(jnp.float32)                # lane-dense slab
    enc2 = encoder_output.reshape(b * s, d).astype(jnp.bfloat16)

    enc_bias = jnp.where(encoder_mask[:, None, :] != 0, 0.0, NEG_INF)
    enc_bias = enc_bias.astype(jnp.float32)                     # [B, 1, S]
    row = jnp.arange(t)[:, None]
    col = jnp.arange(t)[None, :]
    causal_bias = jnp.where(row >= col, 0.0, NEG_INF)[None, None]
    causal_bias = causal_bias.astype(jnp.float32)               # [1, 1, T, T]

    out2 = decoder_stack_pallas(x2, enc2, enc_bias, causal_bias,
                                packed_params, n_heads, b, t, s,
                                batch_block=batch_block)
    return out2.reshape(b, t, d)


# -----------------------------------------------------------------------------
# Pure-JAX f32 reference (mirrors the torch module math) for validation
# -----------------------------------------------------------------------------
def _ref_layer_norm(x, g, b):
    mu = jnp.mean(x, axis=-1, keepdims=True)
    var = jnp.mean((x - mu) ** 2, axis=-1, keepdims=True)
    return (x - mu) / jnp.sqrt(var + LAYER_NORM_EPS) * g + b


def _ref_mha(q_in, k_in, v_in, attend_mask, n_heads,
             wq, bq, wk, bk, wv, bv, wo, bo):
    b, tq, d = q_in.shape
    tk = k_in.shape[1]
    dh = d // n_heads
    scale = math.sqrt(dh)
    q = (q_in @ wq + bq).reshape(b, tq, n_heads, dh).transpose(0, 2, 1, 3) / scale
    k = (k_in @ wk + bk).reshape(b, tk, n_heads, dh).transpose(0, 2, 1, 3)
    v = (v_in @ wv + bv).reshape(b, tk, n_heads, dh).transpose(0, 2, 1, 3)
    scores = jnp.einsum('bhqd,bhkd->bhqk', q, k)
    scores = jnp.where(attend_mask[:, None, :, :], scores, NEG_INF)
    probs = jax.nn.softmax(scores, axis=-1)
    att = jnp.einsum('bhqk,bhkd->bhqd', probs, v)
    att = att.transpose(0, 2, 1, 3).reshape(b, tq, d)
    return att @ wo + bo


def _ref_layer(x, enc_out, enc_mask, p, n_heads):
    b, t, d = x.shape
    s = enc_out.shape[1]
    causal = jnp.broadcast_to(jnp.tril(jnp.ones((t, t), bool))[None], (b, t, t))
    residual = x
    x = _ref_mha(x, x, x, causal, n_heads,
                 p['sa_wq'], p['sa_bq'], p['sa_wk'], p['sa_bk'],
                 p['sa_wv'], p['sa_bv'], p['sa_wo'], p['sa_bo']) + residual
    x = _ref_layer_norm(x, p['n1_g'], p['n1_b'])
    residual = x
    enc_attend = jnp.broadcast_to((enc_mask != 0)[:, None, :], (b, t, s))
    x = _ref_mha(x, enc_out, enc_out, enc_attend, n_heads,
                 p['ea_wq'], p['ea_bq'], p['ea_wk'], p['ea_bk'],
                 p['ea_wv'], p['ea_bv'], p['ea_wo'], p['ea_bo']) + residual
    x = _ref_layer_norm(x, p['n2_g'], p['n2_b'])
    residual = x
    h = jax.nn.relu(x @ p['f_w1'] + p['f_b1'])
    x = (h @ p['f_w2'] + p['f_b2']) + residual
    x = _ref_layer_norm(x, p['n3_g'], p['n3_b'])
    return x


def _ref_decoder(input_ids, encoder_output, encoder_mask, emb, pos_emb,
                 layer_params, n_heads):
    b, t = input_ids.shape
    d = emb.shape[1]
    positions = jnp.arange(t)[None, :]
    x = emb[input_ids] * math.sqrt(d) + pos_emb[positions]
    for p in layer_params:
        x = _ref_layer(x, encoder_output, encoder_mask, p, n_heads)
    return x


# -----------------------------------------------------------------------------
if __name__ == "__main__":
    # small, lane/sublane-friendly config
    B, T, S = 2, 16, 16
    D, F, H = 128, 256, 4
    N_LAYERS = 2
    VOCAB = 64
    N_POSITIONS = 64

    key = jax.random.PRNGKey(0)
    k_emb, k_ids, k_enc, k_layers = jax.random.split(key, 4)

    emb = jax.random.normal(k_emb, (VOCAB, D), jnp.float32) * (D ** -0.5)
    pos_emb = create_position_codes(N_POSITIONS, D)

    input_ids = jax.random.randint(k_ids, (B, T), 0, VOCAB)
    encoder_output = jax.random.normal(k_enc, (B, S, D), jnp.float32)
    lengths = jnp.array([S, S - 5])           # second sequence is padded
    encoder_mask = (jnp.arange(S)[None, :] < lengths[:, None]).astype(jnp.float32)

    master_params = [init_layer_params(jax.random.fold_in(k_layers, i), D, F)
                     for i in range(N_LAYERS)]
    packed_params = pack_params(master_params, H)

    out = transformer_decoder_forward(
        input_ids, encoder_output, encoder_mask, emb, pos_emb, packed_params, H,
        batch_block=1)
    out = jax.block_until_ready(out)

    with jax.default_matmul_precision("float32"):
        ref = _ref_decoder(input_ids, encoder_output, encoder_mask, emb, pos_emb,
                           master_params, H)
    ref = jax.block_until_ready(ref)

    max_err = float(jnp.max(jnp.abs(out - ref)))
    assert out.shape == (B, T, D), out.shape
    # kernel runs bf16 matmuls (f32 accumulation) vs an f32 reference
    assert max_err < 5e-2, f"mismatch vs reference: max abs err {max_err}"
    print("KERNEL_OK")
</pallas_src>

<mosaic_0001>
module attributes {stable_mosaic.version = 11 : i64} {
  func.func @decoder_stack_kernel(%arg0: i32, %arg1: i32, %arg2: memref<16x128xf32, #tpu.memory_space<vmem>>, %arg3: memref<16x128xbf16, #tpu.memory_space<vmem>>, %arg4: memref<1x1x16xf32, #tpu.memory_space<vmem>>, %arg5: memref<1x1x16x16xf32, #tpu.memory_space<vmem>>, %arg6: memref<1x128x384xbf16, #tpu.memory_space<vmem>>, %arg7: memref<1x1x384xf32, #tpu.memory_space<vmem>>, %arg8: memref<1x4x32x128xbf16, #tpu.memory_space<vmem>>, %arg9: memref<1x1x128xf32, #tpu.memory_space<vmem>>, %arg10: memref<1x1x128xf32, #tpu.memory_space<vmem>>, %arg11: memref<1x1x128xf32, #tpu.memory_space<vmem>>, %arg12: memref<1x128x128xbf16, #tpu.memory_space<vmem>>, %arg13: memref<1x1x128xf32, #tpu.memory_space<vmem>>, %arg14: memref<1x128x256xbf16, #tpu.memory_space<vmem>>, %arg15: memref<1x1x256xf32, #tpu.memory_space<vmem>>, %arg16: memref<1x4x32x128xbf16, #tpu.memory_space<vmem>>, %arg17: memref<1x1x128xf32, #tpu.memory_space<vmem>>, %arg18: memref<1x1x128xf32, #tpu.memory_space<vmem>>, %arg19: memref<1x1x128xf32, #tpu.memory_space<vmem>>, %arg20: memref<1x128x256xbf16, #tpu.memory_space<vmem>>, %arg21: memref<1x1x256xf32, #tpu.memory_space<vmem>>, %arg22: memref<1x256x128xbf16, #tpu.memory_space<vmem>>, %arg23: memref<1x1x128xf32, #tpu.memory_space<vmem>>, %arg24: memref<1x1x128xf32, #tpu.memory_space<vmem>>, %arg25: memref<1x1x128xf32, #tpu.memory_space<vmem>>, %arg26: memref<16x128xf32, #tpu.memory_space<vmem>>) attributes {dimension_semantics = [#tpu.dimension_semantics<parallel>, #tpu.dimension_semantics<arbitrary>], iteration_bounds = array<i64: 2, 2>, scalar_prefetch = 0 : i64, scratch_operands = 0 : i64, tpu.core_type = #tpu.core_type<tc>, window_params = [{transform_indices = @transform_0, window_bounds = array<i64: 16, 128>}, {transform_indices = @transform_1, window_bounds = array<i64: 16, 128>}, {transform_indices = @transform_2, window_bounds = array<i64: 1, 1, 16>}, {pipeline_mode = #tpu.pipeline_mode<synchronous>, transform_indices = @transform_3, window_bounds = array<i64: 1, 1, 16, 16>}, {transform_indices = @transform_4, window_bounds = array<i64: 1, 128, 384>}, {transform_indices = @transform_5, window_bounds = array<i64: 1, 1, 384>}, {transform_indices = @transform_6, window_bounds = array<i64: 1, 4, 32, 128>}, {transform_indices = @transform_7, window_bounds = array<i64: 1, 1, 128>}, {transform_indices = @transform_8, window_bounds = array<i64: 1, 1, 128>}, {transform_indices = @transform_9, window_bounds = array<i64: 1, 1, 128>}, {transform_indices = @transform_10, window_bounds = array<i64: 1, 128, 128>}, {transform_indices = @transform_11, window_bounds = array<i64: 1, 1, 128>}, {transform_indices = @transform_12, window_bounds = array<i64: 1, 128, 256>}, {transform_indices = @transform_13, window_bounds = array<i64: 1, 1, 256>}, {transform_indices = @transform_14, window_bounds = array<i64: 1, 4, 32, 128>}, {transform_indices = @transform_15, window_bounds = array<i64: 1, 1, 128>}, {transform_indices = @transform_16, window_bounds = array<i64: 1, 1, 128>}, {transform_indices = @transform_17, window_bounds = array<i64: 1, 1, 128>}, {transform_indices = @transform_18, window_bounds = array<i64: 1, 128, 256>}, {transform_indices = @transform_19, window_bounds = array<i64: 1, 1, 256>}, {transform_indices = @transform_20, window_bounds = array<i64: 1, 256, 128>}, {transform_indices = @transform_21, window_bounds = array<i64: 1, 1, 128>}, {transform_indices = @transform_22, window_bounds = array<i64: 1, 1, 128>}, {transform_indices = @transform_23, window_bounds = array<i64: 1, 1, 128>}, {transform_indices = @transform_24, window_bounds = array<i64: 16, 128>}]} {
    %c0_i32 = arith.constant 0 : i32
    %0 = arith.cmpi eq, %arg1, %c0_i32 : i32
    %1 = arith.extui %0 : i1 to i32
    %c0_i32_0 = arith.constant 0 : i32
    %2 = arith.cmpi ne, %1, %c0_i32_0 : i32
    scf.if %2 {
      %c0_107 = arith.constant 0 : index
      %c0_108 = arith.constant 0 : index
      %245 = vector.load %arg2[%c0_107, %c0_108] : memref<16x128xf32, #tpu.memory_space<vmem>>, vector<16x128xf32>
      %c0_109 = arith.constant 0 : index
      %c0_110 = arith.constant 0 : index
      %246 = vector.load %arg26[%c0_109, %c0_110] : memref<16x128xf32, #tpu.memory_space<vmem>>, vector<16x128xf32>
      tpu.vector_store %arg26[%c0_109, %c0_110], %245 {strides = array<i32>} : memref<16x128xf32, #tpu.memory_space<vmem>>, vector<16x128xf32>,
    } else {
    }
    %c0 = arith.constant 0 : index
    %c0_1 = arith.constant 0 : index
    %3 = vector.load %arg26[%c0, %c0_1] : memref<16x128xf32, #tpu.memory_space<vmem>>, vector<16x128xf32>
    %c0_2 = arith.constant 0 : index
    %c0_3 = arith.constant 0 : index
    %c0_4 = arith.constant 0 : index
    %c0_5 = arith.constant 0 : index
    %4 = vector.load %arg5[%c0_2, %c0_3, %c0_4, %c0_5] : memref<1x1x16x16xf32, #tpu.memory_space<vmem>>, vector<1x1x16x16xf32>
    %c0_6 = arith.constant 0 : index
    %c0_7 = arith.constant 0 : index
    %c0_8 = arith.constant 0 : index
    %5 = vector.load %arg4[%c0_6, %c0_7, %c0_8] : memref<1x1x16xf32, #tpu.memory_space<vmem>>, vector<1x1x16xf32>
    %6 = vector.shape_cast %5 : vector<1x1x16xf32> to vector<1x1x1x16xf32>
    %7 = arith.truncf %3 : vector<16x128xf32> to vector<16x128xbf16>
    %c0_9 = arith.constant 0 : index
    %c0_10 = arith.constant 0 : index
    %c0_11 = arith.constant 0 : index
    %8 = vector.load %arg6[%c0_9, %c0_10, %c0_11] : memref<1x128x384xbf16, #tpu.memory_space<vmem>>, vector<1x128x384xbf16>
    %9 = vector.shape_cast %8 : vector<1x128x384xbf16> to vector<128x384xbf16>
    %cst = arith.constant dense<0.000000e+00> : vector<16x384xf32>
    %10 = tpu.matmul %7, %9, %cst {dimension_numbers = #tpu.dot_dimension_numbers<[1], [0], [0], [1], [0, 0, 1, 1], [], []>} : vector<16x128xbf16>, vector<128x384xbf16>, vector<16x384xf32> -> vector<16x384xf32>
    %c0_12 = arith.constant 0 : index
    %c0_13 = arith.constant 0 : index
    %c0_14 = arith.constant 0 : index
    %11 = vector.load %arg7[%c0_12, %c0_13, %c0_14] : memref<1x1x384xf32, #tpu.memory_space<vmem>>, vector<1x1x384xf32>
    %12 = vector.shape_cast %11 : vector<1x1x384xf32> to vector<1x384xf32>
    %13 = vector.broadcast %12 : vector<1x384xf32> to vector<16x384xf32>
    %14 = arith.addf %10, %13 : vector<16x384xf32>
    %15 = arith.truncf %14 : vector<16x384xf32> to vector<16x384xbf16>
    %16 = vector.extract_strided_slice %15 {offsets = [0, 0], sizes = [16, 128], strides = [1, 1]} : vector<16x384xbf16> to vector<16x128xbf16>
    %17 = vector.extract_strided_slice %15 {offsets = [0, 128], sizes = [16, 128], strides = [1, 1]} : vector<16x384xbf16> to vector<16x128xbf16>
    %18 = vector.extract_strided_slice %15 {offsets = [0, 256], sizes = [16, 128], strides = [1, 1]} : vector<16x384xbf16> to vector<16x128xbf16>
    %19 = vector.extract_strided_slice %16 {offsets = [0, 0], sizes = [16, 32], strides = [1, 1]} : vector<16x128xbf16> to vector<16x32xbf16>
    %20 = vector.shape_cast %19 : vector<16x32xbf16> to vector<1x16x32xbf16>
    %21 = vector.extract_strided_slice %16 {offsets = [0, 32], sizes = [16, 32], strides = [1, 1]} : vector<16x128xbf16> to vector<16x32xbf16>
    %22 = vector.shape_cast %21 : vector<16x32xbf16> to vector<1x16x32xbf16>
    %23 = vector.extract_strided_slice %16 {offsets = [0, 64], sizes = [16, 32], strides = [1, 1]} : vector<16x128xbf16> to vector<16x32xbf16>
    %24 = vector.shape_cast %23 : vector<16x32xbf16> to vector<1x16x32xbf16>
    %25 = vector.extract_strided_slice %16 {offsets = [0, 96], sizes = [16, 32], strides = [1, 1]} : vector<16x128xbf16> to vector<16x32xbf16>
    %26 = vector.shape_cast %25 : vector<16x32xbf16> to vector<1x16x32xbf16>
    %27 = tpu.concatenate %20, %22, %24, %26 in 0 : vector<1x16x32xbf16>, vector<1x16x32xbf16>, vector<1x16x32xbf16>, vector<1x16x32xbf16> -> vector<4x16x32xbf16>
    %28 = vector.extract_strided_slice %17 {offsets = [0, 0], sizes = [16, 32], strides = [1, 1]} : vector<16x128xbf16> to vector<16x32xbf16>
    %29 = vector.shape_cast %28 : vector<16x32xbf16> to vector<1x16x32xbf16>
    %30 = vector.extract_strided_slice %17 {offsets = [0, 32], sizes = [16, 32], strides = [1, 1]} : vector<16x128xbf16> to vector<16x32xbf16>
    %31 = vector.shape_cast %30 : vector<16x32xbf16> to vector<1x16x32xbf16>
    %32 = vector.extract_strided_slice %17 {offsets = [0, 64], sizes = [16, 32], strides = [1, 1]} : vector<16x128xbf16> to vector<16x32xbf16>
    %33 = vector.shape_cast %32 : vector<16x32xbf16> to vector<1x16x32xbf16>
    %34 = vector.extract_strided_slice %17 {offsets = [0, 96], sizes = [16, 32], strides = [1, 1]} : vector<16x128xbf16> to vector<16x32xbf16>
    %35 = vector.shape_cast %34 : vector<16x32xbf16> to vector<1x16x32xbf16>
    %36 = tpu.concatenate %29, %31, %33, %35 in 0 : vector<1x16x32xbf16>, vector<1x16x32xbf16>, vector<1x16x32xbf16>, vector<1x16x32xbf16> -> vector<4x16x32xbf16>
    %37 = vector.extract_strided_slice %18 {offsets = [0, 0], sizes = [16, 32], strides = [1, 1]} : vector<16x128xbf16> to vector<16x32xbf16>
    %38 = vector.shape_cast %37 : vector<16x32xbf16> to vector<1x16x32xbf16>
    %39 = vector.extract_strided_slice %18 {offsets = [0, 32], sizes = [16, 32], strides = [1, 1]} : vector<16x128xbf16> to vector<16x32xbf16>
    %40 = vector.shape_cast %39 : vector<16x32xbf16> to vector<1x16x32xbf16>
    %41 = vector.extract_strided_slice %18 {offsets = [0, 64], sizes = [16, 32], strides = [1, 1]} : vector<16x128xbf16> to vector<16x32xbf16>
    %42 = vector.shape_cast %41 : vector<16x32xbf16> to vector<1x16x32xbf16>
    %43 = vector.extract_strided_slice %18 {offsets = [0, 96], sizes = [16, 32], strides = [1, 1]} : vector<16x128xbf16> to vector<16x32xbf16>
    %44 = vector.shape_cast %43 : vector<16x32xbf16> to vector<1x16x32xbf16>
    %45 = tpu.concatenate %38, %40, %42, %44 in 0 : vector<1x16x32xbf16>, vector<1x16x32xbf16>, vector<1x16x32xbf16>, vector<1x16x32xbf16> -> vector<4x16x32xbf16>
    "tpu.trace_start"() <{level = 10 : i32, message = "bqd,bkd->bqk"}> : () -> ()
    %cst_15 = arith.constant dense<0.000000e+00> : vector<4x16x16xf32>
    %46 = tpu.matmul %27, %36, %cst_15 {dimension_numbers = #tpu.dot_dimension_numbers<[2], [2], [1], [1], [0, 0, 0, 1, 1, 1], [0], [0]>} : vector<4x16x32xbf16>, vector<4x16x32xbf16>, vector<4x16x16xf32> -> vector<4x16x16xf32>
    "tpu.trace_stop"() : () -> ()
    %47 = vector.shape_cast %46 : vector<4x16x16xf32> to vector<4x1x16x16xf32>
    %48 = vector.broadcast %4 : vector<1x1x16x16xf32> to vector<4x1x16x16xf32>
    %49 = arith.addf %47, %48 : vector<4x1x16x16xf32>
    %cst_16 = arith.constant dense<0xFF800000> : vector<4x1x16xf32>
    %50 = vector.multi_reduction <maximumf>, %49, %cst_16 [3] : vector<4x1x16x16xf32> to vector<4x1x16xf32>
    %51 = vector.shape_cast %50 : vector<4x1x16xf32> to vector<4x1x16x1xf32>
    %52 = vector.broadcast %51 : vector<4x1x16x1xf32> to vector<4x1x16x16xf32>
    %53 = arith.subf %49, %52 : vector<4x1x16x16xf32>
    %54 = math.exp %53 : vector<4x1x16x16xf32>
    %cst_17 = arith.constant dense<0.000000e+00> : vector<4x1x16xf32>
    %55 = vector.multi_reduction <add>, %54, %cst_17 [3] : vector<4x1x16x16xf32> to vector<4x1x16xf32>
    %56 = vector.shape_cast %55 : vector<4x1x16xf32> to vector<4x1x16x1xf32>
    %57 = tpu.reciprocal %56 {approx = true} : vector<4x1x16x1xf32> -> vector<4x1x16x1xf32>
    %58 = vector.broadcast %57 : vector<4x1x16x1xf32> to vector<4x1x16x16xf32>
    %59 = arith.mulf %54, %58 : vector<4x1x16x16xf32>
    %60 = vector.shape_cast %59 : vector<4x1x16x16xf32> to vector<4x16x16xf32>
    %61 = arith.truncf %60 : vector<4x16x16xf32> to vector<4x16x16xbf16>
    "tpu.trace_start"() <{level = 10 : i32, message = "bqk,bkd->bqd"}> : () -> ()
    %cst_18 = arith.constant dense<0.000000e+00> : vector<4x16x32xf32>
    %62 = tpu.matmul %61, %45, %cst_18 {dimension_numbers = #tpu.dot_dimension_numbers<[2], [1], [1], [2], [0, 0, 0, 1, 1, 2], [0], [0]>} : vector<4x16x16xbf16>, vector<4x16x32xbf16>, vector<4x16x32xf32> -> vector<4x16x32xf32>
    "tpu.trace_stop"() : () -> ()
    %c0_19 = arith.constant 0 : index
    %c0_20 = arith.constant 0 : index
    %c0_21 = arith.constant 0 : index
    %c0_22 = arith.constant 0 : index
    %63 = vector.load %arg8[%c0_19, %c0_20, %c0_21, %c0_22] : memref<1x4x32x128xbf16, #tpu.memory_space<vmem>>, vector<1x4x32x128xbf16>
    %64 = vector.shape_cast %63 : vector<1x4x32x128xbf16> to vector<4x32x128xbf16>
    %c0_23 = arith.constant 0 : index
    %c0_24 = arith.constant 0 : index
    %c0_25 = arith.constant 0 : index
    %65 = vector.load %arg9[%c0_23, %c0_24, %c0_25] : memref<1x1x128xf32, #tpu.memory_space<vmem>>, vector<1x1x128xf32>
    %66 = vector.shape_cast %65 : vector<1x1x128xf32> to vector<1x128xf32>
    %67 = arith.truncf %62 : vector<4x16x32xf32> to vector<4x16x32xbf16>
    "tpu.trace_start"() <{level = 10 : i32, message = "hmd,hdk->hmk"}> : () -> ()
    %cst_26 = arith.constant dense<0.000000e+00> : vector<4x16x128xf32>
    %68 = tpu.matmul %67, %64, %cst_26 {dimension_numbers = #tpu.dot_dimension_numbers<[2], [1], [1], [2], [0, 0, 0, 1, 1, 2], [0], [0]>} : vector<4x16x32xbf16>, vector<4x32x128xbf16>, vector<4x16x128xf32> -> vector<4x16x128xf32>
    "tpu.trace_stop"() : () -> ()
    %cst_27 = arith.constant dense<0.000000e+00> : vector<16x128xf32>
    %69 = vector.multi_reduction <add>, %68, %cst_27 [0] : vector<4x16x128xf32> to vector<16x128xf32>
    %70 = vector.broadcast %66 : vector<1x128xf32> to vector<16x128xf32>
    %71 = arith.addf %69, %70 : vector<16x128xf32>
    %72 = arith.addf %3, %71 : vector<16x128xf32>
    %c0_28 = arith.constant 0 : index
    %c0_29 = arith.constant 0 : index
    %c0_30 = arith.constant 0 : index
    %73 = vector.load %arg10[%c0_28, %c0_29, %c0_30] : memref<1x1x128xf32, #tpu.memory_space<vmem>>, vector<1x1x128xf32>
    %74 = vector.shape_cast %73 : vector<1x1x128xf32> to vector<1x128xf32>
    %c0_31 = arith.constant 0 : index
    %c0_32 = arith.constant 0 : index
    %c0_33 = arith.constant 0 : index
    %75 = vector.load %arg11[%c0_31, %c0_32, %c0_33] : memref<1x1x128xf32, #tpu.memory_space<vmem>>, vector<1x1x128xf32>
    %76 = vector.shape_cast %75 : vector<1x1x128xf32> to vector<1x128xf32>
    %cst_34 = arith.constant dense<0.000000e+00> : vector<16xf32>
    %77 = vector.multi_reduction <add>, %72, %cst_34 [1] : vector<16x128xf32> to vector<16xf32>
    %78 = vector.shape_cast %77 : vector<16xf32> to vector<16x1xf32>
    %cst_35 = arith.constant 1.280000e+02 : f32
    %79 = vector.broadcast %cst_35 : f32 to vector<16x1xf32>
    %80 = arith.divf %78, %79 : vector<16x1xf32>
    %81 = vector.broadcast %80 : vector<16x1xf32> to vector<16x128xf32>
    %82 = arith.subf %72, %81 : vector<16x128xf32>
    %83 = arith.mulf %82, %82 : vector<16x128xf32>
    %cst_36 = arith.constant dense<0.000000e+00> : vector<16xf32>
    %84 = vector.multi_reduction <add>, %83, %cst_36 [1] : vector<16x128xf32> to vector<16xf32>
    %85 = vector.shape_cast %84 : vector<16xf32> to vector<16x1xf32>
    %cst_37 = arith.constant 1.280000e+02 : f32
    %86 = vector.broadcast %cst_37 : f32 to vector<16x1xf32>
    %87 = arith.divf %85, %86 : vector<16x1xf32>
    %88 = vector.broadcast %80 : vector<16x1xf32> to vector<16x128xf32>
    %89 = arith.subf %72, %88 : vector<16x128xf32>
    %cst_38 = arith.constant 9.99999974E-6 : f32
    %90 = vector.broadcast %cst_38 : f32 to vector<16x1xf32>
    %91 = arith.addf %87, %90 : vector<16x1xf32>
    %92 = math.rsqrt %91 : vector<16x1xf32>
    %93 = vector.broadcast %92 : vector<16x1xf32> to vector<16x128xf32>
    %94 = arith.mulf %89, %93 : vector<16x128xf32>
    %95 = vector.broadcast %74 : vector<1x128xf32> to vector<16x128xf32>
    %96 = arith.mulf %94, %95 : vector<16x128xf32>
    %97 = vector.broadcast %76 : vector<1x128xf32> to vector<16x128xf32>
    %98 = arith.addf %96, %97 : vector<16x128xf32>
    %99 = arith.truncf %98 : vector<16x128xf32> to vector<16x128xbf16>
    %c0_39 = arith.constant 0 : index
    %c0_40 = arith.constant 0 : index
    %c0_41 = arith.constant 0 : index
    %100 = vector.load %arg12[%c0_39, %c0_40, %c0_41] : memref<1x128x128xbf16, #tpu.memory_space<vmem>>, vector<1x128x128xbf16>
    %101 = vector.shape_cast %100 : vector<1x128x128xbf16> to vector<128x128xbf16>
    %cst_42 = arith.constant dense<0.000000e+00> : vector<16x128xf32>
    %102 = tpu.matmul %99, %101, %cst_42 {dimension_numbers = #tpu.dot_dimension_numbers<[1], [0], [0], [1], [0, 0, 1, 1], [], []>} : vector<16x128xbf16>, vector<128x128xbf16>, vector<16x128xf32> -> vector<16x128xf32>
    %c0_43 = arith.constant 0 : index
    %c0_44 = arith.constant 0 : index
    %c0_45 = arith.constant 0 : index
    %103 = vector.load %arg13[%c0_43, %c0_44, %c0_45] : memref<1x1x128xf32, #tpu.memory_space<vmem>>, vector<1x1x128xf32>
    %104 = vector.shape_cast %103 : vector<1x1x128xf32> to vector<1x128xf32>
    %105 = vector.broadcast %104 : vector<1x128xf32> to vector<16x128xf32>
    %106 = arith.addf %102, %105 : vector<16x128xf32>
    %c0_46 = arith.constant 0 : index
    %c0_47 = arith.constant 0 : index
    %107 = vector.load %arg3[%c0_46, %c0_47] : memref<16x128xbf16, #tpu.memory_space<vmem>>, vector<16x128xbf16>
    %c0_48 = arith.constant 0 : index
    %c0_49 = arith.constant 0 : index
    %c0_50 = arith.constant 0 : index
    %108 = vector.load %arg14[%c0_48, %c0_49, %c0_50] : memref<1x128x256xbf16, #tpu.memory_space<vmem>>, vector<1x128x256xbf16>
    %109 = vector.shape_cast %108 : vector<1x128x256xbf16> to vector<128x256xbf16>
    %cst_51 = arith.constant dense<0.000000e+00> : vector<16x256xf32>
    %110 = tpu.matmul %107, %109, %cst_51 {dimension_numbers = #tpu.dot_dimension_numbers<[1], [0], [0], [1], [0, 0, 1, 1], [], []>} : vector<16x128xbf16>, vector<128x256xbf16>, vector<16x256xf32> -> vector<16x256xf32>
    %c0_52 = arith.constant 0 : index
    %c0_53 = arith.constant 0 : index
    %c0_54 = arith.constant 0 : index
    %111 = vector.load %arg15[%c0_52, %c0_53, %c0_54] : memref<1x1x256xf32, #tpu.memory_space<vmem>>, vector<1x1x256xf32>
    %112 = vector.shape_cast %111 : vector<1x1x256xf32> to vector<1x256xf32>
    %113 = vector.broadcast %112 : vector<1x256xf32> to vector<16x256xf32>
    %114 = arith.addf %110, %113 : vector<16x256xf32>
    %115 = arith.truncf %114 : vector<16x256xf32> to vector<16x256xbf16>
    %116 = arith.truncf %106 : vector<16x128xf32> to vector<16x128xbf16>
    %117 = vector.extract_strided_slice %115 {offsets = [0, 0], sizes = [16, 128], strides = [1, 1]} : vector<16x256xbf16> to vector<16x128xbf16>
    %118 = vector.extract_strided_slice %115 {offsets = [0, 128], sizes = [16, 128], strides = [1, 1]} : vector<16x256xbf16> to vector<16x128xbf16>
    %119 = vector.extract_strided_slice %116 {offsets = [0, 0], sizes = [16, 32], strides = [1, 1]} : vector<16x128xbf16> to vector<16x32xbf16>
    %120 = vector.shape_cast %119 : vector<16x32xbf16> to vector<1x16x32xbf16>
    %121 = vector.extract_strided_slice %116 {offsets = [0, 32], sizes = [16, 32], strides = [1, 1]} : vector<16x128xbf16> to vector<16x32xbf16>
    %122 = vector.shape_cast %121 : vector<16x32xbf16> to vector<1x16x32xbf16>
    %123 = vector.extract_strided_slice %116 {offsets = [0, 64], sizes = [16, 32], strides = [1, 1]} : vector<16x128xbf16> to vector<16x32xbf16>
    %124 = vector.shape_cast %123 : vector<16x32xbf16> to vector<1x16x32xbf16>
    %125 = vector.extract_strided_slice %116 {offsets = [0, 96], sizes = [16, 32], strides = [1, 1]} : vector<16x128xbf16> to vector<16x32xbf16>
    %126 = vector.shape_cast %125 : vector<16x32xbf16> to vector<1x16x32xbf16>
    %127 = tpu.concatenate %120, %122, %124, %126 in 0 : vector<1x16x32xbf16>, vector<1x16x32xbf16>, vector<1x16x32xbf16>, vector<1x16x32xbf16> -> vector<4x16x32xbf16>
    %128 = vector.extract_strided_slice %117 {offsets = [0, 0], sizes = [16, 32], strides = [1, 1]} : vector<16x128xbf16> to vector<16x32xbf16>
    %129 = vector.shape_cast %128 : vector<16x32xbf16> to vector<1x16x32xbf16>
    %130 = vector.extract_strided_slice %117 {offsets = [0, 32], sizes = [16, 32], strides = [1, 1]} : vector<16x128xbf16> to vector<16x32xbf16>
    %131 = vector.shape_cast %130 : vector<16x32xbf16> to vector<1x16x32xbf16>
    %132 = vector.extract_strided_slice %117 {offsets = [0, 64], sizes = [16, 32], strides = [1, 1]} : vector<16x128xbf16> to vector<16x32xbf16>
    %133 = vector.shape_cast %132 : vector<16x32xbf16> to vector<1x16x32xbf16>
    %134 = vector.extract_strided_slice %117 {offsets = [0, 96], sizes = [16, 32], strides = [1, 1]} : vector<16x128xbf16> to vector<16x32xbf16>
    %135 = vector.shape_cast %134 : vector<16x32xbf16> to vector<1x16x32xbf16>
    %136 = tpu.concatenate %129, %131, %133, %135 in 0 : vector<1x16x32xbf16>, vector<1x16x32xbf16>, vector<1x16x32xbf16>, vector<1x16x32xbf16> -> vector<4x16x32xbf16>
    %137 = vector.extract_strided_slice %118 {offsets = [0, 0], sizes = [16, 32], strides = [1, 1]} : vector<16x128xbf16> to vector<16x32xbf16>
    %138 = vector.shape_cast %137 : vector<16x32xbf16> to vector<1x16x32xbf16>
    %139 = vector.extract_strided_slice %118 {offsets = [0, 32], sizes = [16, 32], strides = [1, 1]} : vector<16x128xbf16> to vector<16x32xbf16>
    %140 = vector.shape_cast %139 : vector<16x32xbf16> to vector<1x16x32xbf16>
    %141 = vector.extract_strided_slice %118 {offsets = [0, 64], sizes = [16, 32], strides = [1, 1]} : vector<16x128xbf16> to vector<16x32xbf16>
    %142 = vector.shape_cast %141 : vector<16x32xbf16> to vector<1x16x32xbf16>
    %143 = vector.extract_strided_slice %118 {offsets = [0, 96], sizes = [16, 32], strides = [1, 1]} : vector<16x128xbf16> to vector<16x32xbf16>
    %144 = vector.shape_cast %143 : vector<16x32xbf16> to vector<1x16x32xbf16>
    %145 = tpu.concatenate %138, %140, %142, %144 in 0 : vector<1x16x32xbf16>, vector<1x16x32xbf16>, vector<1x16x32xbf16>, vector<1x16x32xbf16> -> vector<4x16x32xbf16>
    "tpu.trace_start"() <{level = 10 : i32, message = "bqd,bkd->bqk"}> : () -> ()
    %cst_55 = arith.constant dense<0.000000e+00> : vector<4x16x16xf32>
    %146 = tpu.matmul %127, %136, %cst_55 {dimension_numbers = #tpu.dot_dimension_numbers<[2], [2], [1], [1], [0, 0, 0, 1, 1, 1], [0], [0]>} : vector<4x16x32xbf16>, vector<4x16x32xbf16>, vector<4x16x16xf32> -> vector<4x16x16xf32>
    "tpu.trace_stop"() : () -> ()
    %147 = vector.shape_cast %146 : vector<4x16x16xf32> to vector<4x1x16x16xf32>
    %148 = vector.broadcast %6 : vector<1x1x1x16xf32> to vector<4x1x16x16xf32>
    %149 = arith.addf %147, %148 : vector<4x1x16x16xf32>
    %cst_56 = arith.constant dense<0xFF800000> : vector<4x1x16xf32>
    %150 = vector.multi_reduction <maximumf>, %149, %cst_56 [3] : vector<4x1x16x16xf32> to vector<4x1x16xf32>
    %151 = vector.shape_cast %150 : vector<4x1x16xf32> to vector<4x1x16x1xf32>
    %152 = vector.broadcast %151 : vector<4x1x16x1xf32> to vector<4x1x16x16xf32>
    %153 = arith.subf %149, %152 : vector<4x1x16x16xf32>
    %154 = math.exp %153 : vector<4x1x16x16xf32>
    %cst_57 = arith.constant dense<0.000000e+00> : vector<4x1x16xf32>
    %155 = vector.multi_reduction <add>, %154, %cst_57 [3] : vector<4x1x16x16xf32> to vector<4x1x16xf32>
    %156 = vector.shape_cast %155 : vector<4x1x16xf32> to vector<4x1x16x1xf32>
    %157 = tpu.reciprocal %156 {approx = true} : vector<4x1x16x1xf32> -> vector<4x1x16x1xf32>
    %158 = vector.broadcast %157 : vector<4x1x16x1xf32> to vector<4x1x16x16xf32>
    %159 = arith.mulf %154, %158 : vector<4x1x16x16xf32>
    %160 = vector.shape_cast %159 : vector<4x1x16x16xf32> to vector<4x16x16xf32>
    %161 = arith.truncf %160 : vector<4x16x16xf32> to vector<4x16x16xbf16>
    "tpu.trace_start"() <{level = 10 : i32, message = "bqk,bkd->bqd"}> : () -> ()
    %cst_58 = arith.constant dense<0.000000e+00> : vector<4x16x32xf32>
    %162 = tpu.matmul %161, %145, %cst_58 {dimension_numbers = #tpu.dot_dimension_numbers<[2], [1], [1], [2], [0, 0, 0, 1, 1, 2], [0], [0]>} : vector<4x16x16xbf16>, vector<4x16x32xbf16>, vector<4x16x32xf32> -> vector<4x16x32xf32>
    "tpu.trace_stop"() : () -> ()
    %c0_59 = arith.constant 0 : index
    %c0_60 = arith.constant 0 : index
    %c0_61 = arith.constant 0 : index
    %c0_62 = arith.constant 0 : index
    %163 = vector.load %arg16[%c0_59, %c0_60, %c0_61, %c0_62] : memref<1x4x32x128xbf16, #tpu.memory_space<vmem>>, vector<1x4x32x128xbf16>
    %164 = vector.shape_cast %163 : vector<1x4x32x128xbf16> to vector<4x32x128xbf16>
    %c0_63 = arith.constant 0 : index
    %c0_64 = arith.constant 0 : index
    %c0_65 = arith.constant 0 : index
    %165 = vector.load %arg17[%c0_63, %c0_64, %c0_65] : memref<1x1x128xf32, #tpu.memory_space<vmem>>, vector<1x1x128xf32>
    %166 = vector.shape_cast %165 : vector<1x1x128xf32> to vector<1x128xf32>
    %167 = arith.truncf %162 : vector<4x16x32xf32> to vector<4x16x32xbf16>
    "tpu.trace_start"() <{level = 10 : i32, message = "hmd,hdk->hmk"}> : () -> ()
    %cst_66 = arith.constant dense<0.000000e+00> : vector<4x16x128xf32>
    %168 = tpu.matmul %167, %164, %cst_66 {dimension_numbers = #tpu.dot_dimension_numbers<[2], [1], [1], [2], [0, 0, 0, 1, 1, 2], [0], [0]>} : vector<4x16x32xbf16>, vector<4x32x128xbf16>, vector<4x16x128xf32> -> vector<4x16x128xf32>
    "tpu.trace_stop"() : () -> ()
    %cst_67 = arith.constant dense<0.000000e+00> : vector<16x128xf32>
    %169 = vector.multi_reduction <add>, %168, %cst_67 [0] : vector<4x16x128xf32> to vector<16x128xf32>
    %170 = vector.broadcast %166 : vector<1x128xf32> to vector<16x128xf32>
    %171 = arith.addf %169, %170 : vector<16x128xf32>
    %172 = arith.addf %98, %171 : vector<16x128xf32>
    %c0_68 = arith.constant 0 : index
    %c0_69 = arith.constant 0 : index
    %c0_70 = arith.constant 0 : index
    %173 = vector.load %arg18[%c0_68, %c0_69, %c0_70] : memref<1x1x128xf32, #tpu.memory_space<vmem>>, vector<1x1x128xf32>
    %174 = vector.shape_cast %173 : vector<1x1x128xf32> to vector<1x128xf32>
    %c0_71 = arith.constant 0 : index
    %c0_72 = arith.constant 0 : index
    %c0_73 = arith.constant 0 : index
    %175 = vector.load %arg19[%c0_71, %c0_72, %c0_73] : memref<1x1x128xf32, #tpu.memory_space<vmem>>, vector<1x1x128xf32>
    %176 = vector.shape_cast %175 : vector<1x1x128xf32> to vector<1x128xf32>
    %cst_74 = arith.constant dense<0.000000e+00> : vector<16xf32>
    %177 = vector.multi_reduction <add>, %172, %cst_74 [1] : vector<16x128xf32> to vector<16xf32>
    %178 = vector.shape_cast %177 : vector<16xf32> to vector<16x1xf32>
    %cst_75 = arith.constant 1.280000e+02 : f32
    %179 = vector.broadcast %cst_75 : f32 to vector<16x1xf32>
    %180 = arith.divf %178, %179 : vector<16x1xf32>
    %181 = vector.broadcast %180 : vector<16x1xf32> to vector<16x128xf32>
    %182 = arith.subf %172, %181 : vector<16x128xf32>
    %183 = arith.mulf %182, %182 : vector<16x128xf32>
    %cst_76 = arith.constant dense<0.000000e+00> : vector<16xf32>
    %184 = vector.multi_reduction <add>, %183, %cst_76 [1] : vector<16x128xf32> to vector<16xf32>
    %185 = vector.shape_cast %184 : vector<16xf32> to vector<16x1xf32>
    %cst_77 = arith.constant 1.280000e+02 : f32
    %186 = vector.broadcast %cst_77 : f32 to vector<16x1xf32>
    %187 = arith.divf %185, %186 : vector<16x1xf32>
    %188 = vector.broadcast %180 : vector<16x1xf32> to vector<16x128xf32>
    %189 = arith.subf %172, %188 : vector<16x128xf32>
    %cst_78 = arith.constant 9.99999974E-6 : f32
    %190 = vector.broadcast %cst_78 : f32 to vector<16x1xf32>
    %191 = arith.addf %187, %190 : vector<16x1xf32>
    %192 = math.rsqrt %191 : vector<16x1xf32>
    %193 = vector.broadcast %192 : vector<16x1xf32> to vector<16x128xf32>
    %194 = arith.mulf %189, %193 : vector<16x128xf32>
    %195 = vector.broadcast %174 : vector<1x128xf32> to vector<16x128xf32>
    %196 = arith.mulf %194, %195 : vector<16x128xf32>
    %197 = vector.broadcast %176 : vector<1x128xf32> to vector<16x128xf32>
    %198 = arith.addf %196, %197 : vector<16x128xf32>
    %199 = arith.truncf %198 : vector<16x128xf32> to vector<16x128xbf16>
    %c0_79 = arith.constant 0 : index
    %c0_80 = arith.constant 0 : index
    %c0_81 = arith.constant 0 : index
    %200 = vector.load %arg20[%c0_79, %c0_80, %c0_81] : memref<1x128x256xbf16, #tpu.memory_space<vmem>>, vector<1x128x256xbf16>
    %201 = vector.shape_cast %200 : vector<1x128x256xbf16> to vector<128x256xbf16>
    %cst_82 = arith.constant dense<0.000000e+00> : vector<16x256xf32>
    %202 = tpu.matmul %199, %201, %cst_82 {dimension_numbers = #tpu.dot_dimension_numbers<[1], [0], [0], [1], [0, 0, 1, 1], [], []>} : vector<16x128xbf16>, vector<128x256xbf16>, vector<16x256xf32> -> vector<16x256xf32>
    %c0_83 = arith.constant 0 : index
    %c0_84 = arith.constant 0 : index
    %c0_85 = arith.constant 0 : index
    %203 = vector.load %arg21[%c0_83, %c0_84, %c0_85] : memref<1x1x256xf32, #tpu.memory_space<vmem>>, vector<1x1x256xf32>
    %204 = vector.shape_cast %203 : vector<1x1x256xf32> to vector<1x256xf32>
    %205 = vector.broadcast %204 : vector<1x256xf32> to vector<16x256xf32>
    %206 = arith.addf %202, %205 : vector<16x256xf32>
    %cst_86 = arith.constant 0.000000e+00 : f32
    %207 = vector.broadcast %cst_86 : f32 to vector<16x256xf32>
    %208 = arith.maximumf %206, %207 : vector<16x256xf32>
    %209 = arith.truncf %208 : vector<16x256xf32> to vector<16x256xbf16>
    %c0_87 = arith.constant 0 : index
    %c0_88 = arith.constant 0 : index
    %c0_89 = arith.constant 0 : index
    %210 = vector.load %arg22[%c0_87, %c0_88, %c0_89] : memref<1x256x128xbf16, #tpu.memory_space<vmem>>, vector<1x256x128xbf16>
    %211 = vector.shape_cast %210 : vector<1x256x128xbf16> to vector<256x128xbf16>
    %cst_90 = arith.constant dense<0.000000e+00> : vector<16x128xf32>
    %212 = tpu.matmul %209, %211, %cst_90 {dimension_numbers = #tpu.dot_dimension_numbers<[1], [0], [0], [1], [0, 0, 1, 1], [], []>} : vector<16x256xbf16>, vector<256x128xbf16>, vector<16x128xf32> -> vector<16x128xf32>
    %c0_91 = arith.constant 0 : index
    %c0_92 = arith.constant 0 : index
    %c0_93 = arith.constant 0 : index
    %213 = vector.load %arg23[%c0_91, %c0_92, %c0_93] : memref<1x1x128xf32, #tpu.memory_space<vmem>>, vector<1x1x128xf32>
    %214 = vector.shape_cast %213 : vector<1x1x128xf32> to vector<1x128xf32>
    %215 = vector.broadcast %214 : vector<1x128xf32> to vector<16x128xf32>
    %216 = arith.addf %212, %215 : vector<16x128xf32>
    %217 = arith.addf %198, %216 : vector<16x128xf32>
    %c0_94 = arith.constant 0 : index
    %c0_95 = arith.constant 0 : index
    %c0_96 = arith.constant 0 : index
    %218 = vector.load %arg24[%c0_94, %c0_95, %c0_96] : memref<1x1x128xf32, #tpu.memory_space<vmem>>, vector<1x1x128xf32>
    %219 = vector.shape_cast %218 : vector<1x1x128xf32> to vector<1x128xf32>
    %c0_97 = arith.constant 0 : index
    %c0_98 = arith.constant 0 : index
    %c0_99 = arith.constant 0 : index
    %220 = vector.load %arg25[%c0_97, %c0_98, %c0_99] : memref<1x1x128xf32, #tpu.memory_space<vmem>>, vector<1x1x128xf32>
    %221 = vector.shape_cast %220 : vector<1x1x128xf32> to vector<1x128xf32>
    %cst_100 = arith.constant dense<0.000000e+00> : vector<16xf32>
    %222 = vector.multi_reduction <add>, %217, %cst_100 [1] : vector<16x128xf32> to vector<16xf32>
    %223 = vector.shape_cast %222 : vector<16xf32> to vector<16x1xf32>
    %cst_101 = arith.constant 1.280000e+02 : f32
    %224 = vector.broadcast %cst_101 : f32 to vector<16x1xf32>
    %225 = arith.divf %223, %224 : vector<16x1xf32>
    %226 = vector.broadcast %225 : vector<16x1xf32> to vector<16x128xf32>
    %227 = arith.subf %217, %226 : vector<16x128xf32>
    %228 = arith.mulf %227, %227 : vector<16x128xf32>
    %cst_102 = arith.constant dense<0.000000e+00> : vector<16xf32>
    %229 = vector.multi_reduction <add>, %228, %cst_102 [1] : vector<16x128xf32> to vector<16xf32>
    %230 = vector.shape_cast %229 : vector<16xf32> to vector<16x1xf32>
    %cst_103 = arith.constant 1.280000e+02 : f32
    %231 = vector.broadcast %cst_103 : f32 to vector<16x1xf32>
    %232 = arith.divf %230, %231 : vector<16x1xf32>
    %233 = vector.broadcast %225 : vector<16x1xf32> to vector<16x128xf32>
    %234 = arith.subf %217, %233 : vector<16x128xf32>
    %cst_104 = arith.constant 9.99999974E-6 : f32
    %235 = vector.broadcast %cst_104 : f32 to vector<16x1xf32>
    %236 = arith.addf %232, %235 : vector<16x1xf32>
    %237 = math.rsqrt %236 : vector<16x1xf32>
    %238 = vector.broadcast %237 : vector<16x1xf32> to vector<16x128xf32>
    %239 = arith.mulf %234, %238 : vector<16x128xf32>
    %240 = vector.broadcast %219 : vector<1x128xf32> to vector<16x128xf32>
    %241 = arith.mulf %239, %240 : vector<16x128xf32>
    %242 = vector.broadcast %221 : vector<1x128xf32> to vector<16x128xf32>
    %243 = arith.addf %241, %242 : vector<16x128xf32>
    %c0_105 = arith.constant 0 : index
    %c0_106 = arith.constant 0 : index
    %244 = vector.load %arg26[%c0_105, %c0_106] : memref<16x128xf32, #tpu.memory_space<vmem>>, vector<16x128xf32>
    tpu.vector_store %arg26[%c0_105, %c0_106], %243 {strides = array<i32>} : memref<16x128xf32, #tpu.memory_space<vmem>>, vector<16x128xf32>,
    return
  }
  func.func @transform_0(%arg0: i32, %arg1: i32) -> (i32, i32) {
    %c0_i32 = arith.constant 0 : i32
    %c0_i32_0 = arith.constant 0 : i32
    return %arg0, %c0_i32 : i32, i32
  }
  func.func @transform_1(%arg0: i32, %arg1: i32) -> (i32, i32) {
    %c0_i32 = arith.constant 0 : i32
    %c0_i32_0 = arith.constant 0 : i32
    return %arg0, %c0_i32 : i32, i32
  }
  func.func @transform_2(%arg0: i32, %arg1: i32) -> (i32, i32, i32) {
    %c0_i32 = arith.constant 0 : i32
    %c0_i32_0 = arith.constant 0 : i32
    %c0_i32_1 = arith.constant 0 : i32
    return %arg0, %c0_i32, %c0_i32_0 : i32, i32, i32
  }
  func.func @transform_3(%arg0: i32, %arg1: i32) -> (i32, i32, i32, i32) {
    %c0_i32 = arith.constant 0 : i32
    %c0_i32_0 = arith.constant 0 : i32
    %c0_i32_1 = arith.constant 0 : i32
    %c0_i32_2 = arith.constant 0 : i32
    %c0_i32_3 = arith.constant 0 : i32
    return %c0_i32, %c0_i32_0, %c0_i32_1, %c0_i32_2 : i32, i32, i32, i32
  }
  func.func @transform_4(%arg0: i32, %arg1: i32) -> (i32, i32, i32) {
    %c0_i32 = arith.constant 0 : i32
    %c0_i32_0 = arith.constant 0 : i32
    %c0_i32_1 = arith.constant 0 : i32
    return %arg1, %c0_i32, %c0_i32_0 : i32, i32, i32
  }
  func.func @transform_5(%arg0: i32, %arg1: i32) -> (i32, i32, i32) {
    %c0_i32 = arith.constant 0 : i32
    %c0_i32_0 = arith.constant 0 : i32
    %c0_i32_1 = arith.constant 0 : i32
    return %arg1, %c0_i32, %c0_i32_0 : i32, i32, i32
  }
  func.func @transform_6(%arg0: i32, %arg1: i32) -> (i32, i32, i32, i32) {
    %c0_i32 = arith.constant 0 : i32
    %c0_i32_0 = arith.constant 0 : i32
    %c0_i32_1 = arith.constant 0 : i32
    %c0_i32_2 = arith.constant 0 : i32
    return %arg1, %c0_i32, %c0_i32_0, %c0_i32_1 : i32, i32, i32, i32
  }
  func.func @transform_7(%arg0: i32, %arg1: i32) -> (i32, i32, i32) {
    %c0_i32 = arith.constant 0 : i32
    %c0_i32_0 = arith.constant 0 : i32
    %c0_i32_1 = arith.constant 0 : i32
    return %arg1, %c0_i32, %c0_i32_0 : i32, i32, i32
  }
  func.func @transform_8(%arg0: i32, %arg1: i32) -> (i32, i32, i32) {
    %c0_i32 = arith.constant 0 : i32
    %c0_i32_0 = arith.constant 0 : i32
    %c0_i32_1 = arith.constant 0 : i32
    return %arg1, %c0_i32, %c0_i32_0 : i32, i32, i32
  }
  func.func @transform_9(%arg0: i32, %arg1: i32) -> (i32, i32, i32) {
    %c0_i32 = arith.constant 0 : i32
    %c0_i32_0 = arith.constant 0 : i32
    %c0_i32_1 = arith.constant 0 : i32
    return %arg1, %c0_i32, %c0_i32_0 : i32, i32, i32
  }
  func.func @transform_10(%arg0: i32, %arg1: i32) -> (i32, i32, i32) {
    %c0_i32 = arith.constant 0 : i32
    %c0_i32_0 = arith.constant 0 : i32
    %c0_i32_1 = arith.constant 0 : i32
    return %arg1, %c0_i32, %c0_i32_0 : i32, i32, i32
  }
  func.func @transform_11(%arg0: i32, %arg1: i32) -> (i32, i32, i32) {
    %c0_i32 = arith.constant 0 : i32
    %c0_i32_0 = arith.constant 0 : i32
    %c0_i32_1 = arith.constant 0 : i32
    return %arg1, %c0_i32, %c0_i32_0 : i32, i32, i32
  }
  func.func @transform_12(%arg0: i32, %arg1: i32) -> (i32, i32, i32) {
    %c0_i32 = arith.constant 0 : i32
    %c0_i32_0 = arith.constant 0 : i32
    %c0_i32_1 = arith.constant 0 : i32
    return %arg1, %c0_i32, %c0_i32_0 : i32, i32, i32
  }
  func.func @transform_13(%arg0: i32, %arg1: i32) -> (i32, i32, i32) {
    %c0_i32 = arith.constant 0 : i32
    %c0_i32_0 = arith.constant 0 : i32
    %c0_i32_1 = arith.constant 0 : i32
    return %arg1, %c0_i32, %c0_i32_0 : i32, i32, i32
  }
  func.func @transform_14(%arg0: i32, %arg1: i32) -> (i32, i32, i32, i32) {
    %c0_i32 = arith.constant 0 : i32
    %c0_i32_0 = arith.constant 0 : i32
    %c0_i32_1 = arith.constant 0 : i32
    %c0_i32_2 = arith.constant 0 : i32
    return %arg1, %c0_i32, %c0_i32_0, %c0_i32_1 : i32, i32, i32, i32
  }
  func.func @transform_15(%arg0: i32, %arg1: i32) -> (i32, i32, i32) {
    %c0_i32 = arith.constant 0 : i32
    %c0_i32_0 = arith.constant 0 : i32
    %c0_i32_1 = arith.constant 0 : i32
    return %arg1, %c0_i32, %c0_i32_0 : i32, i32, i32
  }
  func.func @transform_16(%arg0: i32, %arg1: i32) -> (i32, i32, i32) {
    %c0_i32 = arith.constant 0 : i32
    %c0_i32_0 = arith.constant 0 : i32
    %c0_i32_1 = arith.constant 0 : i32
    return %arg1, %c0_i32, %c0_i32_0 : i32, i32, i32
  }
  func.func @transform_17(%arg0: i32, %arg1: i32) -> (i32, i32, i32) {
    %c0_i32 = arith.constant 0 : i32
    %c0_i32_0 = arith.constant 0 : i32
    %c0_i32_1 = arith.constant 0 : i32
    return %arg1, %c0_i32, %c0_i32_0 : i32, i32, i32
  }
  func.func @transform_18(%arg0: i32, %arg1: i32) -> (i32, i32, i32) {
    %c0_i32 = arith.constant 0 : i32
    %c0_i32_0 = arith.constant 0 : i32
    %c0_i32_1 = arith.constant 0 : i32
    return %arg1, %c0_i32, %c0_i32_0 : i32, i32, i32
  }
  func.func @transform_19(%arg0: i32, %arg1: i32) -> (i32, i32, i32) {
    %c0_i32 = arith.constant 0 : i32
    %c0_i32_0 = arith.constant 0 : i32
    %c0_i32_1 = arith.constant 0 : i32
    return %arg1, %c0_i32, %c0_i32_0 : i32, i32, i32
  }
  func.func @transform_20(%arg0: i32, %arg1: i32) -> (i32, i32, i32) {
    %c0_i32 = arith.constant 0 : i32
    %c0_i32_0 = arith.constant 0 : i32
    %c0_i32_1 = arith.constant 0 : i32
    return %arg1, %c0_i32, %c0_i32_0 : i32, i32, i32
  }
  func.func @transform_21(%arg0: i32, %arg1: i32) -> (i32, i32, i32) {
    %c0_i32 = arith.constant 0 : i32
    %c0_i32_0 = arith.constant 0 : i32
    %c0_i32_1 = arith.constant 0 : i32
    return %arg1, %c0_i32, %c0_i32_0 : i32, i32, i32
  }
  func.func @transform_22(%arg0: i32, %arg1: i32) -> (i32, i32, i32) {
    %c0_i32 = arith.constant 0 : i32
    %c0_i32_0 = arith.constant 0 : i32
    %c0_i32_1 = arith.constant 0 : i32
    return %arg1, %c0_i32, %c0_i32_0 : i32, i32, i32
  }
  func.func @transform_23(%arg0: i32, %arg1: i32) -> (i32, i32, i32) {
    %c0_i32 = arith.constant 0 : i32
    %c0_i32_0 = arith.constant 0 : i32
    %c0_i32_1 = arith.constant 0 : i32
    return %arg1, %c0_i32, %c0_i32_0 : i32, i32, i32
  }
  func.func @transform_24(%arg0: i32, %arg1: i32) -> (i32, i32) {
    %c0_i32 = arith.constant 0 : i32
    %c0_i32_0 = arith.constant 0 : i32
    return %arg0, %c0_i32 : i32, i32
  }
}

</mosaic_0001>

<llo_original>
// kernel: tpu_custom_call.1
$region0: #{tpu_custom_call.1}
  #allocation0 [shape = 'u32[]', space=smem, size = 0x4, offset = 0x4, fixed_abs, tag = 'smem constant byte address 0x4 - core index']
  #allocation1 [shape = 'u32[144,128]{1,0:T(1,128)}', space=vmem, size = 0x12000, scoped, tag = 'internal scratch']
  %s0 = inlined_call_operand.hbm [shape: f32[32,128], index: 0, kind: input, shape index: {}]
  %s1 = inlined_call_operand.hbm [shape: bf16[32,128], index: 1, kind: input, shape index: {}]
  %s2 = inlined_call_operand.hbm [shape: f32[2,1,16], index: 2, kind: input, shape index: {}]
  %s3 = inlined_call_operand.hbm [shape: f32[1,1,16,16], index: 3, kind: input, shape index: {}]
  %s4 = inlined_call_operand.hbm [shape: bf16[2,128,384], index: 4, kind: input, shape index: {}]
  %s5 = inlined_call_operand.vmem [shape: f32[2,1,384], index: 5, kind: input, shape index: {}]
  %s6 = inlined_call_operand.hbm [shape: bf16[2,4,32,128], index: 6, kind: input, shape index: {}]
  %s7 = inlined_call_operand.vmem [shape: f32[2,1,128], index: 7, kind: input, shape index: {}]
  %s8 = inlined_call_operand.vmem [shape: f32[2,1,128], index: 8, kind: input, shape index: {}]
  %s9 = inlined_call_operand.vmem [shape: f32[2,1,128], index: 9, kind: input, shape index: {}]
  %s10 = inlined_call_operand.hbm [shape: bf16[2,128,128], index: 10, kind: input, shape index: {}]
  %s11 = inlined_call_operand.vmem [shape: f32[2,1,128], index: 11, kind: input, shape index: {}]
  %s12 = inlined_call_operand.hbm [shape: bf16[2,128,256], index: 12, kind: input, shape index: {}]
  %s13 = inlined_call_operand.vmem [shape: f32[2,1,256], index: 13, kind: input, shape index: {}]
  %s14 = inlined_call_operand.hbm [shape: bf16[2,4,32,128], index: 14, kind: input, shape index: {}]
  %s15 = inlined_call_operand.vmem [shape: f32[2,1,128], index: 15, kind: input, shape index: {}]
  %s16 = inlined_call_operand.vmem [shape: f32[2,1,128], index: 16, kind: input, shape index: {}]
  %s17 = inlined_call_operand.vmem [shape: f32[2,1,128], index: 17, kind: input, shape index: {}]
  %s18 = inlined_call_operand.hbm [shape: bf16[2,128,256], index: 18, kind: input, shape index: {}]
  %s19 = inlined_call_operand.vmem [shape: f32[2,1,256], index: 19, kind: input, shape index: {}]
  %s20 = inlined_call_operand.hbm [shape: bf16[2,256,128], index: 20, kind: input, shape index: {}]
  %s21 = inlined_call_operand.vmem [shape: f32[2,1,128], index: 21, kind: input, shape index: {}]
  %s22 = inlined_call_operand.vmem [shape: f32[2,1,128], index: 22, kind: input, shape index: {}]
  %s23 = inlined_call_operand.vmem [shape: f32[2,1,128], index: 23, kind: input, shape index: {}]
  %s24 = inlined_call_operand.hbm [shape: f32[32,128], index: 24, kind: output, shape index: {}]
  %s25 = sld [smem:[#allocation0]]
  $region177: #{tpu_custom_call.1} parent=0
    _
  %s27 = ssub.s32 1, %s25
  %s28 = scalar_select 0, %s27, %s25
  $region1: #{tpu_custom_call.1} parent=0
    #allocation2 [shape = 'u8[16384]{0}', space=vmem, size = 0x4000, scoped, tag = 'input window, operand 0']
    #allocation3 [shape = 's32[2]{0}', space=sflag, size = 0x8, scoped, tag = 'scoped memory for tpu_custom_call.1']
    #allocation4 [shape = 's32[2]{0}', space=sflag, size = 0x8, scoped, tag = 'scoped memory for tpu_custom_call.1']
    #allocation5 [shape = 'u8[8192]{0}', space=vmem, size = 0x2000, scoped, tag = 'input window, operand 1']
    #allocation6 [shape = 's32[2]{0}', space=sflag, size = 0x8, scoped, tag = 'scoped memory for tpu_custom_call.1']
    #allocation7 [shape = 'u8[1024]{0}', space=vmem, size = 0x400, scoped, tag = 'input window, operand 2']
    #allocation8 [shape = 'u8[8192]{0}', space=vmem, size = 0x2000, scoped, tag = 'input window, operand 3, single buffered']
    #allocation9 [shape = 's32[1]{0}', space=sflag, size = 0x4, scoped, tag = 'scoped memory for tpu_custom_call.1']
    #allocation10 [shape = 'u8[196608]{0}', space=vmem, size = 0x30000, scoped, tag = 'input window, operand 4']
    #allocation11 [shape = 'u8[65536]{0}', space=vmem, size = 0x10000, scoped, tag = 'input window, operand 6']
    #allocation12 [shape = 'u8[65536]{0}', space=vmem, size = 0x10000, scoped, tag = 'input window, operand 10']
    #allocation13 [shape = 'u8[131072]{0}', space=vmem, size = 0x20000, scoped, tag = 'input window, operand 12']
    #allocation14 [shape = 'u8[65536]{0}', space=vmem, size = 0x10000, scoped, tag = 'input window, operand 14']
    #allocation15 [shape = 'u8[131072]{0}', space=vmem, size = 0x20000, scoped, tag = 'input window, operand 18']
    #allocation16 [shape = 'u8[131072]{0}', space=vmem, size = 0x20000, scoped, tag = 'input window, operand 20']
    #allocation17 [shape = 'u8[16384]{0}', space=vmem, size = 0x4000, scoped, tag = 'output window, operand 0']
    %29 = vsyncpa [#allocation3], 0
    %s30 = scalar_lea.sflag [#allocation3], 1
    %31 = vsyncpa %s30, 0
    %32 = vsyncpa [#allocation6], 0
    %s33 = scalar_lea.sflag [#allocation6], 1
    %34 = vsyncpa %s33, 0
    %35 = vsyncpa [#allocation9], 0
    %36 = vsyncpa [#allocation4], 0
    %s37 = scalar_lea.sflag [#allocation4], 1
    %38 = vsyncpa %s37, 0
    loop: start=0, step=1, limit=6
    $region2: #{tpu_custom_call.1} parent=1 // loop_pre_header
      _
    $region3: #{tpu_custom_call.1} parent=1 // loop_header
      %s40 = sphi 0, %s44
      %p41 = scmp.ge.s32.totalorder %s40, 6
      %s47 = sphi 0, %s59
      %s48 = sphi 0, %s55
      %s49 = sphi 0, %s47
      %s50 = sphi 0, %s48
      %s51 = sphi 0, %s49
      %s52 = sphi 0, %s50
      %s62 = sphi 0, %s64
      %s65 = sphi 0, %s62
      %s66 = sphi 0, %s65
      %s82 = sphi 0, %s66
      %s88 = sphi 0, %s90
      %s91 = sphi 0, %s88
      %s92 = sphi 0, %s91
      %s108 = sphi 0, %s92
      %s114 = sphi 0, %s116
      %s117 = sphi 0, %s114
      %s118 = sphi 0, %s117
      %s134 = sphi 0, %s118
      %s138 = sphi 0, %s138
      %s140 = sphi 0, %s138
      %s141 = sphi 0, %s140
      %s155 = sphi 0, %s141
      %s161 = sphi 0, %s163
      %s164 = sphi 0, %s161
      %s165 = sphi 0, %s164
      %s181 = sphi 0, %s165
      %s187 = sphi 0, %s189
      %s190 = sphi 0, %s187
      %s191 = sphi 0, %s190
      %s207 = sphi 0, %s191
      %s213 = sphi 0, %s215
      %s216 = sphi 0, %s213
      %s217 = sphi 0, %s216
      %s233 = sphi 0, %s217
      %s239 = sphi 0, %s241
      %s242 = sphi 0, %s239
      %s243 = sphi 0, %s242
      %s259 = sphi 0, %s243
      %s265 = sphi 0, %s267
      %s268 = sphi 0, %s265
      %s269 = sphi 0, %s268
      %s285 = sphi 0, %s269
      %s291 = sphi 0, %s293
      %s294 = sphi 0, %s291
      %s295 = sphi 0, %s294
      %s311 = sphi 0, %s295
      %s317 = sphi 0, %s319
      %s320 = sphi 0, %s317
      %s321 = sphi 0, %s320
      %s337 = sphi 0, %s321
      %s343 = sphi 0, %s345
      %s346 = sphi 0, %s343
      %s347 = sphi 0, %s346
      %s363 = sphi 0, %s347
      %s369 = sphi 0, %s371
      %s372 = sphi 0, %s369
      %s373 = sphi 0, %s372
      %s389 = sphi 0, %s373
      %s395 = sphi 0, %s397
      %s398 = sphi 0, %s395
      %s399 = sphi 0, %s398
      %s415 = sphi 0, %s399
      %s421 = sphi 0, %s423
      %s424 = sphi 0, %s421
      %s425 = sphi 0, %s424
      %s441 = sphi 0, %s425
      %s447 = sphi 0, %s449
      %s450 = sphi 0, %s447
      %s451 = sphi 0, %s450
      %s467 = sphi 0, %s451
      %s473 = sphi 0, %s475
      %s476 = sphi 0, %s473
      %s477 = sphi 0, %s476
      %s493 = sphi 0, %s477
      %s499 = sphi 0, %s501
      %s502 = sphi 0, %s499
      %s503 = sphi 0, %s502
      %s519 = sphi 0, %s503
      %s525 = sphi 0, %s527
      %s528 = sphi 0, %s525
      %s529 = sphi 0, %s528
      %s545 = sphi 0, %s529
      %s551 = sphi 0, %s553
      %s554 = sphi 0, %s551
      %s555 = sphi 0, %s554
      %s571 = sphi 0, %s555
      %s577 = sphi 0, %s579
      %s580 = sphi 0, %s577
      %s581 = sphi 0, %s580
      %s597 = sphi 0, %s581
      %s603 = sphi 0, %s605
      %s606 = sphi 0, %s603
      %s607 = sphi 0, %s606
      %s623 = sphi 0, %s607
      %s629 = sphi 0, %s631
      %s632 = sphi 0, %s629
      %s633 = sphi 0, %s632
      %s649 = sphi 0, %s633
      %s655 = sphi 0, %s657
      %s658 = sphi 0, %s655
      %s659 = sphi 0, %s658
      %s675 = sphi 0, %s659
      %s681 = sphi 0, %s683
      %s684 = sphi 0, %s681
      %s685 = sphi 0, %s684
      %s701 = sphi 0, %s685
    $region4: #{tpu_custom_call.1} parent=1 // loop_header_branch
      %43 = sbr.rel (%p41) target = $region8
    $region5: #{tpu_custom_call.1} parent=1 // loop_body
      %s45 = ssub.s32 %s40, 1
      %s46 = ssub.s32 %s40, 2
      %s53 = sadd.s32 1, %s48
      %p54 = scmp.ge.s32.totalorder %s53, 2
      %s55 = scalar_select %p54, 0, %s53
      %s56 = sadd.s32 1, %s47
      %s57 = scalar_select %p54, %s56, %s47
      %p58 = scmp.ge.s32.totalorder %s57, 2
      %s59 = scalar_select %p58, 0, %s57
      %s60 = ssub.s32 %s47, %s59
      %p61 = scmp.eq.s32.totalorder %s60, 0
      %s63 = sadd.s32 %s62, 1
      %s64 = scalar_select %p61, %s62, %s63
      %p67 = pneg %p61
      %p68 = scmp.eq.s32.totalorder %s40, 3
      %p69 = por %p67, %p68
      %p70 = scmp.ne.s32.totalorder %s62, %s65
      %p71 = scmp.eq.s32.totalorder %s40, 0
      %p72 = por %p70, %p71
      %p73 = scmp.ne.s32.totalorder %s62, %s65
      %p74 = scmp.eq.s32.totalorder %s45, 3
      %p75 = por %p73, %p74
      %p76 = scmp.ne.s32.totalorder %s65, %s66
      %p77 = scmp.eq.s32.totalorder %s45, 0
      %p78 = por %p76, %p77
      %p79 = scmp.ne.s32.totalorder %s65, %s66
      %p80 = scmp.eq.s32.totalorder %s46, 3
      %p81 = por %p79, %p80
      %p83 = scmp.ne.s32.totalorder %s66, %s82
      %p84 = scmp.eq.s32.totalorder %s46, 0
      %p85 = por %p83, %p84
      %s86 = ssub.s32 %s47, %s59
      %p87 = scmp.eq.s32.totalorder %s86, 0
      %s89 = sadd.s32 %s88, 1
      %s90 = scalar_select %p87, %s88, %s89
      %p93 = pneg %p87
      %p94 = scmp.eq.s32.totalorder %s40, 3
      %p95 = por %p93, %p94
      %p96 = scmp.ne.s32.totalorder %s88, %s91
      %p97 = scmp.eq.s32.totalorder %s40, 0
      %p98 = por %p96, %p97
      %p99 = scmp.ne.s32.totalorder %s88, %s91
      %p100 = scmp.eq.s32.totalorder %s45, 3
      %p101 = por %p99, %p100
      %p102 = scmp.ne.s32.totalorder %s91, %s92
      %p103 = scmp.eq.s32.totalorder %s45, 0
      %p104 = por %p102, %p103
      %p105 = scmp.ne.s32.totalorder %s91, %s92
      %p106 = scmp.eq.s32.totalorder %s46, 3
      %p107 = por %p105, %p106
      %p109 = scmp.ne.s32.totalorder %s92, %s108
      %p110 = scmp.eq.s32.totalorder %s46, 0
      %p111 = por %p109, %p110
      %s112 = ssub.s32 %s47, %s59
      %p113 = scmp.eq.s32.totalorder %s112, 0
      %s115 = sadd.s32 %s114, 1
      %s116 = scalar_select %p113, %s114, %s115
      %p119 = pneg %p113
      %p120 = scmp.eq.s32.totalorder %s40, 3
      %p121 = por %p119, %p120
      %p122 = scmp.ne.s32.totalorder %s114, %s117
      %p123 = scmp.eq.s32.totalorder %s40, 0
      %p124 = por %p122, %p123
      %p125 = scmp.ne.s32.totalorder %s114, %s117
      %p126 = scmp.eq.s32.totalorder %s45, 3
      %p127 = por %p125, %p126
      %p128 = scmp.ne.s32.totalorder %s117, %s118
      %p129 = scmp.eq.s32.totalorder %s45, 0
      %p130 = por %p128, %p129
      %p131 = scmp.ne.s32.totalorder %s117, %s118
      %p132 = scmp.eq.s32.totalorder %s46, 3
      %p133 = por %p131, %p132
      %p135 = scmp.ne.s32.totalorder %s118, %s134
      %p136 = scmp.eq.s32.totalorder %s46, 0
      %p137 = por %p135, %p136
      %s139 = sadd.s32 %s138, 1
      %p142 = scmp.eq.s32.totalorder %s40, 3
      %p143 = scmp.ne.s32.totalorder %s138, %s140
      %p144 = scmp.eq.s32.totalorder %s40, 0
      %p145 = por %p143, %p144
      %p146 = scmp.ne.s32.totalorder %s138, %s140
      %p147 = scmp.eq.s32.totalorder %s45, 3
      %p148 = por %p146, %p147
      %p149 = scmp.ne.s32.totalorder %s140, %s141
      %p150 = scmp.eq.s32.totalorder %s45, 0
      %p151 = por %p149, %p150
      %p152 = scmp.ne.s32.totalorder %s140, %s141
      %p153 = scmp.eq.s32.totalorder %s46, 3
      %p154 = por %p152, %p153
      %p156 = scmp.ne.s32.totalorder %s141, %s155
      %p157 = scmp.eq.s32.totalorder %s46, 0
      %p158 = por %p156, %p157
      %s159 = ssub.s32 %s48, %s55
      %p160 = scmp.eq.s32.totalorder %s159, 0
      %s162 = sadd.s32 %s161, 1
      %s163 = scalar_select %p160, %s161, %s162
      %p166 = pneg %p160
      %p167 = scmp.eq.s32.totalorder %s40, 3
      %p168 = por %p166, %p167
      %p169 = scmp.ne.s32.totalorder %s161, %s164
      %p170 = scmp.eq.s32.totalorder %s40, 0
      %p171 = por %p169, %p170
      %p172 = scmp.ne.s32.totalorder %s161, %s164
      %p173 = scmp.eq.s32.totalorder %s45, 3
      %p174 = por %p172, %p173
      %p175 = scmp.ne.s32.totalorder %s164, %s165
      %p176 = scmp.eq.s32.totalorder %s45, 0
      %p177 = por %p175, %p176
      %p178 = scmp.ne.s32.totalorder %s164, %s165
      %p179 = scmp.eq.s32.totalorder %s46, 3
      %p180 = por %p178, %p179
      %p182 = scmp.ne.s32.totalorder %s165, %s181
      %p183 = scmp.eq.s32.totalorder %s46, 0
      %p184 = por %p182, %p183
      %s185 = ssub.s32 %s48, %s55
      %p186 = scmp.eq.s32.totalorder %s185, 0
      %s188 = sadd.s32 %s187, 1
      %s189 = scalar_select %p186, %s187, %s188
      %p192 = pneg %p186
      %p193 = scmp.eq.s32.totalorder %s40, 3
      %p194 = por %p192, %p193
      %p195 = scmp.ne.s32.totalorder %s187, %s190
      %p196 = scmp.eq.s32.totalorder %s40, 0
      %p197 = por %p195, %p196
      %p198 = scmp.ne.s32.totalorder %s187, %s190
      %p199 = scmp.eq.s32.totalorder %s45, 3
      %p200 = por %p198, %p199
      %p201 = scmp.ne.s32.totalorder %s190, %s191
      %p202 = scmp.eq.s32.totalorder %s45, 0
      %p203 = por %p201, %p202
      %p204 = scmp.ne.s32.totalorder %s190, %s191
      %p205 = scmp.eq.s32.totalorder %s46, 3
      %p206 = por %p204, %p205
      %p208 = scmp.ne.s32.totalorder %s191, %s207
      %p209 = scmp.eq.s32.totalorder %s46, 0
      %p210 = por %p208, %p209
      %s211 = ssub.s32 %s48, %s55
      %p212 = scmp.eq.s32.totalorder %s211, 0
      %s214 = sadd.s32 %s213, 1
      %s215 = scalar_select %p212, %s213, %s214
      %p218 = pneg %p212
      %p219 = scmp.eq.s32.totalorder %s40, 3
      %p220 = por %p218, %p219
      %p221 = scmp.ne.s32.totalorder %s213, %s216
      %p222 = scmp.eq.s32.totalorder %s40, 0
      %p223 = por %p221, %p222
      %p224 = scmp.ne.s32.totalorder %s213, %s216
      %p225 = scmp.eq.s32.totalorder %s45, 3
      %p226 = por %p224, %p225
      %p227 = scmp.ne.s32.totalorder %s216, %s217
      %p228 = scmp.eq.s32.totalorder %s45, 0
      %p229 = por %p227, %p228
      %p230 = scmp.ne.s32.totalorder %s216, %s217
      %p231 = scmp.eq.s32.totalorder %s46, 3
      %p232 = por %p230, %p231
      %p234 = scmp.ne.s32.totalorder %s217, %s233
      %p235 = scmp.eq.s32.totalorder %s46, 0
      %p236 = por %p234, %p235
      %s237 = ssub.s32 %s48, %s55
      %p238 = scmp.eq.s32.totalorder %s237, 0
      %s240 = sadd.s32 %s239, 1
      %s241 = scalar_select %p238, %s239, %s240
      %p244 = pneg %p238
      %p245 = scmp.eq.s32.totalorder %s40, 3
      %p246 = por %p244, %p245
      %p247 = scmp.ne.s32.totalorder %s239, %s242
      %p248 = scmp.eq.s32.totalorder %s40, 0
      %p249 = por %p247, %p248
      %p250 = scmp.ne.s32.totalorder %s239, %s242
      %p251 = scmp.eq.s32.totalorder %s45, 3
      %p252 = por %p250, %p251
      %p253 = scmp.ne.s32.totalorder %s242, %s243
      %p254 = scmp.eq.s32.totalorder %s45, 0
      %p255 = por %p253, %p254
      %p256 = scmp.ne.s32.totalorder %s242, %s243
      %p257 = scmp.eq.s32.totalorder %s46, 3
      %p258 = por %p256, %p257
      %p260 = scmp.ne.s32.totalorder %s243, %s259
      %p261 = scmp.eq.s32.totalorder %s46, 0
      %p262 = por %p260, %p261
      %s263 = ssub.s32 %s48, %s55
      %p264 = scmp.eq.s32.totalorder %s263, 0
      %s266 = sadd.s32 %s265, 1
      %s267 = scalar_select %p264, %s265, %s266
      %p270 = pneg %p264
      %p271 = scmp.eq.s32.totalorder %s40, 3
      %p272 = por %p270, %p271
      %p273 = scmp.ne.s32.totalorder %s265, %s268
      %p274 = scmp.eq.s32.totalorder %s40, 0
      %p275 = por %p273, %p274
      %p276 = scmp.ne.s32.totalorder %s265, %s268
      %p277 = scmp.eq.s32.totalorder %s45, 3
      %p278 = por %p276, %p277
      %p279 = scmp.ne.s32.totalorder %s268, %s269
      %p280 = scmp.eq.s32.totalorder %s45, 0
      %p281 = por %p279, %p280
      %p282 = scmp.ne.s32.totalorder %s268, %s269
      %p283 = scmp.eq.s32.totalorder %s46, 3
      %p284 = por %p282, %p283
      %p286 = scmp.ne.s32.totalorder %s269, %s285
      %p287 = scmp.eq.s32.totalorder %s46, 0
      %p288 = por %p286, %p287
      %s289 = ssub.s32 %s48, %s55
      %p290 = scmp.eq.s32.totalorder %s289, 0
      %s292 = sadd.s32 %s291, 1
      %s293 = scalar_select %p290, %s291, %s292
      %p296 = pneg %p290
      %p297 = scmp.eq.s32.totalorder %s40, 3
      %p298 = por %p296, %p297
      %p299 = scmp.ne.s32.totalorder %s291, %s294
      %p300 = scmp.eq.s32.totalorder %s40, 0
      %p301 = por %p299, %p300
      %p302 = scmp.ne.s32.totalorder %s291, %s294
      %p303 = scmp.eq.s32.totalorder %s45, 3
      %p304 = por %p302, %p303
      %p305 = scmp.ne.s32.totalorder %s294, %s295
      %p306 = scmp.eq.s32.totalorder %s45, 0
      %p307 = por %p305, %p306
      %p308 = scmp.ne.s32.totalorder %s294, %s295
      %p309 = scmp.eq.s32.totalorder %s46, 3
      %p310 = por %p308, %p309
      %p312 = scmp.ne.s32.totalorder %s295, %s311
      %p313 = scmp.eq.s32.totalorder %s46, 0
      %p314 = por %p312, %p313
      %s315 = ssub.s32 %s48, %s55
      %p316 = scmp.eq.s32.totalorder %s315, 0
      %s318 = sadd.s32 %s317, 1
      %s319 = scalar_select %p316, %s317, %s318
      %p322 = pneg %p316
      %p323 = scmp.eq.s32.totalorder %s40, 3
      %p324 = por %p322, %p323
      %p325 = scmp.ne.s32.totalorder %s317, %s320
      %p326 = scmp.eq.s32.totalorder %s40, 0
      %p327 = por %p325, %p326
      %p328 = scmp.ne.s32.totalorder %s317, %s320
      %p329 = scmp.eq.s32.totalorder %s45, 3
      %p330 = por %p328, %p329
      %p331 = scmp.ne.s32.totalorder %s320, %s321
      %p332 = scmp.eq.s32.totalorder %s45, 0
      %p333 = por %p331, %p332
      %p334 = scmp.ne.s32.totalorder %s320, %s321
      %p335 = scmp.eq.s32.totalorder %s46, 3
      %p336 = por %p334, %p335
      %p338 = scmp.ne.s32.totalorder %s321, %s337
      %p339 = scmp.eq.s32.totalorder %s46, 0
      %p340 = por %p338, %p339
      %s341 = ssub.s32 %s48, %s55
      %p342 = scmp.eq.s32.totalorder %s341, 0
      %s344 = sadd.s32 %s343, 1
      %s345 = scalar_select %p342, %s343, %s344
      %p348 = pneg %p342
      %p349 = scmp.eq.s32.totalorder %s40, 3
      %p350 = por %p348, %p349
      %p351 = scmp.ne.s32.totalorder %s343, %s346
      %p352 = scmp.eq.s32.totalorder %s40, 0
      %p353 = por %p351, %p352
      %p354 = scmp.ne.s32.totalorder %s343, %s346
      %p355 = scmp.eq.s32.totalorder %s45, 3
      %p356 = por %p354, %p355
      %p357 = scmp.ne.s32.totalorder %s346, %s347
      %p358 = scmp.eq.s32.totalorder %s45, 0
      %p359 = por %p357, %p358
      %p360 = scmp.ne.s32.totalorder %s346, %s347
      %p361 = scmp.eq.s32.totalorder %s46, 3
      %p362 = por %p360, %p361
      %p364 = scmp.ne.s32.totalorder %s347, %s363
      %p365 = scmp.eq.s32.totalorder %s46, 0
      %p366 = por %p364, %p365
      %s367 = ssub.s32 %s48, %s55
      %p368 = scmp.eq.s32.totalorder %s367, 0
      %s370 = sadd.s32 %s369, 1
      %s371 = scalar_select %p368, %s369, %s370
      %p374 = pneg %p368
      %p375 = scmp.eq.s32.totalorder %s40, 3
      %p376 = por %p374, %p375
      %p377 = scmp.ne.s32.totalorder %s369, %s372
      %p378 = scmp.eq.s32.totalorder %s40, 0
      %p379 = por %p377, %p378
      %p380 = scmp.ne.s32.totalorder %s369, %s372
      %p381 = scmp.eq.s32.totalorder %s45, 3
      %p382 = por %p380, %p381
      %p383 = scmp.ne.s32.totalorder %s372, %s373
      %p384 = scmp.eq.s32.totalorder %s45, 0
      %p385 = por %p383, %p384
      %p386 = scmp.ne.s32.totalorder %s372, %s373
      %p387 = scmp.eq.s32.totalorder %s46, 3
      %p388 = por %p386, %p387
      %p390 = scmp.ne.s32.totalorder %s373, %s389
      %p391 = scmp.eq.s32.totalorder %s46, 0
      %p392 = por %p390, %p391
      %s393 = ssub.s32 %s48, %s55
      %p394 = scmp.eq.s32.totalorder %s393, 0
      %s396 = sadd.s32 %s395, 1
      %s397 = scalar_select %p394, %s395, %s396
      %p400 = pneg %p394
      %p401 = scmp.eq.s32.totalorder %s40, 3
      %p402 = por %p400, %p401
      %p403 = scmp.ne.s32.totalorder %s395, %s398
      %p404 = scmp.eq.s32.totalorder %s40, 0
      %p405 = por %p403, %p404
      %p406 = scmp.ne.s32.totalorder %s395, %s398
      %p407 = scmp.eq.s32.totalorder %s45, 3
      %p408 = por %p406, %p407
      %p409 = scmp.ne.s32.totalorder %s398, %s399
      %p410 = scmp.eq.s32.totalorder %s45, 0
      %p411 = por %p409, %p410
      %p412 = scmp.ne.s32.totalorder %s398, %s399
      %p413 = scmp.eq.s32.totalorder %s46, 3
      %p414 = por %p412, %p413
      %p416 = scmp.ne.s32.totalorder %s399, %s415
      %p417 = scmp.eq.s32.totalorder %s46, 0
      %p418 = por %p416, %p417
      %s419 = ssub.s32 %s48, %s55
      %p420 = scmp.eq.s32.totalorder %s419, 0
      %s422 = sadd.s32 %s421, 1
      %s423 = scalar_select %p420, %s421, %s422
      %p426 = pneg %p420
      %p427 = scmp.eq.s32.totalorder %s40, 3
      %p428 = por %p426, %p427
      %p429 = scmp.ne.s32.totalorder %s421, %s424
      %p430 = scmp.eq.s32.totalorder %s40, 0
      %p431 = por %p429, %p430
      %p432 = scmp.ne.s32.totalorder %s421, %s424
      %p433 = scmp.eq.s32.totalorder %s45, 3
      %p434 = por %p432, %p433
      %p435 = scmp.ne.s32.totalorder %s424, %s425
      %p436 = scmp.eq.s32.totalorder %s45, 0
      %p437 = por %p435, %p436
      %p438 = scmp.ne.s32.totalorder %s424, %s425
      %p439 = scmp.eq.s32.totalorder %s46, 3
      %p440 = por %p438, %p439
      %p442 = scmp.ne.s32.totalorder %s425, %s441
      %p443 = scmp.eq.s32.totalorder %s46, 0
      %p444 = por %p442, %p443
      %s445 = ssub.s32 %s48, %s55
      %p446 = scmp.eq.s32.totalorder %s445, 0
      %s448 = sadd.s32 %s447, 1
      %s449 = scalar_select %p446, %s447, %s448
      %p452 = pneg %p446
      %p453 = scmp.eq.s32.totalorder %s40, 3
      %p454 = por %p452, %p453
      %p455 = scmp.ne.s32.totalorder %s447, %s450
      %p456 = scmp.eq.s32.totalorder %s40, 0
      %p457 = por %p455, %p456
      %p458 = scmp.ne.s32.totalorder %s447, %s450
      %p459 = scmp.eq.s32.totalorder %s45, 3
      %p460 = por %p458, %p459
      %p461 = scmp.ne.s32.totalorder %s450, %s451
      %p462 = scmp.eq.s32.totalorder %s45, 0
      %p463 = por %p461, %p462
      %p464 = scmp.ne.s32.totalorder %s450, %s451
      %p465 = scmp.eq.s32.totalorder %s46, 3
      %p466 = por %p464, %p465
      %p468 = scmp.ne.s32.totalorder %s451, %s467
      %p469 = scmp.eq.s32.totalorder %s46, 0
      %p470 = por %p468, %p469
      %s471 = ssub.s32 %s48, %s55
      %p472 = scmp.eq.s32.totalorder %s471, 0
      %s474 = sadd.s32 %s473, 1
      %s475 = scalar_select %p472, %s473, %s474
      %p478 = pneg %p472
      %p479 = scmp.eq.s32.totalorder %s40, 3
      %p480 = por %p478, %p479
      %p481 = scmp.ne.s32.totalorder %s473, %s476
      %p482 = scmp.eq.s32.totalorder %s40, 0
      %p483 = por %p481, %p482
      %p484 = scmp.ne.s32.totalorder %s473, %s476
      %p485 = scmp.eq.s32.totalorder %s45, 3
      %p486 = por %p484, %p485
      %p487 = scmp.ne.s32.totalorder %s476, %s477
      %p488 = scmp.eq.s32.totalorder %s45, 0
      %p489 = por %p487, %p488
      %p490 = scmp.ne.s32.totalorder %s476, %s477
      %p491 = scmp.eq.s32.totalorder %s46, 3
      %p492 = por %p490, %p491
      %p494 = scmp.ne.s32.totalorder %s477, %s493
      %p495 = scmp.eq.s32.totalorder %s46, 0
      %p496 = por %p494, %p495
      %s497 = ssub.s32 %s48, %s55
      %p498 = scmp.eq.s32.totalorder %s497, 0
      %s500 = sadd.s32 %s499, 1
      %s501 = scalar_select %p498, %s499, %s500
      %p504 = pneg %p498
      %p505 = scmp.eq.s32.totalorder %s40, 3
      %p506 = por %p504, %p505
      %p507 = scmp.ne.s32.totalorder %s499, %s502
      %p508 = scmp.eq.s32.totalorder %s40, 0
      %p509 = por %p507, %p508
      %p510 = scmp.ne.s32.totalorder %s499, %s502
      %p511 = scmp.eq.s32.totalorder %s45, 3
      %p512 = por %p510, %p511
      %p513 = scmp.ne.s32.totalorder %s502, %s503
      %p514 = scmp.eq.s32.totalorder %s45, 0
      %p515 = por %p513, %p514
      %p516 = scmp.ne.s32.totalorder %s502, %s503
      %p517 = scmp.eq.s32.totalorder %s46, 3
      %p518 = por %p516, %p517
      %p520 = scmp.ne.s32.totalorder %s503, %s519
      %p521 = scmp.eq.s32.totalorder %s46, 0
      %p522 = por %p520, %p521
      %s523 = ssub.s32 %s48, %s55
      %p524 = scmp.eq.s32.totalorder %s523, 0
      %s526 = sadd.s32 %s525, 1
      %s527 = scalar_select %p524, %s525, %s526
      %p530 = pneg %p524
      %p531 = scmp.eq.s32.totalorder %s40, 3
      %p532 = por %p530, %p531
      %p533 = scmp.ne.s32.totalorder %s525, %s528
      %p534 = scmp.eq.s32.totalorder %s40, 0
      %p535 = por %p533, %p534
      %p536 = scmp.ne.s32.totalorder %s525, %s528
      %p537 = scmp.eq.s32.totalorder %s45, 3
      %p538 = por %p536, %p537
      %p539 = scmp.ne.s32.totalorder %s528, %s529
      %p540 = scmp.eq.s32.totalorder %s45, 0
      %p541 = por %p539, %p540
      %p542 = scmp.ne.s32.totalorder %s528, %s529
      %p543 = scmp.eq.s32.totalorder %s46, 3
      %p544 = por %p542, %p543
      %p546 = scmp.ne.s32.totalorder %s529, %s545
      %p547 = scmp.eq.s32.totalorder %s46, 0
      %p548 = por %p546, %p547
      %s549 = ssub.s32 %s48, %s55
      %p550 = scmp.eq.s32.totalorder %s549, 0
      %s552 = sadd.s32 %s551, 1
      %s553 = scalar_select %p550, %s551, %s552
      %p556 = pneg %p550
      %p557 = scmp.eq.s32.totalorder %s40, 3
      %p558 = por %p556, %p557
      %p559 = scmp.ne.s32.totalorder %s551, %s554
      %p560 = scmp.eq.s32.totalorder %s40, 0
      %p561 = por %p559, %p560
      %p562 = scmp.ne.s32.totalorder %s551, %s554
      %p563 = scmp.eq.s32.totalorder %s45, 3
      %p564 = por %p562, %p563
      %p565 = scmp.ne.s32.totalorder %s554, %s555
      %p566 = scmp.eq.s32.totalorder %s45, 0
      %p567 = por %p565, %p566
      %p568 = scmp.ne.s32.totalorder %s554, %s555
      %p569 = scmp.eq.s32.totalorder %s46, 3
      %p570 = por %p568, %p569
      %p572 = scmp.ne.s32.totalorder %s555, %s571
      %p573 = scmp.eq.s32.totalorder %s46, 0
      %p574 = por %p572, %p573
      %s575 = ssub.s32 %s48, %s55
      %p576 = scmp.eq.s32.totalorder %s575, 0
      %s578 = sadd.s32 %s577, 1
      %s579 = scalar_select %p576, %s577, %s578
      %p582 = pneg %p576
      %p583 = scmp.eq.s32.totalorder %s40, 3
      %p584 = por %p582, %p583
      %p585 = scmp.ne.s32.totalorder %s577, %s580
      %p586 = scmp.eq.s32.totalorder %s40, 0
      %p587 = por %p585, %p586
      %p588 = scmp.ne.s32.totalorder %s577, %s580
      %p589 = scmp.eq.s32.totalorder %s45, 3
      %p590 = por %p588, %p589
      %p591 = scmp.ne.s32.totalorder %s580, %s581
      %p592 = scmp.eq.s32.totalorder %s45, 0
      %p593 = por %p591, %p592
      %p594 = scmp.ne.s32.totalorder %s580, %s581
      %p595 = scmp.eq.s32.totalorder %s46, 3
      %p596 = por %p594, %p595
      %p598 = scmp.ne.s32.totalorder %s581, %s597
      %p599 = scmp.eq.s32.totalorder %s46, 0
      %p600 = por %p598, %p599
      %s601 = ssub.s32 %s48, %s55
      %p602 = scmp.eq.s32.totalorder %s601, 0
      %s604 = sadd.s32 %s603, 1
      %s605 = scalar_select %p602, %s603, %s604
      %p608 = pneg %p602
      %p609 = scmp.eq.s32.totalorder %s40, 3
      %p610 = por %p608, %p609
      %p611 = scmp.ne.s32.totalorder %s603, %s606
      %p612 = scmp.eq.s32.totalorder %s40, 0
      %p613 = por %p611, %p612
      %p614 = scmp.ne.s32.totalorder %s603, %s606
      %p615 = scmp.eq.s32.totalorder %s45, 3
      %p616 = por %p614, %p615
      %p617 = scmp.ne.s32.totalorder %s606, %s607
      %p618 = scmp.eq.s32.totalorder %s45, 0
      %p619 = por %p617, %p618
      %p620 = scmp.ne.s32.totalorder %s606, %s607
      %p621 = scmp.eq.s32.totalorder %s46, 3
      %p622 = por %p620, %p621
      %p624 = scmp.ne.s32.totalorder %s607, %s623
      %p625 = scmp.eq.s32.totalorder %s46, 0
      %p626 = por %p624, %p625
      %s627 = ssub.s32 %s48, %s55
      %p628 = scmp.eq.s32.totalorder %s627, 0
      %s630 = sadd.s32 %s629, 1
      %s631 = scalar_select %p628, %s629, %s630
      %p634 = pneg %p628
      %p635 = scmp.eq.s32.totalorder %s40, 3
      %p636 = por %p634, %p635
      %p637 = scmp.ne.s32.totalorder %s629, %s632
      %p638 = scmp.eq.s32.totalorder %s40, 0
      %p639 = por %p637, %p638
      %p640 = scmp.ne.s32.totalorder %s629, %s632
      %p641 = scmp.eq.s32.totalorder %s45, 3
      %p642 = por %p640, %p641
      %p643 = scmp.ne.s32.totalorder %s632, %s633
      %p644 = scmp.eq.s32.totalorder %s45, 0
      %p645 = por %p643, %p644
      %p646 = scmp.ne.s32.totalorder %s632, %s633
      %p647 = scmp.eq.s32.totalorder %s46, 3
      %p648 = por %p646, %p647
      %p650 = scmp.ne.s32.totalorder %s633, %s649
      %p651 = scmp.eq.s32.totalorder %s46, 0
      %p652 = por %p650, %p651
      %s653 = ssub.s32 %s48, %s55
      %p654 = scmp.eq.s32.totalorder %s653, 0
      %s656 = sadd.s32 %s655, 1
      %s657 = scalar_select %p654, %s655, %s656
      %p660 = pneg %p654
      %p661 = scmp.eq.s32.totalorder %s40, 3
      %p662 = por %p660, %p661
      %p663 = scmp.ne.s32.totalorder %s655, %s658
      %p664 = scmp.eq.s32.totalorder %s40, 0
      %p665 = por %p663, %p664
      %p666 = scmp.ne.s32.totalorder %s655, %s658
      %p667 = scmp.eq.s32.totalorder %s45, 3
      %p668 = por %p666, %p667
      %p669 = scmp.ne.s32.totalorder %s658, %s659
      %p670 = scmp.eq.s32.totalorder %s45, 0
      %p671 = por %p669, %p670
      %p672 = scmp.ne.s32.totalorder %s658, %s659
      %p673 = scmp.eq.s32.totalorder %s46, 3
      %p674 = por %p672, %p673
      %p676 = scmp.ne.s32.totalorder %s659, %s675
      %p677 = scmp.eq.s32.totalorder %s46, 0
      %p678 = por %p676, %p677
      %s679 = ssub.s32 %s47, %s59
      %p680 = scmp.eq.s32.totalorder %s679, 0
      %s682 = sadd.s32 %s681, 1
      %s683 = scalar_select %p680, %s681, %s682
      %p686 = pneg %p680
      %p687 = scmp.eq.s32.totalorder %s40, 3
      %p688 = por %p686, %p687
      %p689 = scmp.ne.s32.totalorder %s681, %s684
      %p690 = scmp.eq.s32.totalorder %s40, 0
      %p691 = por %p689, %p690
      %p692 = scmp.ne.s32.totalorder %s681, %s684
      %p693 = scmp.eq.s32.totalorder %s45, 3
      %p694 = por %p692, %p693
      %p695 = scmp.ne.s32.totalorder %s684, %s685
      %p696 = scmp.eq.s32.totalorder %s45, 0
      %p697 = por %p695, %p696
      %p698 = scmp.ne.s32.totalorder %s684, %s685
      %p699 = scmp.eq.s32.totalorder %s46, 3
      %p700 = por %p698, %p699
      %p702 = scmp.ne.s32.totalorder %s685, %s701
      %p703 = scmp.eq.s32.totalorder %s46, 0
      %p704 = por %p702, %p703
      %p705 = scmp.le.s32.totalorder 1, %s40
      %p706 = scmp.lt.s32.totalorder %s40, 5
      %p707 = pnand %p705, %p706
      %p708 = pneg %p707
      // Predicated region
      $region9: #{tpu_custom_call.1} parent=5 // pred_check
        _
      $region10: #{tpu_custom_call.1} parent=5 // pred_check_branch
        %710 = sbr.rel (%p707) target = $region12
      $region11: #{tpu_custom_call.1} parent=5 // pred_region
        %s711 = ssub.s32 %s40, 1
        // Predicated region
        $region13: #{tpu_custom_call.1} parent=11 // pred_check
          %p712 = pneg %p151
        $region14: #{tpu_custom_call.1} parent=11 // pred_check_branch
          %714 = sbr.rel (%p712) target = $region16
        $region15: #{tpu_custom_call.1} parent=11 // pred_region
          %s716 = ssub.s32 256, 256
          %717 = vsyncadd [#allocation9], %s716
          %s718 = sshll.u32 [#allocation8], 4
          %s719 = int_to_ptr.vmem [resolvable:$true] %s718
          %724 = dma.hbm_to_vmem [thread:$0]  %s3, 256, %s719, [#allocation9], 128, 128, 8
        $region16: #{tpu_custom_call.1} parent=11 // pred_fallthru
          _
      $region12: #{tpu_custom_call.1} parent=5 // pred_fallthru
        _
      %p725 = scmp.lt.s32.totalorder %s40, 4
      // Predicated region
      $region17: #{tpu_custom_call.1} parent=5 // pred_check
        %p726 = pneg %p725
      $region18: #{tpu_custom_call.1} parent=5 // pred_check_branch
        %728 = sbr.rel (%p726) target = $region20
      $region19: #{tpu_custom_call.1} parent=5 // pred_region
        // Predicated region
        $region21: #{tpu_custom_call.1} parent=19 // pred_check
          %p729 = pneg %p72
        $region22: #{tpu_custom_call.1} parent=19 // pred_check_branch
          %731 = sbr.rel (%p729) target = $region24
        $region23: #{tpu_custom_call.1} parent=19 // pred_region
          %s732 = sand.u32 %s40, 1
          %s733 = scalar_lea.sflag [#allocation3], %s732
          %s734 = sand.u32 %s62, 1
          %s735 = smul.addr %s734, 16
          %s736 = scalar_lea.vmem [#allocation2], %s735
          %s737 = smul.u32 2, %s47
          %s739 = ssub.s32 256, 256
          %740 = vsyncadd %s733, %s739
          %s741 = smul.addr %s737, 128
          %s742 = scalar_lea.hbm %s0, %s741
          %s743 = sshll.u32 %s736, 4
          %s744 = int_to_ptr.vmem [resolvable:$true] %s743
          %749 = dma.hbm_to_vmem [thread:$0]  %s742, 256, %s744, %s733, 128, 128, 8
        $region24: #{tpu_custom_call.1} parent=19 // pred_fallthru
          _
        // Predicated region
        $region25: #{tpu_custom_call.1} parent=19 // pred_check
          %p750 = pneg %p98
        $region26: #{tpu_custom_call.1} parent=19 // pred_check_branch
          %752 = sbr.rel (%p750) target = $region28
        $region27: #{tpu_custom_call.1} parent=19 // pred_region
          %s753 = sand.u32 %s40, 1
          %s754 = scalar_lea.sflag [#allocation6], %s753
          %s755 = sand.u32 %s88, 1
          %s756 = smul.addr %s755, 8
          %s757 = scalar_lea.vmem [#allocation5], %s756
          %s758 = smul.u32 2, %s47
          %s760 = ssub.s32 128, 128
          %761 = vsyncadd %s754, %s760
          %s762 = smul.addr %s758, 64
          %s763 = scalar_lea.hbm %s1, %s762
          %s764 = sshll.u32 %s757, 4
          %s765 = int_to_ptr.vmem [resolvable:$true] %s764
          %770 = dma.hbm_to_vmem [thread:$0]  %s763, 128, %s765, %s754, 64, 64, 4
        $region28: #{tpu_custom_call.1} parent=19 // pred_fallthru
          _
        // Predicated region
        $region29: #{tpu_custom_call.1} parent=19 // pred_check
          %p771 = pneg %p124
        $region30: #{tpu_custom_call.1} parent=19 // pred_check_branch
          %773 = sbr.rel (%p771) target = $region32
        $region31: #{tpu_custom_call.1} parent=19 // pred_region
          %s774 = sand.u32 %s40, 1
          %s775 = scalar_lea.sflag [#allocation6], %s774
          %s776 = sand.u32 %s114, 1
          %s777 = scalar_lea.vmem [#allocation7], %s776
          %s779 = ssub.s32 16, 16
          %780 = vsyncadd %s775, %s779
          %s781 = smul.addr %s47, 16
          %s782 = scalar_lea.hbm %s2, %s781
          %s784 = sshll.u32 %s777, 4
          %s785 = int_to_ptr.vmem [resolvable:$true] %s784
          %787 = dma.hbm_to_vmem [thread:$0]  %s782, 16, %s785, %s775
        $region32: #{tpu_custom_call.1} parent=19 // pred_fallthru
          _
        // Predicated region
        $region33: #{tpu_custom_call.1} parent=19 // pred_check
          %p788 = pneg %p171
        $region34: #{tpu_custom_call.1} parent=19 // pred_check_branch
          %790 = sbr.rel (%p788) target = $region36
        $region35: #{tpu_custom_call.1} parent=19 // pred_region
          %s791 = sand.u32 %s40, 1
          %s792 = scalar_lea.sflag [#allocation3], %s791
          %s793 = sand.u32 %s161, 1
          %s794 = smul.addr %s793, 192
          %s795 = scalar_lea.vmem [#allocation10], %s794
          %s797 = ssub.s32 3072, 3072
          %798 = vsyncadd %s792, %s797
          %s799 = smul.addr %s48, 48
          %s800 = smul.addr %s799, 64
          %s801 = scalar_lea.hbm %s4, %s800
          %s802 = sshll.u32 %s795, 4
          %s803 = int_to_ptr.vmem [resolvable:$true] %s802
          %808 = dma.hbm_to_vmem [thread:$0]  %s801, 3072, %s803, %s792, 192, 192, 12
        $region36: #{tpu_custom_call.1} parent=19 // pred_fallthru
          _
        // Predicated region
        $region37: #{tpu_custom_call.1} parent=19 // pred_check
          %p809 = pneg %p197
        $region38: #{tpu_custom_call.1} parent=19 // pred_check_branch
          %811 = sbr.rel (%p809) target = $region40
        $region39: #{tpu_custom_call.1} parent=19 // pred_region
          %p812 = scmp.lt.s32.totalorder %s48, 1
          %s813 = scalar_select %p812, %s48, 1
          %s814 = smul.addr %s813, 3
          %s815 = scalar_lea.vmem %s5, %s814
        $region40: #{tpu_custom_call.1} parent=19 // pred_fallthru
          _
        // Predicated region
        $region41: #{tpu_custom_call.1} parent=19 // pred_check
          %p816 = pneg %p223
        $region42: #{tpu_custom_call.1} parent=19 // pred_check_branch
          %818 = sbr.rel (%p816) target = $region44
        $region43: #{tpu_custom_call.1} parent=19 // pred_region
          %s819 = sand.u32 %s40, 1
          %s820 = scalar_lea.sflag [#allocation6], %s819
          %s821 = sand.u32 %s213, 1
          %s822 = smul.addr %s821, 64
          %s823 = scalar_lea.vmem [#allocation11], %s822
          %s825 = ssub.s32 1024, 1024
          %826 = vsyncadd %s820, %s825
          %s827 = smul.addr %s48, 16
          %s828 = smul.addr %s827, 64
          %s829 = scalar_lea.hbm %s6, %s828
          %s830 = sshll.u32 %s823, 4
          %s831 = int_to_ptr.vmem [resolvable:$true] %s830
          %836 = dma.hbm_to_vmem [thread:$0]  %s829, 1024, %s831, %s820, 64, 64, 4
        $region44: #{tpu_custom_call.1} parent=19 // pred_fallthru
          _
        // Predicated region
        $region45: #{tpu_custom_call.1} parent=19 // pred_check
          %p837 = pneg %p249
        $region46: #{tpu_custom_call.1} parent=19 // pred_check_branch
          %839 = sbr.rel (%p837) target = $region48
        $region47: #{tpu_custom_call.1} parent=19 // pred_region
          %p840 = scmp.lt.s32.totalorder %s48, 1
          %s841 = scalar_select %p840, %s48, 1
          %s842 = scalar_lea.vmem %s7, %s841
        $region48: #{tpu_custom_call.1} parent=19 // pred_fallthru
          _
        // Predicated region
        $region49: #{tpu_custom_call.1} parent=19 // pred_check
          %p843 = pneg %p275
        $region50: #{tpu_custom_call.1} parent=19 // pred_check_branch
          %845 = sbr.rel (%p843) target = $region52
        $region51: #{tpu_custom_call.1} parent=19 // pred_region
          %p846 = scmp.lt.s32.totalorder %s48, 1
          %s847 = scalar_select %p846, %s48, 1
          %s848 = scalar_lea.vmem %s8, %s847
        $region52: #{tpu_custom_call.1} parent=19 // pred_fallthru
          _
        // Predicated region
        $region53: #{tpu_custom_call.1} parent=19 // pred_check
          %p849 = pneg %p301
        $region54: #{tpu_custom_call.1} parent=19 // pred_check_branch
          %851 = sbr.rel (%p849) target = $region56
        $region55: #{tpu_custom_call.1} parent=19 // pred_region
          %p852 = scmp.lt.s32.totalorder %s48, 1
          %s853 = scalar_select %p852, %s48, 1
          %s854 = scalar_lea.vmem %s9, %s853
        $region56: #{tpu_custom_call.1} parent=19 // pred_fallthru
          _
        // Predicated region
        $region57: #{tpu_custom_call.1} parent=19 // pred_check
          %p855 = pneg %p327
        $region58: #{tpu_custom_call.1} parent=19 // pred_check_branch
          %857 = sbr.rel (%p855) target = $region60
        $region59: #{tpu_custom_call.1} parent=19 // pred_region
          %s858 = sand.u32 %s40, 1
          %s859 = scalar_lea.sflag [#allocation3], %s858
          %s860 = sand.u32 %s317, 1
          %s861 = smul.addr %s860, 64
          %s862 = scalar_lea.vmem [#allocation12], %s861
          %s864 = ssub.s32 1024, 1024
          %865 = vsyncadd %s859, %s864
          %s866 = smul.addr %s48, 16
          %s867 = smul.addr %s866, 64
          %s868 = scalar_lea.hbm %s10, %s867
          %s869 = sshll.u32 %s862, 4
          %s870 = int_to_ptr.vmem [resolvable:$true] %s869
          %875 = dma.hbm_to_vmem [thread:$0]  %s868, 1024, %s870, %s859, 64, 64, 4
        $region60: #{tpu_custom_call.1} parent=19 // pred_fallthru
          _
        // Predicated region
        $region61: #{tpu_custom_call.1} parent=19 // pred_check
          %p876 = pneg %p353
        $region62: #{tpu_custom_call.1} parent=19 // pred_check_branch
          %878 = sbr.rel (%p876) target = $region64
        $region63: #{tpu_custom_call.1} parent=19 // pred_region
          %p879 = scmp.lt.s32.totalorder %s48, 1
          %s880 = scalar_select %p879, %s48, 1
          %s881 = scalar_lea.vmem %s11, %s880
        $region64: #{tpu_custom_call.1} parent=19 // pred_fallthru
          _
        // Predicated region
        $region65: #{tpu_custom_call.1} parent=19 // pred_check
          %p882 = pneg %p379
        $region66: #{tpu_custom_call.1} parent=19 // pred_check_branch
          %884 = sbr.rel (%p882) target = $region68
        $region67: #{tpu_custom_call.1} parent=19 // pred_region
          %s885 = sand.u32 %s40, 1
          %s886 = scalar_lea.sflag [#allocation6], %s885
          %s887 = sand.u32 %s369, 1
          %s888 = smul.addr %s887, 128
          %s889 = scalar_lea.vmem [#allocation13], %s888
          %s891 = ssub.s32 2048, 2048
          %892 = vsyncadd %s886, %s891
          %s893 = smul.addr %s48, 32
          %s894 = smul.addr %s893, 64
          %s895 = scalar_lea.hbm %s12, %s894
          %s896 = sshll.u32 %s889, 4
          %s897 = int_to_ptr.vmem [resolvable:$true] %s896
          %902 = dma.hbm_to_vmem [thread:$0]  %s895, 2048, %s897, %s886, 128, 128, 8
        $region68: #{tpu_custom_call.1} parent=19 // pred_fallthru
          _
        // Predicated region
        $region69: #{tpu_custom_call.1} parent=19 // pred_check
          %p903 = pneg %p405
        $region70: #{tpu_custom_call.1} parent=19 // pred_check_branch
          %905 = sbr.rel (%p903) target = $region72
        $region71: #{tpu_custom_call.1} parent=19 // pred_region
          %p906 = scmp.lt.s32.totalorder %s48, 1
          %s907 = scalar_select %p906, %s48, 1
          %s908 = smul.addr %s907, 2
          %s909 = scalar_lea.vmem %s13, %s908
        $region72: #{tpu_custom_call.1} parent=19 // pred_fallthru
          _
        // Predicated region
        $region73: #{tpu_custom_call.1} parent=19 // pred_check
          %p910 = pneg %p431
        $region74: #{tpu_custom_call.1} parent=19 // pred_check_branch
          %912 = sbr.rel (%p910) target = $region76
        $region75: #{tpu_custom_call.1} parent=19 // pred_region
          %s913 = sand.u32 %s40, 1
          %s914 = scalar_lea.sflag [#allocation3], %s913
          %s915 = sand.u32 %s421, 1
          %s916 = smul.addr %s915, 64
          %s917 = scalar_lea.vmem [#allocation14], %s916
          %s919 = ssub.s32 1024, 1024
          %920 = vsyncadd %s914, %s919
          %s921 = smul.addr %s48, 16
          %s922 = smul.addr %s921, 64
          %s923 = scalar_lea.hbm %s14, %s922
          %s924 = sshll.u32 %s917, 4
          %s925 = int_to_ptr.vmem [resolvable:$true] %s924
          %930 = dma.hbm_to_vmem [thread:$0]  %s923, 1024, %s925, %s914, 64, 64, 4
        $region76: #{tpu_custom_call.1} parent=19 // pred_fallthru
          _
        // Predicated region
        $region77: #{tpu_custom_call.1} parent=19 // pred_check
          %p931 = pneg %p457
        $region78: #{tpu_custom_call.1} parent=19 // pred_check_branch
          %933 = sbr.rel (%p931) target = $region80
        $region79: #{tpu_custom_call.1} parent=19 // pred_region
          %p934 = scmp.lt.s32.totalorder %s48, 1
          %s935 = scalar_select %p934, %s48, 1
          %s936 = scalar_lea.vmem %s15, %s935
        $region80: #{tpu_custom_call.1} parent=19 // pred_fallthru
          _
        // Predicated region
        $region81: #{tpu_custom_call.1} parent=19 // pred_check
          %p937 = pneg %p483
        $region82: #{tpu_custom_call.1} parent=19 // pred_check_branch
          %939 = sbr.rel (%p937) target = $region84
        $region83: #{tpu_custom_call.1} parent=19 // pred_region
          %p940 = scmp.lt.s32.totalorder %s48, 1
          %s941 = scalar_select %p940, %s48, 1
          %s942 = scalar_lea.vmem %s16, %s941
        $region84: #{tpu_custom_call.1} parent=19 // pred_fallthru
          _
        // Predicated region
        $region85: #{tpu_custom_call.1} parent=19 // pred_check
          %p943 = pneg %p509
        $region86: #{tpu_custom_call.1} parent=19 // pred_check_branch
          %945 = sbr.rel (%p943) target = $region88
        $region87: #{tpu_custom_call.1} parent=19 // pred_region
          %p946 = scmp.lt.s32.totalorder %s48, 1
          %s947 = scalar_select %p946, %s48, 1
          %s948 = scalar_lea.vmem %s17, %s947
        $region88: #{tpu_custom_call.1} parent=19 // pred_fallthru
          _
        // Predicated region
        $region89: #{tpu_custom_call.1} parent=19 // pred_check
          %p949 = pneg %p535
        $region90: #{tpu_custom_call.1} parent=19 // pred_check_branch
          %951 = sbr.rel (%p949) target = $region92
        $region91: #{tpu_custom_call.1} parent=19 // pred_region
          %s952 = sand.u32 %s40, 1
          %s953 = scalar_lea.sflag [#allocation6], %s952
          %s954 = sand.u32 %s525, 1
          %s955 = smul.addr %s954, 128
          %s956 = scalar_lea.vmem [#allocation15], %s955
          %s958 = ssub.s32 2048, 2048
          %959 = vsyncadd %s953, %s958
          %s960 = smul.addr %s48, 32
          %s961 = smul.addr %s960, 64
          %s962 = scalar_lea.hbm %s18, %s961
          %s963 = sshll.u32 %s956, 4
          %s964 = int_to_ptr.vmem [resolvable:$true] %s963
          %969 = dma.hbm_to_vmem [thread:$0]  %s962, 2048, %s964, %s953, 128, 128, 8
        $region92: #{tpu_custom_call.1} parent=19 // pred_fallthru
          _
        // Predicated region
        $region93: #{tpu_custom_call.1} parent=19 // pred_check
          %p970 = pneg %p561
        $region94: #{tpu_custom_call.1} parent=19 // pred_check_branch
          %972 = sbr.rel (%p970) target = $region96
        $region95: #{tpu_custom_call.1} parent=19 // pred_region
          %p973 = scmp.lt.s32.totalorder %s48, 1
          %s974 = scalar_select %p973, %s48, 1
          %s975 = smul.addr %s974, 2
          %s976 = scalar_lea.vmem %s19, %s975
        $region96: #{tpu_custom_call.1} parent=19 // pred_fallthru
          _
        // Predicated region
        $region97: #{tpu_custom_call.1} parent=19 // pred_check
          %p977 = pneg %p587
        $region98: #{tpu_custom_call.1} parent=19 // pred_check_branch
          %979 = sbr.rel (%p977) target = $region100
        $region99: #{tpu_custom_call.1} parent=19 // pred_region
          %s980 = sand.u32 %s40, 1
          %s981 = scalar_lea.sflag [#allocation3], %s980
          %s982 = sand.u32 %s577, 1
          %s983 = smul.addr %s982, 128
          %s984 = scalar_lea.vmem [#allocation16], %s983
          %s986 = ssub.s32 2048, 2048
          %987 = vsyncadd %s981, %s986
          %s988 = smul.addr %s48, 32
          %s989 = smul.addr %s988, 64
          %s990 = scalar_lea.hbm %s20, %s989
          %s991 = sshll.u32 %s984, 4
          %s992 = int_to_ptr.vmem [resolvable:$true] %s991
          %997 = dma.hbm_to_vmem [thread:$0]  %s990, 2048, %s992, %s981, 64, 64, 4
        $region100: #{tpu_custom_call.1} parent=19 // pred_fallthru
          _
        // Predicated region
        $region101: #{tpu_custom_call.1} parent=19 // pred_check
          %p998 = pneg %p613
        $region102: #{tpu_custom_call.1} parent=19 // pred_check_branch
          %1000 = sbr.rel (%p998) target = $region104
        $region103: #{tpu_custom_call.1} parent=19 // pred_region
          %p1001 = scmp.lt.s32.totalorder %s48, 1
          %s1002 = scalar_select %p1001, %s48, 1
          %s1003 = scalar_lea.vmem %s21, %s1002
        $region104: #{tpu_custom_call.1} parent=19 // pred_fallthru
          _
        // Predicated region
        $region105: #{tpu_custom_call.1} parent=19 // pred_check
          %p1004 = pneg %p639
        $region106: #{tpu_custom_call.1} parent=19 // pred_check_branch
          %1006 = sbr.rel (%p1004) target = $region108
        $region107: #{tpu_custom_call.1} parent=19 // pred_region
          %p1007 = scmp.lt.s32.totalorder %s48, 1
          %s1008 = scalar_select %p1007, %s48, 1
          %s1009 = scalar_lea.vmem %s22, %s1008
        $region108: #{tpu_custom_call.1} parent=19 // pred_fallthru
          _
        // Predicated region
        $region109: #{tpu_custom_call.1} parent=19 // pred_check
          %p1010 = pneg %p665
        $region110: #{tpu_custom_call.1} parent=19 // pred_check_branch
          %1012 = sbr.rel (%p1010) target = $region112
        $region111: #{tpu_custom_call.1} parent=19 // pred_region
          %p1013 = scmp.lt.s32.totalorder %s48, 1
          %s1014 = scalar_select %p1013, %s48, 1
          %s1015 = scalar_lea.vmem %s23, %s1014
        $region112: #{tpu_custom_call.1} parent=19 // pred_fallthru
          _
      $region20: #{tpu_custom_call.1} parent=5 // pred_fallthru
        _
      %p1016 = scmp.le.s32.totalorder 1, %s40
      %p1017 = scmp.lt.s32.totalorder %s40, 5
      %p1018 = pnand %p1016, %p1017
      %p1019 = pneg %p1018
      // Predicated region
      $region113: #{tpu_custom_call.1} parent=5 // pred_check
        _
      $region114: #{tpu_custom_call.1} parent=5 // pred_check_branch
        %1021 = sbr.rel (%p1018) target = $region116
      $region115: #{tpu_custom_call.1} parent=5 // pred_region
        %s1022 = ssub.s32 %s40, 1
        %s1023 = sand.u32 %s45, 1
        %s1024 = scalar_lea.sflag [#allocation3], %s1023
        %s1025 = sand.u32 %s65, 1
        %s1026 = smul.addr %s1025, 16
        %s1027 = scalar_lea.vmem [#allocation2], %s1026
        // Predicated region
        $region117: #{tpu_custom_call.1} parent=115 // pred_check
          %p1028 = pneg %p78
        $region118: #{tpu_custom_call.1} parent=115 // pred_check_branch
          %1030 = sbr.rel (%p1028) target = $region120
        $region119: #{tpu_custom_call.1} parent=115 // pred_region
          %1031 = dma.done %s1024, 256
        $region120: #{tpu_custom_call.1} parent=115 // pred_fallthru
          _
        %s1032 = sand.u32 %s45, 1
        %s1033 = scalar_lea.sflag [#allocation6], %s1032
        %s1034 = sand.u32 %s91, 1
        %s1035 = smul.addr %s1034, 8
        %s1036 = scalar_lea.vmem [#allocation5], %s1035
        // Predicated region
        $region121: #{tpu_custom_call.1} parent=115 // pred_check
          %p1037 = pneg %p104
        $region122: #{tpu_custom_call.1} parent=115 // pred_check_branch
          %1039 = sbr.rel (%p1037) target = $region124
        $region123: #{tpu_custom_call.1} parent=115 // pred_region
          %1040 = dma.done %s1033, 128
        $region124: #{tpu_custom_call.1} parent=115 // pred_fallthru
          _
        %s1041 = sand.u32 %s45, 1
        %s1042 = scalar_lea.sflag [#allocation6], %s1041
        %s1043 = sand.u32 %s117, 1
        %s1044 = scalar_lea.vmem [#allocation7], %s1043
        // Predicated region
        $region125: #{tpu_custom_call.1} parent=115 // pred_check
          %p1045 = pneg %p130
        $region126: #{tpu_custom_call.1} parent=115 // pred_check_branch
          %1047 = sbr.rel (%p1045) target = $region128
        $region127: #{tpu_custom_call.1} parent=115 // pred_region
          %1048 = dma.done %s1042, 16
        $region128: #{tpu_custom_call.1} parent=115 // pred_fallthru
          _
        // Predicated region
        $region129: #{tpu_custom_call.1} parent=115 // pred_check
          %p1049 = pneg %p151
        $region130: #{tpu_custom_call.1} parent=115 // pred_check_branch
          %1051 = sbr.rel (%p1049) target = $region132
        $region131: #{tpu_custom_call.1} parent=115 // pred_region
          %1052 = dma.done [#allocation9], 256
        $region132: #{tpu_custom_call.1} parent=115 // pred_fallthru
          _
        %s1053 = sand.u32 %s45, 1
        %s1054 = scalar_lea.sflag [#allocation3], %s1053
        %s1055 = sand.u32 %s164, 1
        %s1056 = smul.addr %s1055, 192
        %s1057 = scalar_lea.vmem [#allocation10], %s1056
        // Predicated region
        $region133: #{tpu_custom_call.1} parent=115 // pred_check
          %p1058 = pneg %p177
        $region134: #{tpu_custom_call.1} parent=115 // pred_check_branch
          %1060 = sbr.rel (%p1058) target = $region136
        $region135: #{tpu_custom_call.1} parent=115 // pred_region
          %1061 = dma.done %s1054, 3072
        $region136: #{tpu_custom_call.1} parent=115 // pred_fallthru
          _
        %s1062 = sand.u32 %s45, 1
        %s1063 = scalar_lea.sflag [#allocation6], %s1062
        %s1064 = sand.u32 %s216, 1
        %s1065 = smul.addr %s1064, 64
        %s1066 = scalar_lea.vmem [#allocation11], %s1065
        // Predicated region
        $region137: #{tpu_custom_call.1} parent=115 // pred_check
          %p1067 = pneg %p229
        $region138: #{tpu_custom_call.1} parent=115 // pred_check_branch
          %1069 = sbr.rel (%p1067) target = $region140
        $region139: #{tpu_custom_call.1} parent=115 // pred_region
          %1070 = dma.done %s1063, 1024
        $region140: #{tpu_custom_call.1} parent=115 // pred_fallthru
          _
        %s1071 = sand.u32 %s45, 1
        %s1072 = scalar_lea.sflag [#allocation3], %s1071
        %s1073 = sand.u32 %s320, 1
        %s1074 = smul.addr %s1073, 64
        %s1075 = scalar_lea.vmem [#allocation12], %s1074
        // Predicated region
        $region141: #{tpu_custom_call.1} parent=115 // pred_check
          %p1076 = pneg %p333
        $region142: #{tpu_custom_call.1} parent=115 // pred_check_branch
          %1078 = sbr.rel (%p1076) target = $region144
        $region143: #{tpu_custom_call.1} parent=115 // pred_region
          %1079 = dma.done %s1072, 1024
        $region144: #{tpu_custom_call.1} parent=115 // pred_fallthru
          _
        %s1080 = sand.u32 %s45, 1
        %s1081 = scalar_lea.sflag [#allocation6], %s1080
        %s1082 = sand.u32 %s372, 1
        %s1083 = smul.addr %s1082, 128
        %s1084 = scalar_lea.vmem [#allocation13], %s1083
        // Predicated region
        $region145: #{tpu_custom_call.1} parent=115 // pred_check
          %p1085 = pneg %p385
        $region146: #{tpu_custom_call.1} parent=115 // pred_check_branch
          %1087 = sbr.rel (%p1085) target = $region148
        $region147: #{tpu_custom_call.1} parent=115 // pred_region
          %1088 = dma.done %s1081, 2048
        $region148: #{tpu_custom_call.1} parent=115 // pred_fallthru
          _
        %s1089 = sand.u32 %s45, 1
        %s1090 = scalar_lea.sflag [#allocation3], %s1089
        %s1091 = sand.u32 %s424, 1
        %s1092 = smul.addr %s1091, 64
        %s1093 = scalar_lea.vmem [#allocation14], %s1092
        // Predicated region
        $region149: #{tpu_custom_call.1} parent=115 // pred_check
          %p1094 = pneg %p437
        $region150: #{tpu_custom_call.1} parent=115 // pred_check_branch
          %1096 = sbr.rel (%p1094) target = $region152
        $region151: #{tpu_custom_call.1} parent=115 // pred_region
          %1097 = dma.done %s1090, 1024
        $region152: #{tpu_custom_call.1} parent=115 // pred_fallthru
          _
        %s1098 = sand.u32 %s45, 1
        %s1099 = scalar_lea.sflag [#allocation6], %s1098
        %s1100 = sand.u32 %s528, 1
        %s1101 = smul.addr %s1100, 128
        %s1102 = scalar_lea.vmem [#allocation15], %s1101
        // Predicated region
        $region153: #{tpu_custom_call.1} parent=115 // pred_check
          %p1103 = pneg %p541
        $region154: #{tpu_custom_call.1} parent=115 // pred_check_branch
          %1105 = sbr.rel (%p1103) target = $region156
        $region155: #{tpu_custom_call.1} parent=115 // pred_region
          %1106 = dma.done %s1099, 2048
        $region156: #{tpu_custom_call.1} parent=115 // pred_fallthru
          _
        %s1107 = sand.u32 %s45, 1
        %s1108 = scalar_lea.sflag [#allocation3], %s1107
        %s1109 = sand.u32 %s580, 1
        %s1110 = smul.addr %s1109, 128
        %s1111 = scalar_lea.vmem [#allocation16], %s1110
        // Predicated region
        $region157: #{tpu_custom_call.1} parent=115 // pred_check
          %p1112 = pneg %p593
        $region158: #{tpu_custom_call.1} parent=115 // pred_check_branch
          %1114 = sbr.rel (%p1112) target = $region160
        $region159: #{tpu_custom_call.1} parent=115 // pred_region
          %1115 = dma.done %s1108, 2048
        $region160: #{tpu_custom_call.1} parent=115 // pred_fallthru
          _
        %s1116 = sand.u32 %s45, 1
        %s1117 = scalar_lea.sflag [#allocation3], %s1116
        %s1118 = sand.u32 %s65, 1
        %s1119 = smul.addr %s1118, 16
        %s1120 = scalar_lea.vmem [#allocation2], %s1119
        %p1121 = pneg %p78
        %p1122 = pneg %p75
        %s1123 = sand.u32 %s45, 1
        %s1124 = scalar_lea.sflag [#allocation6], %s1123
        %s1125 = sand.u32 %s91, 1
        %s1126 = smul.addr %s1125, 8
        %s1127 = scalar_lea.vmem [#allocation5], %s1126
        %p1128 = pneg %p104
        %p1129 = pneg %p101
        %s1130 = sand.u32 %s45, 1
        %s1131 = scalar_lea.sflag [#allocation6], %s1130
        %s1132 = sand.u32 %s117, 1
        %s1133 = scalar_lea.vmem [#allocation7], %s1132
        %p1134 = pneg %p130
        %p1135 = pneg %p127
        %p1136 = pneg %p151
        %p1137 = pneg %p148
        %s1138 = sand.u32 %s45, 1
        %s1139 = scalar_lea.sflag [#allocation3], %s1138
        %s1140 = sand.u32 %s164, 1
        %s1141 = smul.addr %s1140, 192
        %s1142 = scalar_lea.vmem [#allocation10], %s1141
        %p1143 = pneg %p177
        %p1144 = pneg %p174
        %p1145 = scmp.lt.s32.totalorder %s50, 1
        %s1146 = scalar_select %p1145, %s50, 1
        %s1147 = smul.addr %s1146, 3
        %s1148 = scalar_lea.vmem %s5, %s1147
        %p1149 = pneg %p203
        %p1150 = pneg %p200
        %s1151 = sand.u32 %s45, 1
        %s1152 = scalar_lea.sflag [#allocation6], %s1151
        %s1153 = sand.u32 %s216, 1
        %s1154 = smul.addr %s1153, 64
        %s1155 = scalar_lea.vmem [#allocation11], %s1154
        %p1156 = pneg %p229
        %p1157 = pneg %p226
        %p1158 = scmp.lt.s32.totalorder %s50, 1
        %s1159 = scalar_select %p1158, %s50, 1
        %s1160 = scalar_lea.vmem %s7, %s1159
        %p1161 = pneg %p255
        %p1162 = pneg %p252
        %p1163 = scmp.lt.s32.totalorder %s50, 1
        %s1164 = scalar_select %p1163, %s50, 1
        %s1165 = scalar_lea.vmem %s8, %s1164
        %p1166 = pneg %p281
        %p1167 = pneg %p278
        %p1168 = scmp.lt.s32.totalorder %s50, 1
        %s1169 = scalar_select %p1168, %s50, 1
        %s1170 = scalar_lea.vmem %s9, %s1169
        %p1171 = pneg %p307
        %p1172 = pneg %p304
        %s1173 = sand.u32 %s45, 1
        %s1174 = scalar_lea.sflag [#allocation3], %s1173
        %s1175 = sand.u32 %s320, 1
        %s1176 = smul.addr %s1175, 64
        %s1177 = scalar_lea.vmem [#allocation12], %s1176
        %p1178 = pneg %p333
        %p1179 = pneg %p330
        %p1180 = scmp.lt.s32.totalorder %s50, 1
        %s1181 = scalar_select %p1180, %s50, 1
        %s1182 = scalar_lea.vmem %s11, %s1181
        %p1183 = pneg %p359
        %p1184 = pneg %p356
        %s1185 = sand.u32 %s45, 1
        %s1186 = scalar_lea.sflag [#allocation6], %s1185
        %s1187 = sand.u32 %s372, 1
        %s1188 = smul.addr %s1187, 128
        %s1189 = scalar_lea.vmem [#allocation13], %s1188
        %p1190 = pneg %p385
        %p1191 = pneg %p382
        %p1192 = scmp.lt.s32.totalorder %s50, 1
        %s1193 = scalar_select %p1192, %s50, 1
        %s1194 = smul.addr %s1193, 2
        %s1195 = scalar_lea.vmem %s13, %s1194
        %p1196 = pneg %p411
        %p1197 = pneg %p408
        %s1198 = sand.u32 %s45, 1
        %s1199 = scalar_lea.sflag [#allocation3], %s1198
        %s1200 = sand.u32 %s424, 1
        %s1201 = smul.addr %s1200, 64
        %s1202 = scalar_lea.vmem [#allocation14], %s1201
        %p1203 = pneg %p437
        %p1204 = pneg %p434
        %p1205 = scmp.lt.s32.totalorder %s50, 1
        %s1206 = scalar_select %p1205, %s50, 1
        %s1207 = scalar_lea.vmem %s15, %s1206
        %p1208 = pneg %p463
        %p1209 = pneg %p460
        %p1210 = scmp.lt.s32.totalorder %s50, 1
        %s1211 = scalar_select %p1210, %s50, 1
        %s1212 = scalar_lea.vmem %s16, %s1211
        %p1213 = pneg %p489
        %p1214 = pneg %p486
        %p1215 = scmp.lt.s32.totalorder %s50, 1
        %s1216 = scalar_select %p1215, %s50, 1
        %s1217 = scalar_lea.vmem %s17, %s1216
        %p1218 = pneg %p515
        %p1219 = pneg %p512
        %s1220 = sand.u32 %s45, 1
        %s1221 = scalar_lea.sflag [#allocation6], %s1220
        %s1222 = sand.u32 %s528, 1
        %s1223 = smul.addr %s1222, 128
        %s1224 = scalar_lea.vmem [#allocation15], %s1223
        %p1225 = pneg %p541
        %p1226 = pneg %p538
        %p1227 = scmp.lt.s32.totalorder %s50, 1
        %s1228 = scalar_select %p1227, %s50, 1
        %s1229 = smul.addr %s1228, 2
        %s1230 = scalar_lea.vmem %s19, %s1229
        %p1231 = pneg %p567
        %p1232 = pneg %p564
        %s1233 = sand.u32 %s45, 1
        %s1234 = scalar_lea.sflag [#allocation3], %s1233
        %s1235 = sand.u32 %s580, 1
        %s1236 = smul.addr %s1235, 128
        %s1237 = scalar_lea.vmem [#allocation16], %s1236
        %p1238 = pneg %p593
        %p1239 = pneg %p590
        %p1240 = scmp.lt.s32.totalorder %s50, 1
        %s1241 = scalar_select %p1240, %s50, 1
        %s1242 = scalar_lea.vmem %s21, %s1241
        %p1243 = pneg %p619
        %p1244 = pneg %p616
        %p1245 = scmp.lt.s32.totalorder %s50, 1
        %s1246 = scalar_select %p1245, %s50, 1
        %s1247 = scalar_lea.vmem %s22, %s1246
        %p1248 = pneg %p645
        %p1249 = pneg %p642
        %p1250 = scmp.lt.s32.totalorder %s50, 1
        %s1251 = scalar_select %p1250, %s50, 1
        %s1252 = scalar_lea.vmem %s23, %s1251
        %p1253 = pneg %p671
        %p1254 = pneg %p668
        %p1255 = pneg %p697
        %p1256 = pneg %p694
        %s1257 = sand.u32 %s684, 1
        %s1258 = scalar_lea.sflag [#allocation4], %s1257
        %s1259 = sand.u32 %s684, 1
        %s1260 = smul.addr %s1259, 16
        %s1261 = scalar_lea.vmem [#allocation17], %s1260
        %s1262 = smul.u32 2, %s49
        %s1263 = smul.u32 2, %s49
        %p1264 = scmp.lt.s32.totalorder %s50, 1
        %s1265 = scalar_select %p1264, %s50, 1
        %s1266 = smul.addr %s1265, 3
        %s1267 = scalar_lea.vmem %s5, %s1266
        %p1268 = scmp.lt.s32.totalorder %s50, 1
        %s1269 = scalar_select %p1268, %s50, 1
        %s1270 = scalar_lea.vmem %s7, %s1269
        %p1271 = scmp.lt.s32.totalorder %s50, 1
        %s1272 = scalar_select %p1271, %s50, 1
        %s1273 = scalar_lea.vmem %s8, %s1272
        %p1274 = scmp.lt.s32.totalorder %s50, 1
        %s1275 = scalar_select %p1274, %s50, 1
        %s1276 = scalar_lea.vmem %s9, %s1275
        %p1277 = scmp.lt.s32.totalorder %s50, 1
        %s1278 = scalar_select %p1277, %s50, 1
        %s1279 = scalar_lea.vmem %s11, %s1278
        %p1280 = scmp.lt.s32.totalorder %s50, 1
        %s1281 = scalar_select %p1280, %s50, 1
        %s1282 = smul.addr %s1281, 2
        %s1283 = scalar_lea.vmem %s13, %s1282
        %p1284 = scmp.lt.s32.totalorder %s50, 1
        %s1285 = scalar_select %p1284, %s50, 1
        %s1286 = scalar_lea.vmem %s15, %s1285
        %p1287 = scmp.lt.s32.totalorder %s50, 1
        %s1288 = scalar_select %p1287, %s50, 1
        %s1289 = scalar_lea.vmem %s16, %s1288
        %p1290 = scmp.lt.s32.totalorder %s50, 1
        %s1291 = scalar_select %p1290, %s50, 1
        %s1292 = scalar_lea.vmem %s17, %s1291
        %p1293 = scmp.lt.s32.totalorder %s50, 1
        %s1294 = scalar_select %p1293, %s50, 1
        %s1295 = smul.addr %s1294, 2
        %s1296 = scalar_lea.vmem %s19, %s1295
        %p1297 = scmp.lt.s32.totalorder %s50, 1
        %s1298 = scalar_select %p1297, %s50, 1
        %s1299 = scalar_lea.vmem %s21, %s1298
        %p1300 = scmp.lt.s32.totalorder %s50, 1
        %s1301 = scalar_select %p1300, %s50, 1
        %s1302 = scalar_lea.vmem %s22, %s1301
        %p1303 = scmp.lt.s32.totalorder %s50, 1
        %s1304 = scalar_select %p1303, %s50, 1
        %s1305 = scalar_lea.vmem %s23, %s1304
        %s1306 = smul.u32 2, %s49
        %p1308 = scmp.eq.s32.totalorder %s50, 0
        // Predicated region
        $region161: #{tpu_custom_call.1} parent=115 // pred_check
          %p1309 = pneg %p1308
        $region162: #{tpu_custom_call.1} parent=115 // pred_check_branch
          %1311 = sbr.rel (%p1309) target = $region164
        $region163: #{tpu_custom_call.1} parent=115 // pred_region
          %v1312 = vld [vmem:[%s1027] sm:$0xff]
          %v1313 = vld [vmem:[%s1027 + $0x8] sm:$0xff]
          %1314 = vst [vmem:[%s1261] sm:$0xff] %v1312
          %1315 = vst [vmem:[%s1261 + $0x8] sm:$0xff] %v1313
        $region164: #{tpu_custom_call.1} parent=115 // pred_fallthru
          _
        %v1316 = vld [vmem:[%s1261] sm:$0xff]
        %v1317 = vld [vmem:[%s1261 + $0x8] sm:$0xff]
        %v1318 = vld [vmem:[#allocation8] sm:$0xff]
        %v1319 = vld [vmem:[#allocation8 + $0x8] sm:$0xff]
        %v1320 = vld [vmem:[%s1044] sm:$0x1]
        %v1321 = vpack.c.bf16 %v1317, %v1316
        %v1322 = vld [vmem:[%s1057] sm:$0xff]
        %v1323 = vld [vmem:[%s1057 + $0x8] sm:$0xf]
        %v1324 = vld [vmem:[%s1057 + $0xc] sm:$0xff]
        %v1325 = vld [vmem:[%s1057 + $0x14] sm:$0xf]
        %v1326 = vld [vmem:[%s1057 + $0x18] sm:$0xff]
        %v1327 = vld [vmem:[%s1057 + $0x20] sm:$0xf]
        %v1328 = vld [vmem:[%s1057 + $0x24] sm:$0xff]
        %v1329 = vld [vmem:[%s1057 + $0x2c] sm:$0xf]
        %v1330 = vld [vmem:[%s1057 + $0x30] sm:$0xff]
        %v1331 = vld [vmem:[%s1057 + $0x38] sm:$0xf]
        %v1332 = vld [vmem:[%s1057 + $0x3c] sm:$0xff]
        %v1333 = vld [vmem:[%s1057 + $0x44] sm:$0xf]
        %v1334 = vld [vmem:[%s1057 + $0x48] sm:$0xff]
        %v1335 = vld [vmem:[%s1057 + $0x50] sm:$0xf]
        %v1336 = vld [vmem:[%s1057 + $0x54] sm:$0xff]
        %v1337 = vld [vmem:[%s1057 + $0x5c] sm:$0xf]
        %v1338 = vld [vmem:[%s1057 + $0x60] sm:$0xff]
        %v1339 = vld [vmem:[%s1057 + $0x68] sm:$0xf]
        %v1340 = vld [vmem:[%s1057 + $0x6c] sm:$0xff]
        %v1341 = vld [vmem:[%s1057 + $0x74] sm:$0xf]
        %v1342 = vld [vmem:[%s1057 + $0x78] sm:$0xff]
        %v1343 = vld [vmem:[%s1057 + $0x80] sm:$0xf]
        %v1344 = vld [vmem:[%s1057 + $0x84] sm:$0xff]
        %v1345 = vld [vmem:[%s1057 + $0x8c] sm:$0xf]
        %v1346 = vld [vmem:[%s1057 + $0x90] sm:$0xff]
        %v1347 = vld [vmem:[%s1057 + $0x98] sm:$0xf]
        %v1348 = vld [vmem:[%s1057 + $0x9c] sm:$0xff]
        %v1349 = vld [vmem:[%s1057 + $0xa4] sm:$0xf]
        %v1350 = vld [vmem:[%s1057 + $0xa8] sm:$0xff]
        %v1351 = vld [vmem:[%s1057 + $0xb0] sm:$0xf]
        %v1352 = vld [vmem:[%s1057 + $0xb4] sm:$0xff]
        %v1353 = vld [vmem:[%s1057 + $0xbc] sm:$0xf]
        %v1354 = vld [vmem:[%s1267] sm:$0x7]
        %v1356 = vlaneseq
        %v1357 = vshrl.u32 %v1356, 7
        %v1358 = vsub.s32 0, %v1357
        %v1359 = vrot.slane %v1354, %v1358
        %v1360 = vlaneseq
        %v1361 = vshrl.u32 %v1360, 7
        %v1362 = vsub.s32 1, %v1361
        %v1363 = vrot.slane %v1354, %v1362
        %v1364 = vlaneseq
        %v1365 = vshrl.u32 %v1364, 7
        %v1366 = vsub.s32 2, %v1365
        %v1367 = vrot.slane %v1354, %v1366
        %v1403 = vunpack.c.l.b16 %v1322
        %v1404 = vunpack.c.h.b16 %v1322
        %v1405 = vunpack.c.l.b16 %v1323
        %v1406 = vunpack.c.l.b16 %v1324
        %v1407 = vunpack.c.h.b16 %v1324
        %v1408 = vunpack.c.l.b16 %v1325
        %v1409 = vunpack.c.l.b16 %v1326
        %v1410 = vunpack.c.h.b16 %v1326
        %v1411 = vunpack.c.l.b16 %v1327
        %v1412 = vunpack.c.l.b16 %v1328
        %v1413 = vunpack.c.h.b16 %v1328
        %v1414 = vunpack.c.l.b16 %v1329
        %v1415 = vunpack.c.l.b16 %v1330
        %v1416 = vunpack.c.h.b16 %v1330
        %v1417 = vunpack.c.l.b16 %v1331
        %v1418 = vunpack.c.l.b16 %v1332
        %v1419 = vunpack.c.h.b16 %v1332
        %v1420 = vunpack.c.l.b16 %v1333
        %v1421 = vunpack.c.l.b16 %v1334
        %v1422 = vunpack.c.h.b16 %v1334
        %v1423 = vunpack.c.l.b16 %v1335
        %v1424 = vunpack.c.l.b16 %v1336
        %v1425 = vunpack.c.h.b16 %v1336
        %v1426 = vunpack.c.l.b16 %v1337
        %v1427 = vunpack.c.l.b16 %v1338
        %v1428 = vunpack.c.h.b16 %v1338
        %v1429 = vunpack.c.l.b16 %v1339
        %v1430 = vunpack.c.l.b16 %v1340
        %v1431 = vunpack.c.h.b16 %v1340
        %v1432 = vunpack.c.l.b16 %v1341
        %v1433 = vunpack.c.l.b16 %v1342
        %v1434 = vunpack.c.h.b16 %v1342
        %v1435 = vunpack.c.l.b16 %v1343
        %v1436 = vunpack.c.l.b16 %v1344
        %v1437 = vunpack.c.h.b16 %v1344
        %v1438 = vunpack.c.l.b16 %v1345
        %v1439 = vunpack.c.l.b16 %v1346
        %v1440 = vunpack.c.h.b16 %v1346
        %v1441 = vunpack.c.l.b16 %v1347
        %v1442 = vunpack.c.l.b16 %v1348
        %v1443 = vunpack.c.h.b16 %v1348
        %v1444 = vunpack.c.l.b16 %v1349
        %v1445 = vunpack.c.l.b16 %v1350
        %v1446 = vunpack.c.h.b16 %v1350
        %v1447 = vunpack.c.l.b16 %v1351
        %v1448 = vunpack.c.l.b16 %v1352
        %v1449 = vunpack.c.h.b16 %v1352
        %v1450 = vunpack.c.l.b16 %v1353
        %v1451 = vpack.c.b16 %v1406, %v1403
        %v1452 = vpack.c.b16 %v1407, %v1404
        %v1453 = vpack.c.b16 %v1408, %v1405
        %v1454 = vpack.c.b16 %v1412, %v1409
        %v1455 = vpack.c.b16 %v1413, %v1410
        %v1456 = vpack.c.b16 %v1414, %v1411
        %v1457 = vpack.c.b16 %v1418, %v1415
        %v1458 = vpack.c.b16 %v1419, %v1416
        %v1459 = vpack.c.b16 %v1420, %v1417
        %v1460 = vpack.c.b16 %v1424, %v1421
        %v1461 = vpack.c.b16 %v1425, %v1422
        %v1462 = vpack.c.b16 %v1426, %v1423
        %v1463 = vpack.c.b16 %v1430, %v1427
        %v1464 = vpack.c.b16 %v1431, %v1428
        %v1465 = vpack.c.b16 %v1432, %v1429
        %v1466 = vpack.c.b16 %v1436, %v1433
        %v1467 = vpack.c.b16 %v1437, %v1434
        %v1468 = vpack.c.b16 %v1438, %v1435
        %v1469 = vpack.c.b16 %v1442, %v1439
        %v1470 = vpack.c.b16 %v1443, %v1440
        %v1471 = vpack.c.b16 %v1444, %v1441
        %v1472 = vpack.c.b16 %v1448, %v1445
        %v1473 = vpack.c.b16 %v1449, %v1446
        %v1474 = vpack.c.b16 %v1450, %v1447
        %1499 = vmatprep.subr.bf16.mxu0 %v1452
        %1500 = vmatpush1.bf16.msra.mxu0 %v1451
        %1501 = vmatprep.subr.bf16.mxu0 %v1455
        %1502 = vmatpush1.bf16.msra.mxu0 %v1454
        %1503 = vmatprep.subr.bf16.mxu0 %v1458
        %1504 = vmatpush1.bf16.msra.mxu0 %v1457
        %1505 = vmatprep.subr.bf16.mxu0 %v1461
        %1506 = vmatpush1.bf16.msra.mxu0 %v1460
        %1507 = vmatprep.subr.bf16.mxu0 %v1464
        %1508 = vmatpush1.bf16.msra.mxu0 %v1463
        %1509 = vmatprep.subr.bf16.mxu0 %v1467
        %1510 = vmatpush1.bf16.msra.mxu0 %v1466
        %1511 = vmatprep.subr.bf16.mxu0 %v1470
        %1512 = vmatpush1.bf16.msra.mxu0 %v1469
        %1513 = vmatprep.subr.bf16.mxu0 %v1473
        %1514 = vmatpush1.bf16.msra.mxu0 %v1472
        %1515 = vmatprep.subr.bf16.mxu0 0
        %1516 = vmatpush1.bf16.msra.mxu0 0
        %1517 = vmatprep.subr.bf16.mxu0 0
        %1518 = vmatpush1.bf16.msra.mxu0 0
        %1519 = vmatprep.subr.bf16.mxu0 0
        %1520 = vmatpush1.bf16.msra.mxu0 0
        %1521 = vmatprep.subr.bf16.mxu0 0
        %1522 = vmatpush1.bf16.msra.mxu0 0
        %1523 = vmatprep.subr.bf16.mxu0 0
        %1524 = vmatpush1.bf16.msra.mxu0 0
        %1525 = vmatprep.subr.bf16.mxu0 0
        %1526 = vmatpush1.bf16.msra.mxu0 0
        %1527 = vmatprep.subr.bf16.mxu0 0
        %1528 = vmatpush1.bf16.msra.mxu0 0
        %1529 = vmatprep.subr.bf16.mxu0 0
        %1530 = vmatpush1.bf16.msra.mxu0 0
        %1531 = vmatprep.mubr.bf16.mxu0 0
        %1532 = vmatmul.mubr.bf16.gmra.mrb[0].mxu0 %v1321
        %v1533 = vpop.f32.mrb[0].mxu0
        %v1534 = vadd.f32 %v1359, %v1533
        %v1535 = vpop.f32.mrb[0].mxu0
        %v1536 = vadd.f32 %v1363, %v1535
        %v1537 = vpop.f32.mrb[0].mxu0
        %v1538 = vadd.f32 %v1359, %v1537
        %v1539 = vpop.f32.mrb[0].mxu0
        %v1540 = vadd.f32 %v1363, %v1539
        %1541 = vdwg.mxu0
        %1542 = vmatprep.subr.bf16.mxu0 0
        %1543 = vmatpush1.bf16.msra.mxu0 %v1453
        %1544 = vmatprep.subr.bf16.mxu0 0
        %1545 = vmatpush1.bf16.msra.mxu0 %v1456
        %1546 = vmatprep.subr.bf16.mxu0 0
        %1547 = vmatpush1.bf16.msra.mxu0 %v1459
        %1548 = vmatprep.subr.bf16.mxu0 0
        %1549 = vmatpush1.bf16.msra.mxu0 %v1462
        %1550 = vmatprep.subr.bf16.mxu0 0
        %1551 = vmatpush1.bf16.msra.mxu0 %v1465
        %1552 = vmatprep.subr.bf16.mxu0 0
        %1553 = vmatpush1.bf16.msra.mxu0 %v1468
        %1554 = vmatprep.subr.bf16.mxu0 0
        %1555 = vmatpush1.bf16.msra.mxu0 %v1471
        %1556 = vmatprep.subr.bf16.mxu0 0
        %1557 = vmatpush1.bf16.msra.mxu0 %v1474
        %1558 = vmatprep.subr.bf16.mxu0 0
        %1559 = vmatpush1.bf16.msra.mxu0 0
        %1560 = vmatprep.subr.bf16.mxu0 0
        %1561 = vmatpush1.bf16.msra.mxu0 0
        %1562 = vmatprep.subr.bf16.mxu0 0
        %1563 = vmatpush1.bf16.msra.mxu0 0
        %1564 = vmatprep.subr.bf16.mxu0 0
        %1565 = vmatpush1.bf16.msra.mxu0 0
        %1566 = vmatprep.subr.bf16.mxu0 0
        %1567 = vmatpush1.bf16.msra.mxu0 0
        %1568 = vmatprep.subr.bf16.mxu0 0
        %1569 = vmatpush1.bf16.msra.mxu0 0
        %1570 = vmatprep.subr.bf16.mxu0 0
        %1571 = vmatpush1.bf16.msra.mxu0 0
        %1572 = vmatprep.subr.bf16.mxu0 0
        %1573 = vmatpush1.bf16.msra.mxu0 0
        %1574 = vmatprep.mubr.bf16.mxu0 0
        %1575 = vmatmul.mubr.bf16.gmra.mrb[0].mxu0 %v1321
        %v1576 = vpop.f32.mrb[0].mxu0
        %v1577 = vadd.f32 %v1367, %v1576
        %v1578 = vpop.f32.mrb[0].mxu0
        %v1579 = vpop.f32.mrb[0].mxu0
        %v1580 = vadd.f32 %v1367, %v1579
        %v1581 = vpop.f32.mrb[0].mxu0
        %1582 = vdwg.mxu0
        %v1583 = vpack.c.bf16 %v1538, %v1534
        %v1584 = vpack.c.bf16 %v1540, %v1536
        %v1585 = vpack.c.bf16 %v1580, %v1577
        %1587 = vrot.lane.b32.xlu0 %v1583, 96
        %v1588 = vpop.permute.xlu0 %1587
        %1589 = vrot.lane.b32.xlu0 %v1583, 64
        %v1590 = vpop.permute.xlu0 %1589
        %1591 = vrot.lane.b32.xlu0 %v1583, 32
        %v1592 = vpop.permute.xlu0 %1591
        %1594 = vrot.lane.b32.xlu0 %v1584, 96
        %v1595 = vpop.permute.xlu0 %1594
        %1596 = vrot.lane.b32.xlu0 %v1584, 64
        %v1597 = vpop.permute.xlu0 %1596
        %1598 = vrot.lane.b32.xlu0 %v1584, 32
        %v1599 = vpop.permute.xlu0 %1598
        %1601 = vrot.lane.b32.xlu0 %v1585, 96
        %v1602 = vpop.permute.xlu0 %1601
        %1604 = vrot.lane.b32.xlu0 %v1585, 64
        %v1605 = vpop.permute.xlu0 %1604
        %1607 = vrot.lane.b32.xlu0 %v1585, 32
        %v1608 = vpop.permute.xlu0 %1607
        %vm1610 = vcmask 261120
        %v1612 = vsel %vm1610, %v1583, 0
        %v1615 = vsel %vm1610, %v1584, 0
        %1617 = vmatprep.subr.bf16.mxu0 0
        %1618 = vmatpush1.bf16.xpose.msra.mxu0 %v1615
        %1619 = vmatprep.subr.bf16.mxu0 0
        %1620 = vmatpush1.bf16.xpose.msra.mxu0 0
        %1621 = vmatprep.subr.bf16.mxu0 0
        %1622 = vmatpush1.bf16.xpose.msra.mxu0 0
        %1623 = vmatprep.subr.bf16.mxu0 0
        %1624 = vmatpush1.bf16.xpose.msra.mxu0 0
        %1625 = vmatprep.subr.bf16.mxu0 0
        %1626 = vmatpush1.bf16.xpose.msra.mxu0 0
        %1627 = vmatprep.subr.bf16.mxu0 0
        %1628 = vmatpush1.bf16.xpose.msra.mxu0 0
        %1629 = vmatprep.subr.bf16.mxu0 0
        %1630 = vmatpush1.bf16.xpose.msra.mxu0 0
        %1631 = vmatprep.subr.bf16.mxu0 0
        %1632 = vmatpush1.bf16.xpose.msra.mxu0 0
        %1633 = vmatprep.subr.bf16.mxu0 0
        %1634 = vmatpush1.bf16.xpose.msra.mxu0 0
        %1635 = vmatprep.subr.bf16.mxu0 0
        %1636 = vmatpush1.bf16.xpose.msra.mxu0 0
        %1637 = vmatprep.subr.bf16.mxu0 0
        %1638 = vmatpush1.bf16.xpose.msra.mxu0 0
        %1639 = vmatprep.subr.bf16.mxu0 0
        %1640 = vmatpush1.bf16.xpose.msra.mxu0 0
        %1641 = vmatprep.subr.bf16.mxu0 0
        %1642 = vmatpush1.bf16.xpose.msra.mxu0 0
        %1643 = vmatprep.subr.bf16.mxu0 0
        %1644 = vmatpush1.bf16.xpose.msra.mxu0 0
        %1645 = vmatprep.subr.bf16.mxu0 0
        %1646 = vmatpush1.bf16.xpose.msra.mxu0 0
        %1647 = vmatprep.subr.bf16.mxu0 0
        %1648 = vmatpush1.bf16.xpose.msra.mxu0 0
        %1649 = vmatprep.mubr.bf16.mxu0 0
        %1650 = vmatmul.mubr.bf16.gmra.mrb[0].mxu0 %v1612
        %v1651 = vpop.f32.mrb[0].mxu0
        %v1652 = vadd.f32 0.0, %v1651
        %v1653 = vpop.f32.mrb[0].mxu0
        %v1654 = vpop.f32.mrb[0].mxu0
        %v1655 = vadd.f32 0.0, %v1654
        %v1656 = vpop.f32.mrb[0].mxu0
        %1657 = vdwg.mxu0
        %v1659 = vsel %vm1610, %v1588, 0
        %v1662 = vsel %vm1610, %v1595, 0
        %1664 = vmatprep.subr.bf16.mxu0 0
        %1665 = vmatpush1.bf16.xpose.msra.mxu0 %v1662
        %1666 = vmatprep.subr.bf16.mxu0 0
        %1667 = vmatpush1.bf16.xpose.msra.mxu0 0
        %1668 = vmatprep.subr.bf16.mxu0 0
        %1669 = vmatpush1.bf16.xpose.msra.mxu0 0
        %1670 = vmatprep.subr.bf16.mxu0 0
        %1671 = vmatpush1.bf16.xpose.msra.mxu0 0
        %1672 = vmatprep.subr.bf16.mxu0 0
        %1673 = vmatpush1.bf16.xpose.msra.mxu0 0
        %1674 = vmatprep.subr.bf16.mxu0 0
        %1675 = vmatpush1.bf16.xpose.msra.mxu0 0
        %1676 = vmatprep.subr.bf16.mxu0 0
        %1677 = vmatpush1.bf16.xpose.msra.mxu0 0
        %1678 = vmatprep.subr.bf16.mxu0 0
        %1679 = vmatpush1.bf16.xpose.msra.mxu0 0
        %1680 = vmatprep.subr.bf16.mxu0 0
        %1681 = vmatpush1.bf16.xpose.msra.mxu0 0
        %1682 = vmatprep.subr.bf16.mxu0 0
        %1683 = vmatpush1.bf16.xpose.msra.mxu0 0
        %1684 = vmatprep.subr.bf16.mxu0 0
        %1685 = vmatpush1.bf16.xpose.msra.mxu0 0
        %1686 = vmatprep.subr.bf16.mxu0 0
        %1687 = vmatpush1.bf16.xpose.msra.mxu0 0
        %1688 = vmatprep.subr.bf16.mxu0 0
        %1689 = vmatpush1.bf16.xpose.msra.mxu0 0
        %1690 = vmatprep.subr.bf16.mxu0 0
        %1691 = vmatpush1.bf16.xpose.msra.mxu0 0
        %1692 = vmatprep.subr.bf16.mxu0 0
        %1693 = vmatpush1.bf16.xpose.msra.mxu0 0
        %1694 = vmatprep.subr.bf16.mxu0 0
        %1695 = vmatpush1.bf16.xpose.msra.mxu0 0
        %1696 = vmatprep.mubr.bf16.mxu0 0
        %1697 = vmatmul.mubr.bf16.gmra.mrb[0].mxu0 %v1659
        %v1698 = vpop.f32.mrb[0].mxu0
        %v1699 = vadd.f32 0.0, %v1698
        %v1700 = vpop.f32.mrb[0].mxu0
        %v1701 = vpop.f32.mrb[0].mxu0
        %v1702 = vadd.f32 0.0, %v1701
        %v1703 = vpop.f32.mrb[0].mxu0
        %1704 = vdwg.mxu0
        %v1706 = vsel %vm1610, %v1590, 0
        %v1709 = vsel %vm1610, %v1597, 0
        %1711 = vmatprep.subr.bf16.mxu0 0
        %1712 = vmatpush1.bf16.xpose.msra.mxu0 %v1709
        %1713 = vmatprep.subr.bf16.mxu0 0
        %1714 = vmatpush1.bf16.xpose.msra.mxu0 0
        %1715 = vmatprep.subr.bf16.mxu0 0
        %1716 = vmatpush1.bf16.xpose.msra.mxu0 0
        %1717 = vmatprep.subr.bf16.mxu0 0
        %1718 = vmatpush1.bf16.xpose.msra.mxu0 0
        %1719 = vmatprep.subr.bf16.mxu0 0
        %1720 = vmatpush1.bf16.xpose.msra.mxu0 0
        %1721 = vmatprep.subr.bf16.mxu0 0
        %1722 = vmatpush1.bf16.xpose.msra.mxu0 0
        %1723 = vmatprep.subr.bf16.mxu0 0
        %1724 = vmatpush1.bf16.xpose.msra.mxu0 0
        %1725 = vmatprep.subr.bf16.mxu0 0
        %1726 = vmatpush1.bf16.xpose.msra.mxu0 0
        %1727 = vmatprep.subr.bf16.mxu0 0
        %1728 = vmatpush1.bf16.xpose.msra.mxu0 0
        %1729 = vmatprep.subr.bf16.mxu0 0
        %1730 = vmatpush1.bf16.xpose.msra.mxu0 0
        %1731 = vmatprep.subr.bf16.mxu0 0
        %1732 = vmatpush1.bf16.xpose.msra.mxu0 0
        %1733 = vmatprep.subr.bf16.mxu0 0
        %1734 = vmatpush1.bf16.xpose.msra.mxu0 0
        %1735 = vmatprep.subr.bf16.mxu0 0
        %1736 = vmatpush1.bf16.xpose.msra.mxu0 0
        %1737 = vmatprep.subr.bf16.mxu0 0
        %1738 = vmatpush1.bf16.xpose.msra.mxu0 0
        %1739 = vmatprep.subr.bf16.mxu0 0
        %1740 = vmatpush1.bf16.xpose.msra.mxu0 0
        %1741 = vmatprep.subr.bf16.mxu0 0
        %1742 = vmatpush1.bf16.xpose.msra.mxu0 0
        %1743 = vmatprep.mubr.bf16.mxu0 0
        %1744 = vmatmul.mubr.bf16.gmra.mrb[0].mxu0 %v1706
        %v1745 = vpop.f32.mrb[0].mxu0
        %v1746 = vadd.f32 0.0, %v1745
        %v1747 = vpop.f32.mrb[0].mxu0
        %v1748 = vpop.f32.mrb[0].mxu0
        %v1749 = vadd.f32 0.0, %v1748
        %v1750 = vpop.f32.mrb[0].mxu0
        %1751 = vdwg.mxu0
        %v1753 = vsel %vm1610, %v1592, 0
        %v1756 = vsel %vm1610, %v1599, 0
        %1758 = vmatprep.subr.bf16.mxu0 0
        %1759 = vmatpush1.bf16.xpose.msra.mxu0 %v1756
        %1760 = vmatprep.subr.bf16.mxu0 0
        %1761 = vmatpush1.bf16.xpose.msra.mxu0 0
        %1762 = vmatprep.subr.bf16.mxu0 0
        %1763 = vmatpush1.bf16.xpose.msra.mxu0 0
        %1764 = vmatprep.subr.bf16.mxu0 0
        %1765 = vmatpush1.bf16.xpose.msra.mxu0 0
        %1766 = vmatprep.subr.bf16.mxu0 0
        %1767 = vmatpush1.bf16.xpose.msra.mxu0 0
        %1768 = vmatprep.subr.bf16.mxu0 0
        %1769 = vmatpush1.bf16.xpose.msra.mxu0 0
        %1770 = vmatprep.subr.bf16.mxu0 0
        %1771 = vmatpush1.bf16.xpose.msra.mxu0 0
        %1772 = vmatprep.subr.bf16.mxu0 0
        %1773 = vmatpush1.bf16.xpose.msra.mxu0 0
        %1774 = vmatprep.subr.bf16.mxu0 0
        %1775 = vmatpush1.bf16.xpose.msra.mxu0 0
        %1776 = vmatprep.subr.bf16.mxu0 0
        %1777 = vmatpush1.bf16.xpose.msra.mxu0 0
        %1778 = vmatprep.subr.bf16.mxu0 0
        %1779 = vmatpush1.bf16.xpose.msra.mxu0 0
        %1780 = vmatprep.subr.bf16.mxu0 0
        %1781 = vmatpush1.bf16.xpose.msra.mxu0 0
        %1782 = vmatprep.subr.bf16.mxu0 0
        %1783 = vmatpush1.bf16.xpose.msra.mxu0 0
        %1784 = vmatprep.subr.bf16.mxu0 0
        %1785 = vmatpush1.bf16.xpose.msra.mxu0 0
        %1786 = vmatprep.subr.bf16.mxu0 0
        %1787 = vmatpush1.bf16.xpose.msra.mxu0 0
        %1788 = vmatprep.subr.bf16.mxu0 0
        %1789 = vmatpush1.bf16.xpose.msra.mxu0 0
        %1790 = vmatprep.mubr.bf16.mxu0 0
        %1791 = vmatmul.mubr.bf16.gmra.mrb[0].mxu0 %v1753
        %v1792 = vpop.f32.mrb[0].mxu0
        %v1793 = vadd.f32 0.0, %v1792
        %v1794 = vpop.f32.mrb[0].mxu0
        %v1795 = vpop.f32.mrb[0].mxu0
        %v1796 = vadd.f32 0.0, %v1795
        %v1797 = vpop.f32.mrb[0].mxu0
        %1798 = vdwg.mxu0
        %v1799 = vadd.f32 %v1652, %v1318
        %v1800 = vadd.f32 %v1655, %v1319
        %v1801 = vadd.f32 %v1699, %v1318
        %v1802 = vadd.f32 %v1702, %v1319
        %v1803 = vadd.f32 %v1746, %v1318
        %v1804 = vadd.f32 %v1749, %v1319
        %v1805 = vadd.f32 %v1793, %v1318
        %v1806 = vadd.f32 %v1796, %v1319
        %vm1807 = vcmask 130048
        %v1808 = vsel %vm1807, %v1799, -inf
        %1809 = vmax.xlane.f32.xlu0 %v1808
        %v1810 = vpop.xlane.xlu0 %1809
        %v1811 = vsel %vm1807, %v1800, -inf
        %1812 = vmax.xlane.f32.xlu0 %v1811
        %v1813 = vpop.xlane.xlu0 %1812
        %v1814 = vsel %vm1807, %v1801, -inf
        %1815 = vmax.xlane.f32.xlu0 %v1814
        %v1816 = vpop.xlane.xlu0 %1815
        %v1817 = vsel %vm1807, %v1802, -inf
        %1818 = vmax.xlane.f32.xlu0 %v1817
        %v1819 = vpop.xlane.xlu0 %1818
        %v1820 = vsel %vm1807, %v1803, -inf
        %1821 = vmax.xlane.f32.xlu0 %v1820
        %v1822 = vpop.xlane.xlu0 %1821
        %v1823 = vsel %vm1807, %v1804, -inf
        %1824 = vmax.xlane.f32.xlu0 %v1823
        %v1825 = vpop.xlane.xlu0 %1824
        %v1826 = vsel %vm1807, %v1805, -inf
        %1827 = vmax.xlane.f32.xlu0 %v1826
        %v1828 = vpop.xlane.xlu0 %1827
        %v1829 = vsel %vm1807, %v1806, -inf
        %1830 = vmax.xlane.f32.xlu0 %v1829
        %v1831 = vpop.xlane.xlu0 %1830
        %v1832 = vsub.f32 %v1799, %v1810
        %v1833 = vsub.f32 %v1800, %v1813
        %v1834 = vsub.f32 %v1801, %v1816
        %v1835 = vsub.f32 %v1802, %v1819
        %v1836 = vsub.f32 %v1803, %v1822
        %v1837 = vsub.f32 %v1804, %v1825
        %v1838 = vsub.f32 %v1805, %v1828
        %v1839 = vsub.f32 %v1806, %v1831
        %v1840 = vmul.f32 %v1832, 1.442695
        %v1841 = vpow.pop %v1840
        %v1842 = vmul.f32 %v1833, 1.442695
        %v1843 = vpow.pop %v1842
        %v1844 = vmul.f32 %v1834, 1.442695
        %v1845 = vpow.pop %v1844
        %v1846 = vmul.f32 %v1835, 1.442695
        %v1847 = vpow.pop %v1846
        %v1848 = vmul.f32 %v1836, 1.442695
        %v1849 = vpow.pop %v1848
        %v1850 = vmul.f32 %v1837, 1.442695
        %v1851 = vpow.pop %v1850
        %v1852 = vmul.f32 %v1838, 1.442695
        %v1853 = vpow.pop %v1852
        %v1854 = vmul.f32 %v1839, 1.442695
        %v1855 = vpow.pop %v1854
        %v1856 = vsel %vm1807, %v1841, 0.0
        %1857 = vadd.xlane.f32.xlu0 %v1856
        %v1858 = vpop.xlane.xlu0 %1857
        %v1859 = vsel %vm1807, %v1843, 0.0
        %1860 = vadd.xlane.f32.xlu0 %v1859
        %v1861 = vpop.xlane.xlu0 %1860
        %v1862 = vsel %vm1807, %v1845, 0.0
        %1863 = vadd.xlane.f32.xlu0 %v1862
        %v1864 = vpop.xlane.xlu0 %1863
        %v1865 = vsel %vm1807, %v1847, 0.0
        %1866 = vadd.xlane.f32.xlu0 %v1865
        %v1867 = vpop.xlane.xlu0 %1866
        %v1868 = vsel %vm1807, %v1849, 0.0
        %1869 = vadd.xlane.f32.xlu0 %v1868
        %v1870 = vpop.xlane.xlu0 %1869
        %v1871 = vsel %vm1807, %v1851, 0.0
        %1872 = vadd.xlane.f32.xlu0 %v1871
        %v1873 = vpop.xlane.xlu0 %1872
        %v1874 = vsel %vm1807, %v1853, 0.0
        %1875 = vadd.xlane.f32.xlu0 %v1874
        %v1876 = vpop.xlane.xlu0 %1875
        %v1877 = vsel %vm1807, %v1855, 0.0
        %1878 = vadd.xlane.f32.xlu0 %v1877
        %v1879 = vpop.xlane.xlu0 %1878
        %v1880 = vrcp.pop %v1858
        %v1881 = vrcp.pop %v1861
        %v1882 = vrcp.pop %v1864
        %v1883 = vrcp.pop %v1867
        %v1884 = vrcp.pop %v1870
        %v1885 = vrcp.pop %v1873
        %v1886 = vrcp.pop %v1876
        %v1887 = vrcp.pop %v1879
        %v1888 = vmul.f32 %v1841, %v1880
        %v1889 = vmul.f32 %v1843, %v1881
        %v1890 = vmul.f32 %v1845, %v1882
        %v1891 = vmul.f32 %v1847, %v1883
        %v1892 = vmul.f32 %v1849, %v1884
        %v1893 = vmul.f32 %v1851, %v1885
        %v1894 = vmul.f32 %v1853, %v1886
        %v1895 = vmul.f32 %v1855, %v1887
        %v1896 = vpack.c.bf16 %v1889, %v1888
        %v1897 = vpack.c.bf16 %v1891, %v1890
        %v1898 = vpack.c.bf16 %v1893, %v1892
        %v1899 = vpack.c.bf16 %v1895, %v1894
        %v1901 = vsel %vm1807, %v1896, 0
        %1903 = vmatprep.subr.bf16.mxu0 0
        %1904 = vmatpush1.bf16.msra.mxu0 %v1585
        %1905 = vmatprep.subr.bf16.mxu0 0
        %1906 = vmatpush1.bf16.msra.mxu0 0
        %1907 = vmatprep.subr.bf16.mxu0 0
        %1908 = vmatpush1.bf16.msra.mxu0 0
        %1909 = vmatprep.subr.bf16.mxu0 0
        %1910 = vmatpush1.bf16.msra.mxu0 0
        %1911 = vmatprep.subr.bf16.mxu0 0
        %1912 = vmatpush1.bf16.msra.mxu0 0
        %1913 = vmatprep.subr.bf16.mxu0 0
        %1914 = vmatpush1.bf16.msra.mxu0 0
        %1915 = vmatprep.subr.bf16.mxu0 0
        %1916 = vmatpush1.bf16.msra.mxu0 0
        %1917 = vmatprep.subr.bf16.mxu0 0
        %1918 = vmatpush1.bf16.msra.mxu0 0
        %1919 = vmatprep.subr.bf16.mxu0 0
        %1920 = vmatpush1.bf16.msra.mxu0 0
        %1921 = vmatprep.subr.bf16.mxu0 0
        %1922 = vmatpush1.bf16.msra.mxu0 0
        %1923 = vmatprep.subr.bf16.mxu0 0
        %1924 = vmatpush1.bf16.msra.mxu0 0
        %1925 = vmatprep.subr.bf16.mxu0 0
        %1926 = vmatpush1.bf16.msra.mxu0 0
        %1927 = vmatprep.subr.bf16.mxu0 0
        %1928 = vmatpush1.bf16.msra.mxu0 0
        %1929 = vmatprep.subr.bf16.mxu0 0
        %1930 = vmatpush1.bf16.msra.mxu0 0
        %1931 = vmatprep.subr.bf16.mxu0 0
        %1932 = vmatpush1.bf16.msra.mxu0 0
        %1933 = vmatprep.subr.bf16.mxu0 0
        %1934 = vmatpush1.bf16.msra.mxu0 0
        %1935 = vmatprep.mubr.bf16.mxu0 0
        %1936 = vmatmul.mubr.bf16.gmra.mrb[0].mxu0 %v1901
        %v1937 = vpop.f32.mrb[0].mxu0
        %v1938 = vadd.f32 0.0, %v1937
        %v1939 = vpop.f32.mrb[0].mxu0
        %v1940 = vpop.f32.mrb[0].mxu0
        %v1941 = vadd.f32 0.0, %v1940
        %v1942 = vpop.f32.mrb[0].mxu0
        %1943 = vdwg.mxu0
        %v1945 = vsel %vm1807, %v1897, 0
        %1947 = vmatprep.subr.bf16.mxu0 0
        %1948 = vmatpush1.bf16.msra.mxu0 %v1602
        %1949 = vmatprep.subr.bf16.mxu0 0
        %1950 = vmatpush1.bf16.msra.mxu0 0
        %1951 = vmatprep.subr.bf16.mxu0 0
        %1952 = vmatpush1.bf16.msra.mxu0 0
        %1953 = vmatprep.subr.bf16.mxu0 0
        %1954 = vmatpush1.bf16.msra.mxu0 0
        %1955 = vmatprep.subr.bf16.mxu0 0
        %1956 = vmatpush1.bf16.msra.mxu0 0
        %1957 = vmatprep.subr.bf16.mxu0 0
        %1958 = vmatpush1.bf16.msra.mxu0 0
        %1959 = vmatprep.subr.bf16.mxu0 0
        %1960 = vmatpush1.bf16.msra.mxu0 0
        %1961 = vmatprep.subr.bf16.mxu0 0
        %1962 = vmatpush1.bf16.msra.mxu0 0
        %1963 = vmatprep.subr.bf16.mxu0 0
        %1964 = vmatpush1.bf16.msra.mxu0 0
        %1965 = vmatprep.subr.bf16.mxu0 0
        %1966 = vmatpush1.bf16.msra.mxu0 0
        %1967 = vmatprep.subr.bf16.mxu0 0
        %1968 = vmatpush1.bf16.msra.mxu0 0
        %1969 = vmatprep.subr.bf16.mxu0 0
        %1970 = vmatpush1.bf16.msra.mxu0 0
        %1971 = vmatprep.subr.bf16.mxu0 0
        %1972 = vmatpush1.bf16.msra.mxu0 0
        %1973 = vmatprep.subr.bf16.mxu0 0
        %1974 = vmatpush1.bf16.msra.mxu0 0
        %1975 = vmatprep.subr.bf16.mxu0 0
        %1976 = vmatpush1.bf16.msra.mxu0 0
        %1977 = vmatprep.subr.bf16.mxu0 0
        %1978 = vmatpush1.bf16.msra.mxu0 0
        %1979 = vmatprep.mubr.bf16.mxu0 0
        %1980 = vmatmul.mubr.bf16.gmra.mrb[0].mxu0 %v1945
        %v1981 = vpop.f32.mrb[0].mxu0
        %v1982 = vadd.f32 0.0, %v1981
        %v1983 = vpop.f32.mrb[0].mxu0
        %v1984 = vpop.f32.mrb[0].mxu0
        %v1985 = vadd.f32 0.0, %v1984
        %v1986 = vpop.f32.mrb[0].mxu0
        %1987 = vdwg.mxu0
        %v1989 = vsel %vm1807, %v1898, 0
        %1991 = vmatprep.subr.bf16.mxu0 0
        %1992 = vmatpush1.bf16.msra.mxu0 %v1605
        %1993 = vmatprep.subr.bf16.mxu0 0
        %1994 = vmatpush1.bf16.msra.mxu0 0
        %1995 = vmatprep.subr.bf16.mxu0 0
        %1996 = vmatpush1.bf16.msra.mxu0 0
        %1997 = vmatprep.subr.bf16.mxu0 0
        %1998 = vmatpush1.bf16.msra.mxu0 0
        %1999 = vmatprep.subr.bf16.mxu0 0
        %2000 = vmatpush1.bf16.msra.mxu0 0
        %2001 = vmatprep.subr.bf16.mxu0 0
        %2002 = vmatpush1.bf16.msra.mxu0 0
        %2003 = vmatprep.subr.bf16.mxu0 0
        %2004 = vmatpush1.bf16.msra.mxu0 0
        %2005 = vmatprep.subr.bf16.mxu0 0
        %2006 = vmatpush1.bf16.msra.mxu0 0
        %2007 = vmatprep.subr.bf16.mxu0 0
        %2008 = vmatpush1.bf16.msra.mxu0 0
        %2009 = vmatprep.subr.bf16.mxu0 0
        %2010 = vmatpush1.bf16.msra.mxu0 0
        %2011 = vmatprep.subr.bf16.mxu0 0
        %2012 = vmatpush1.bf16.msra.mxu0 0
        %2013 = vmatprep.subr.bf16.mxu0 0
        %2014 = vmatpush1.bf16.msra.mxu0 0
        %2015 = vmatprep.subr.bf16.mxu0 0
        %2016 = vmatpush1.bf16.msra.mxu0 0
        %2017 = vmatprep.subr.bf16.mxu0 0
        %2018 = vmatpush1.bf16.msra.mxu0 0
        %2019 = vmatprep.subr.bf16.mxu0 0
        %2020 = vmatpush1.bf16.msra.mxu0 0
        %2021 = vmatprep.subr.bf16.mxu0 0
        %2022 = vmatpush1.bf16.msra.mxu0 0
        %2023 = vmatprep.mubr.bf16.mxu0 0
        %2024 = vmatmul.mubr.bf16.gmra.mrb[0].mxu0 %v1989
        %v2025 = vpop.f32.mrb[0].mxu0
        %v2026 = vadd.f32 0.0, %v2025
        %v2027 = vpop.f32.mrb[0].mxu0
        %v2028 = vpop.f32.mrb[0].mxu0
        %v2029 = vadd.f32 0.0, %v2028
        %v2030 = vpop.f32.mrb[0].mxu0
        %2031 = vdwg.mxu0
        %v2033 = vsel %vm1807, %v1899, 0
        %2035 = vmatprep.subr.bf16.mxu0 0
        %2036 = vmatpush1.bf16.msra.mxu0 %v1608
        %2037 = vmatprep.subr.bf16.mxu0 0
        %2038 = vmatpush1.bf16.msra.mxu0 0
        %2039 = vmatprep.subr.bf16.mxu0 0
        %2040 = vmatpush1.bf16.msra.mxu0 0
        %2041 = vmatprep.subr.bf16.mxu0 0
        %2042 = vmatpush1.bf16.msra.mxu0 0
        %2043 = vmatprep.subr.bf16.mxu0 0
        %2044 = vmatpush1.bf16.msra.mxu0 0
        %2045 = vmatprep.subr.bf16.mxu0 0
        %2046 = vmatpush1.bf16.msra.mxu0 0
        %2047 = vmatprep.subr.bf16.mxu0 0
        %2048 = vmatpush1.bf16.msra.mxu0 0
        %2049 = vmatprep.subr.bf16.mxu0 0
        %2050 = vmatpush1.bf16.msra.mxu0 0
        %2051 = vmatprep.subr.bf16.mxu0 0
        %2052 = vmatpush1.bf16.msra.mxu0 0
        %2053 = vmatprep.subr.bf16.mxu0 0
        %2054 = vmatpush1.bf16.msra.mxu0 0
        %2055 = vmatprep.subr.bf16.mxu0 0
        %2056 = vmatpush1.bf16.msra.mxu0 0
        %2057 = vmatprep.subr.bf16.mxu0 0
        %2058 = vmatpush1.bf16.msra.mxu0 0
        %2059 = vmatprep.subr.bf16.mxu0 0
        %2060 = vmatpush1.bf16.msra.mxu0 0
        %2061 = vmatprep.subr.bf16.mxu0 0
        %2062 = vmatpush1.bf16.msra.mxu0 0
        %2063 = vmatprep.subr.bf16.mxu0 0
        %2064 = vmatpush1.bf16.msra.mxu0 0
        %2065 = vmatprep.subr.bf16.mxu0 0
        %2066 = vmatpush1.bf16.msra.mxu0 0
        %2067 = vmatprep.mubr.bf16.mxu0 0
        %2068 = vmatmul.mubr.bf16.gmra.mrb[0].mxu0 %v2033
        %v2069 = vpop.f32.mrb[0].mxu0
        %v2070 = vadd.f32 0.0, %v2069
        %v2071 = vpop.f32.mrb[0].mxu0
        %v2072 = vpop.f32.mrb[0].mxu0
        %v2073 = vadd.f32 0.0, %v2072
        %v2074 = vpop.f32.mrb[0].mxu0
        %2075 = vdwg.mxu0
        %v2076 = vld [vmem:[%s1066] sm:$0xf]
        %v2077 = vld [vmem:[%s1066 + $0x4] sm:$0xf]
        %v2078 = vld [vmem:[%s1066 + $0x8] sm:$0xf]
        %v2079 = vld [vmem:[%s1066 + $0xc] sm:$0xf]
        %v2080 = vld [vmem:[%s1066 + $0x10] sm:$0xf]
        %v2081 = vld [vmem:[%s1066 + $0x14] sm:$0xf]
        %v2082 = vld [vmem:[%s1066 + $0x18] sm:$0xf]
        %v2083 = vld [vmem:[%s1066 + $0x1c] sm:$0xf]
        %v2084 = vld [vmem:[%s1066 + $0x20] sm:$0xf]
        %v2085 = vld [vmem:[%s1066 + $0x24] sm:$0xf]
        %v2086 = vld [vmem:[%s1066 + $0x28] sm:$0xf]
        %v2087 = vld [vmem:[%s1066 + $0x2c] sm:$0xf]
        %v2088 = vld [vmem:[%s1066 + $0x30] sm:$0xf]
        %v2089 = vld [vmem:[%s1066 + $0x34] sm:$0xf]
        %v2090 = vld [vmem:[%s1066 + $0x38] sm:$0xf]
        %v2091 = vld [vmem:[%s1066 + $0x3c] sm:$0xf]
        %v2092 = vld [vmem:[%s1270] sm:$0x1]
        %v2093 = vpack.c.bf16 %v1941, %v1938
        %v2094 = vpack.c.bf16 %v1985, %v1982
        %v2095 = vpack.c.bf16 %v2029, %v2026
        %v2096 = vpack.c.bf16 %v2073, %v2070
        %v2101 = vunpack.c.l.b16 %v2076
        %v2102 = vunpack.c.l.b16 %v2077
        %v2103 = vunpack.c.l.b16 %v2078
        %v2104 = vunpack.c.l.b16 %v2079
        %v2105 = vpack.c.b16 %v2102, %v2101
        %v2106 = vpack.c.b16 %v2104, %v2103
        %v2110 = vsel %vm1610, %v2093, 0
        %2112 = vmatprep.subr.bf16.mxu0 0
        %2113 = vmatpush1.bf16.msra.mxu0 %v2105
        %2114 = vmatprep.subr.bf16.mxu0 0
        %2115 = vmatpush1.bf16.msra.mxu0 %v2106
        %2116 = vmatprep.subr.bf16.mxu0 0
        %2117 = vmatpush1.bf16.msra.mxu0 0
        %2118 = vmatprep.subr.bf16.mxu0 0
        %2119 = vmatpush1.bf16.msra.mxu0 0
        %2120 = vmatprep.subr.bf16.mxu0 0
        %2121 = vmatpush1.bf16.msra.mxu0 0
        %2122 = vmatprep.subr.bf16.mxu0 0
        %2123 = vmatpush1.bf16.msra.mxu0 0
        %2124 = vmatprep.subr.bf16.mxu0 0
        %2125 = vmatpush1.bf16.msra.mxu0 0
        %2126 = vmatprep.subr.bf16.mxu0 0
        %2127 = vmatpush1.bf16.msra.mxu0 0
        %2128 = vmatprep.subr.bf16.mxu0 0
        %2129 = vmatpush1.bf16.msra.mxu0 0
        %2130 = vmatprep.subr.bf16.mxu0 0
        %2131 = vmatpush1.bf16.msra.mxu0 0
        %2132 = vmatprep.subr.bf16.mxu0 0
        %2133 = vmatpush1.bf16.msra.mxu0 0
        %2134 = vmatprep.subr.bf16.mxu0 0
        %2135 = vmatpush1.bf16.msra.mxu0 0
        %2136 = vmatprep.subr.bf16.mxu0 0
        %2137 = vmatpush1.bf16.msra.mxu0 0
        %2138 = vmatprep.subr.bf16.mxu0 0
        %2139 = vmatpush1.bf16.msra.mxu0 0
        %2140 = vmatprep.subr.bf16.mxu0 0
        %2141 = vmatpush1.bf16.msra.mxu0 0
        %2142 = vmatprep.subr.bf16.mxu0 0
        %2143 = vmatpush1.bf16.msra.mxu0 0
        %2144 = vmatprep.mubr.bf16.mxu0 0
        %2145 = vmatmul.mubr.bf16.gmra.mrb[0].mxu0 %v2110
        %v2146 = vpop.f32.mrb[0].mxu0
        %v2147 = vadd.f32 0.0, %v2146
        %v2148 = vpop.f32.mrb[0].mxu0
        %v2149 = vpop.f32.mrb[0].mxu0
        %v2150 = vadd.f32 0.0, %v2149
        %v2151 = vpop.f32.mrb[0].mxu0
        %2152 = vdwg.mxu0
        %v2157 = vunpack.c.l.b16 %v2080
        %v2158 = vunpack.c.l.b16 %v2081
        %v2159 = vunpack.c.l.b16 %v2082
        %v2160 = vunpack.c.l.b16 %v2083
        %v2161 = vpack.c.b16 %v2158, %v2157
        %v2162 = vpack.c.b16 %v2160, %v2159
        %v2166 = vsel %vm1610, %v2094, 0
        %2168 = vmatprep.subr.bf16.mxu0 0
        %2169 = vmatpush1.bf16.msra.mxu0 %v2161
        %2170 = vmatprep.subr.bf16.mxu0 0
        %2171 = vmatpush1.bf16.msra.mxu0 %v2162
        %2172 = vmatprep.subr.bf16.mxu0 0
        %2173 = vmatpush1.bf16.msra.mxu0 0
        %2174 = vmatprep.subr.bf16.mxu0 0
        %2175 = vmatpush1.bf16.msra.mxu0 0
        %2176 = vmatprep.subr.bf16.mxu0 0
        %2177 = vmatpush1.bf16.msra.mxu0 0
        %2178 = vmatprep.subr.bf16.mxu0 0
        %2179 = vmatpush1.bf16.msra.mxu0 0
        %2180 = vmatprep.subr.bf16.mxu0 0
        %2181 = vmatpush1.bf16.msra.mxu0 0
        %2182 = vmatprep.subr.bf16.mxu0 0
        %2183 = vmatpush1.bf16.msra.mxu0 0
        %2184 = vmatprep.subr.bf16.mxu0 0
        %2185 = vmatpush1.bf16.msra.mxu0 0
        %2186 = vmatprep.subr.bf16.mxu0 0
        %2187 = vmatpush1.bf16.msra.mxu0 0
        %2188 = vmatprep.subr.bf16.mxu0 0
        %2189 = vmatpush1.bf16.msra.mxu0 0
        %2190 = vmatprep.subr.bf16.mxu0 0
        %2191 = vmatpush1.bf16.msra.mxu0 0
        %2192 = vmatprep.subr.bf16.mxu0 0
        %2193 = vmatpush1.bf16.msra.mxu0 0
        %2194 = vmatprep.subr.bf16.mxu0 0
        %2195 = vmatpush1.bf16.msra.mxu0 0
        %2196 = vmatprep.subr.bf16.mxu0 0
        %2197 = vmatpush1.bf16.msra.mxu0 0
        %2198 = vmatprep.subr.bf16.mxu0 0
        %2199 = vmatpush1.bf16.msra.mxu0 0
        %2200 = vmatprep.mubr.bf16.mxu0 0
        %2201 = vmatmul.mubr.bf16.gmra.mrb[0].mxu0 %v2166
        %v2202 = vpop.f32.mrb[0].mxu0
        %v2203 = vadd.f32 0.0, %v2202
        %v2204 = vpop.f32.mrb[0].mxu0
        %v2205 = vpop.f32.mrb[0].mxu0
        %v2206 = vadd.f32 0.0, %v2205
        %v2207 = vpop.f32.mrb[0].mxu0
        %2208 = vdwg.mxu0
        %v2213 = vunpack.c.l.b16 %v2084
        %v2214 = vunpack.c.l.b16 %v2085
        %v2215 = vunpack.c.l.b16 %v2086
        %v2216 = vunpack.c.l.b16 %v2087
        %v2217 = vpack.c.b16 %v2214, %v2213
        %v2218 = vpack.c.b16 %v2216, %v2215
        %v2222 = vsel %vm1610, %v2095, 0
        %2224 = vmatprep.subr.bf16.mxu0 0
        %2225 = vmatpush1.bf16.msra.mxu0 %v2217
        %2226 = vmatprep.subr.bf16.mxu0 0
        %2227 = vmatpush1.bf16.msra.mxu0 %v2218
        %2228 = vmatprep.subr.bf16.mxu0 0
        %2229 = vmatpush1.bf16.msra.mxu0 0
        %2230 = vmatprep.subr.bf16.mxu0 0
        %2231 = vmatpush1.bf16.msra.mxu0 0
        %2232 = vmatprep.subr.bf16.mxu0 0
        %2233 = vmatpush1.bf16.msra.mxu0 0
        %2234 = vmatprep.subr.bf16.mxu0 0
        %2235 = vmatpush1.bf16.msra.mxu0 0
        %2236 = vmatprep.subr.bf16.mxu0 0
        %2237 = vmatpush1.bf16.msra.mxu0 0
        %2238 = vmatprep.subr.bf16.mxu0 0
        %2239 = vmatpush1.bf16.msra.mxu0 0
        %2240 = vmatprep.subr.bf16.mxu0 0
        %2241 = vmatpush1.bf16.msra.mxu0 0
        %2242 = vmatprep.subr.bf16.mxu0 0
        %2243 = vmatpush1.bf16.msra.mxu0 0
        %2244 = vmatprep.subr.bf16.mxu0 0
        %2245 = vmatpush1.bf16.msra.mxu0 0
        %2246 = vmatprep.subr.bf16.mxu0 0
        %2247 = vmatpush1.bf16.msra.mxu0 0
        %2248 = vmatprep.subr.bf16.mxu0 0
        %2249 = vmatpush1.bf16.msra.mxu0 0
        %2250 = vmatprep.subr.bf16.mxu0 0
        %2251 = vmatpush1.bf16.msra.mxu0 0
        %2252 = vmatprep.subr.bf16.mxu0 0
        %2253 = vmatpush1.bf16.msra.mxu0 0
        %2254 = vmatprep.subr.bf16.mxu0 0
        %2255 = vmatpush1.bf16.msra.mxu0 0
        %2256 = vmatprep.mubr.bf16.mxu0 0
        %2257 = vmatmul.mubr.bf16.gmra.mrb[0].mxu0 %v2222
        %v2258 = vpop.f32.mrb[0].mxu0
        %v2259 = vadd.f32 0.0, %v2258
        %v2260 = vpop.f32.mrb[0].mxu0
        %v2261 = vpop.f32.mrb[0].mxu0
        %v2262 = vadd.f32 0.0, %v2261
        %v2263 = vpop.f32.mrb[0].mxu0
        %2264 = vdwg.mxu0
        %v2269 = vunpack.c.l.b16 %v2088
        %v2270 = vunpack.c.l.b16 %v2089
        %v2271 = vunpack.c.l.b16 %v2090
        %v2272 = vunpack.c.l.b16 %v2091
        %v2273 = vpack.c.b16 %v2270, %v2269
        %v2274 = vpack.c.b16 %v2272, %v2271
        %v2278 = vsel %vm1610, %v2096, 0
        %2280 = vmatprep.subr.bf16.mxu0 0
        %2281 = vmatpush1.bf16.msra.mxu0 %v2273
        %2282 = vmatprep.subr.bf16.mxu0 0
        %2283 = vmatpush1.bf16.msra.mxu0 %v2274
        %2284 = vmatprep.subr.bf16.mxu0 0
        %2285 = vmatpush1.bf16.msra.mxu0 0
        %2286 = vmatprep.subr.bf16.mxu0 0
        %2287 = vmatpush1.bf16.msra.mxu0 0
        %2288 = vmatprep.subr.bf16.mxu0 0
        %2289 = vmatpush1.bf16.msra.mxu0 0
        %2290 = vmatprep.subr.bf16.mxu0 0
        %2291 = vmatpush1.bf16.msra.mxu0 0
        %2292 = vmatprep.subr.bf16.mxu0 0
        %2293 = vmatpush1.bf16.msra.mxu0 0
        %2294 = vmatprep.subr.bf16.mxu0 0
        %2295 = vmatpush1.bf16.msra.mxu0 0
        %2296 = vmatprep.subr.bf16.mxu0 0
        %2297 = vmatpush1.bf16.msra.mxu0 0
        %2298 = vmatprep.subr.bf16.mxu0 0
        %2299 = vmatpush1.bf16.msra.mxu0 0
        %2300 = vmatprep.subr.bf16.mxu0 0
        %2301 = vmatpush1.bf16.msra.mxu0 0
        %2302 = vmatprep.subr.bf16.mxu0 0
        %2303 = vmatpush1.bf16.msra.mxu0 0
        %2304 = vmatprep.subr.bf16.mxu0 0
        %2305 = vmatpush1.bf16.msra.mxu0 0
        %2306 = vmatprep.subr.bf16.mxu0 0
        %2307 = vmatpush1.bf16.msra.mxu0 0
        %2308 = vmatprep.subr.bf16.mxu0 0
        %2309 = vmatpush1.bf16.msra.mxu0 0
        %2310 = vmatprep.subr.bf16.mxu0 0
        %2311 = vmatpush1.bf16.msra.mxu0 0
        %2312 = vmatprep.mubr.bf16.mxu0 0
        %2313 = vmatmul.mubr.bf16.gmra.mrb[0].mxu0 %v2278
        %v2314 = vpop.f32.mrb[0].mxu0
        %v2315 = vadd.f32 0.0, %v2314
        %v2316 = vpop.f32.mrb[0].mxu0
        %v2317 = vpop.f32.mrb[0].mxu0
        %v2318 = vadd.f32 0.0, %v2317
        %v2319 = vpop.f32.mrb[0].mxu0
        %2320 = vdwg.mxu0
        %v2321 = vadd.f32 %v2147, %v2203
        %v2322 = vadd.f32 %v2321, %v2259
        %v2323 = vadd.f32 %v2322, %v2315
        %v2324 = vadd.f32 %v2150, %v2206
        %v2325 = vadd.f32 %v2324, %v2262
        %v2326 = vadd.f32 %v2325, %v2318
        %v2328 = vlaneseq
        %v2329 = vshrl.u32 %v2328, 7
        %v2330 = vsub.s32 0, %v2329
        %v2331 = vrot.slane %v2092, %v2330
        %v2333 = vadd.f32 %v2323, %v2331
        %v2334 = vadd.f32 %v2326, %v2331
        %v2335 = vadd.f32 %v1316, %v2333
        %v2336 = vadd.f32 %v1317, %v2334
        %v2337 = vld [vmem:[%s1273] sm:$0x1]
        %v2338 = vld [vmem:[%s1276] sm:$0x1]
        %2339 = vadd.xlane.f32.xlu0 %v2335
        %v2340 = vpop.xlane.xlu0 %2339
        %2341 = vadd.xlane.f32.xlu0 %v2336
        %v2342 = vpop.xlane.xlu0 %2341
        %v2343 = vrcp.pop 128.0
        %v2344 = vmul.f32 %v2340, %v2343
        %v2345 = vmul.f32 %v2342, %v2343
        %v2346 = vsub.f32 %v2335, %v2344
        %v2347 = vsub.f32 %v2336, %v2345
        %v2348 = vmul.f32 %v2346, %v2346
        %v2349 = vmul.f32 %v2347, %v2347
        %2350 = vadd.xlane.f32.xlu0 %v2348
        %v2351 = vpop.xlane.xlu0 %2350
        %2352 = vadd.xlane.f32.xlu0 %v2349
        %v2353 = vpop.xlane.xlu0 %2352
        %v2354 = vmul.f32 %v2351, %v2343
        %v2355 = vmul.f32 %v2353, %v2343
        %v2356 = vadd.f32 %v2354, 1e-05
        %v2357 = vadd.f32 %v2355, 1e-05
        %v2358 = vrsqrt.pop %v2356
        %v2359 = vrsqrt.pop %v2357
        %v2360 = vmul.f32 %v2346, %v2358
        %v2361 = vmul.f32 %v2347, %v2359
        %v2363 = vlaneseq
        %v2364 = vshrl.u32 %v2363, 7
        %v2365 = vsub.s32 0, %v2364
        %v2366 = vrot.slane %v2337, %v2365
        %v2368 = vmul.f32 %v2360, %v2366
        %v2369 = vmul.f32 %v2361, %v2366
        %v2371 = vlaneseq
        %v2372 = vshrl.u32 %v2371, 7
        %v2373 = vsub.s32 0, %v2372
        %v2374 = vrot.slane %v2338, %v2373
        %v2376 = vadd.f32 %v2368, %v2374
        %v2377 = vadd.f32 %v2369, %v2374
        %v2378 = vpack.c.bf16 %v2377, %v2376
        %v2379 = vld [vmem:[%s1075] sm:$0xf]
        %v2380 = vld [vmem:[%s1075 + $0x4] sm:$0xf]
        %v2381 = vld [vmem:[%s1075 + $0x8] sm:$0xf]
        %v2382 = vld [vmem:[%s1075 + $0xc] sm:$0xf]
        %v2383 = vld [vmem:[%s1075 + $0x10] sm:$0xf]
        %v2384 = vld [vmem:[%s1075 + $0x14] sm:$0xf]
        %v2385 = vld [vmem:[%s1075 + $0x18] sm:$0xf]
        %v2386 = vld [vmem:[%s1075 + $0x1c] sm:$0xf]
        %v2387 = vld [vmem:[%s1075 + $0x20] sm:$0xf]
        %v2388 = vld [vmem:[%s1075 + $0x24] sm:$0xf]
        %v2389 = vld [vmem:[%s1075 + $0x28] sm:$0xf]
        %v2390 = vld [vmem:[%s1075 + $0x2c] sm:$0xf]
        %v2391 = vld [vmem:[%s1075 + $0x30] sm:$0xf]
        %v2392 = vld [vmem:[%s1075 + $0x34] sm:$0xf]
        %v2393 = vld [vmem:[%s1075 + $0x38] sm:$0xf]
        %v2394 = vld [vmem:[%s1075 + $0x3c] sm:$0xf]
        %v2395 = vld [vmem:[%s1279] sm:$0x1]
        %v2397 = vlaneseq
        %v2398 = vshrl.u32 %v2397, 7
        %v2399 = vsub.s32 0, %v2398
        %v2400 = vrot.slane %v2395, %v2399
        %v2418 = vunpack.c.l.b16 %v2379
        %v2419 = vunpack.c.l.b16 %v2380
        %v2420 = vunpack.c.l.b16 %v2381
        %v2421 = vunpack.c.l.b16 %v2382
        %v2422 = vunpack.c.l.b16 %v2383
        %v2423 = vunpack.c.l.b16 %v2384
        %v2424 = vunpack.c.l.b16 %v2385
        %v2425 = vunpack.c.l.b16 %v2386
        %v2426 = vunpack.c.l.b16 %v2387
        %v2427 = vunpack.c.l.b16 %v2388
        %v2428 = vunpack.c.l.b16 %v2389
        %v2429 = vunpack.c.l.b16 %v2390
        %v2430 = vunpack.c.l.b16 %v2391
        %v2431 = vunpack.c.l.b16 %v2392
        %v2432 = vunpack.c.l.b16 %v2393
        %v2433 = vunpack.c.l.b16 %v2394
        %v2434 = vpack.c.b16 %v2419, %v2418
        %v2435 = vpack.c.b16 %v2421, %v2420
        %v2436 = vpack.c.b16 %v2423, %v2422
        %v2437 = vpack.c.b16 %v2425, %v2424
        %v2438 = vpack.c.b16 %v2427, %v2426
        %v2439 = vpack.c.b16 %v2429, %v2428
        %v2440 = vpack.c.b16 %v2431, %v2430
        %v2441 = vpack.c.b16 %v2433, %v2432
        %2450 = vmatprep.subr.bf16.mxu0 0
        %2451 = vmatpush1.bf16.msra.mxu0 %v2434
        %2452 = vmatprep.subr.bf16.mxu0 0
        %2453 = vmatpush1.bf16.msra.mxu0 %v2435
        %2454 = vmatprep.subr.bf16.mxu0 0
        %2455 = vmatpush1.bf16.msra.mxu0 %v2436
        %2456 = vmatprep.subr.bf16.mxu0 0
        %2457 = vmatpush1.bf16.msra.mxu0 %v2437
        %2458 = vmatprep.subr.bf16.mxu0 0
        %2459 = vmatpush1.bf16.msra.mxu0 %v2438
        %2460 = vmatprep.subr.bf16.mxu0 0
        %2461 = vmatpush1.bf16.msra.mxu0 %v2439
        %2462 = vmatprep.subr.bf16.mxu0 0
        %2463 = vmatpush1.bf16.msra.mxu0 %v2440
        %2464 = vmatprep.subr.bf16.mxu0 0
        %2465 = vmatpush1.bf16.msra.mxu0 %v2441
        %2466 = vmatprep.subr.bf16.mxu0 0
        %2467 = vmatpush1.bf16.msra.mxu0 0
        %2468 = vmatprep.subr.bf16.mxu0 0
        %2469 = vmatpush1.bf16.msra.mxu0 0
        %2470 = vmatprep.subr.bf16.mxu0 0
        %2471 = vmatpush1.bf16.msra.mxu0 0
        %2472 = vmatprep.subr.bf16.mxu0 0
        %2473 = vmatpush1.bf16.msra.mxu0 0
        %2474 = vmatprep.subr.bf16.mxu0 0
        %2475 = vmatpush1.bf16.msra.mxu0 0
        %2476 = vmatprep.subr.bf16.mxu0 0
        %2477 = vmatpush1.bf16.msra.mxu0 0
        %2478 = vmatprep.subr.bf16.mxu0 0
        %2479 = vmatpush1.bf16.msra.mxu0 0
        %2480 = vmatprep.subr.bf16.mxu0 0
        %2481 = vmatpush1.bf16.msra.mxu0 0
        %2482 = vmatprep.mubr.bf16.mxu0 0
        %2483 = vmatmul.mubr.bf16.gmra.mrb[0].mxu0 %v2378
        %v2484 = vpop.f32.mrb[0].mxu0
        %v2485 = vadd.f32 %v2400, %v2484
        %v2486 = vpop.f32.mrb[0].mxu0
        %v2487 = vpop.f32.mrb[0].mxu0
        %v2488 = vadd.f32 %v2400, %v2487
        %v2489 = vpop.f32.mrb[0].mxu0
        %2490 = vdwg.mxu0
        %v2491 = vld [vmem:[%s1036] sm:$0xf]
        %v2492 = vld [vmem:[%s1036 + $0x4] sm:$0xf]
        %v2493 = vld [vmem:[%s1084] sm:$0xff]
        %v2494 = vld [vmem:[%s1084 + $0x8] sm:$0xff]
        %v2495 = vld [vmem:[%s1084 + $0x10] sm:$0xff]
        %v2496 = vld [vmem:[%s1084 + $0x18] sm:$0xff]
        %v2497 = vld [vmem:[%s1084 + $0x20] sm:$0xff]
        %v2498 = vld [vmem:[%s1084 + $0x28] sm:$0xff]
        %v2499 = vld [vmem:[%s1084 + $0x30] sm:$0xff]
        %v2500 = vld [vmem:[%s1084 + $0x38] sm:$0xff]
        %v2501 = vld [vmem:[%s1084 + $0x40] sm:$0xff]
        %v2502 = vld [vmem:[%s1084 + $0x48] sm:$0xff]
        %v2503 = vld [vmem:[%s1084 + $0x50] sm:$0xff]
        %v2504 = vld [vmem:[%s1084 + $0x58] sm:$0xff]
        %v2505 = vld [vmem:[%s1084 + $0x60] sm:$0xff]
        %v2506 = vld [vmem:[%s1084 + $0x68] sm:$0xff]
        %v2507 = vld [vmem:[%s1084 + $0x70] sm:$0xff]
        %v2508 = vld [vmem:[%s1084 + $0x78] sm:$0xff]
        %v2509 = vld [vmem:[%s1283] sm:$0x3]
        %v2511 = vlaneseq
        %v2512 = vshrl.u32 %v2511, 7
        %v2513 = vsub.s32 0, %v2512
        %v2514 = vrot.slane %v2509, %v2513
        %v2515 = vlaneseq
        %v2516 = vshrl.u32 %v2515, 7
        %v2517 = vsub.s32 1, %v2516
        %v2518 = vrot.slane %v2509, %v2517
        %v2523 = vunpack.c.l.b16 %v2491
        %v2524 = vunpack.c.l.b16 %v2492
        %v2525 = vpack.c.b16 %v2524, %v2523
        %v2543 = vunpack.c.l.b16 %v2493
        %v2544 = vunpack.c.h.b16 %v2493
        %v2545 = vunpack.c.l.b16 %v2494
        %v2546 = vunpack.c.h.b16 %v2494
        %v2547 = vunpack.c.l.b16 %v2495
        %v2548 = vunpack.c.h.b16 %v2495
        %v2549 = vunpack.c.l.b16 %v2496
        %v2550 = vunpack.c.h.b16 %v2496
        %v2551 = vunpack.c.l.b16 %v2497
        %v2552 = vunpack.c.h.b16 %v2497
        %v2553 = vunpack.c.l.b16 %v2498
        %v2554 = vunpack.c.h.b16 %v2498
        %v2555 = vunpack.c.l.b16 %v2499
        %v2556 = vunpack.c.h.b16 %v2499
        %v2557 = vunpack.c.l.b16 %v2500
        %v2558 = vunpack.c.h.b16 %v2500
        %v2559 = vunpack.c.l.b16 %v2501
        %v2560 = vunpack.c.h.b16 %v2501
        %v2561 = vunpack.c.l.b16 %v2502
        %v2562 = vunpack.c.h.b16 %v2502
        %v2563 = vunpack.c.l.b16 %v2503
        %v2564 = vunpack.c.h.b16 %v2503
        %v2565 = vunpack.c.l.b16 %v2504
        %v2566 = vunpack.c.h.b16 %v2504
        %v2567 = vunpack.c.l.b16 %v2505
        %v2568 = vunpack.c.h.b16 %v2505
        %v2569 = vunpack.c.l.b16 %v2506
        %v2570 = vunpack.c.h.b16 %v2506
        %v2571 = vunpack.c.l.b16 %v2507
        %v2572 = vunpack.c.h.b16 %v2507
        %v2573 = vunpack.c.l.b16 %v2508
        %v2574 = vunpack.c.h.b16 %v2508
        %v2575 = vpack.c.b16 %v2545, %v2543
        %v2576 = vpack.c.b16 %v2546, %v2544
        %v2577 = vpack.c.b16 %v2549, %v2547
        %v2578 = vpack.c.b16 %v2550, %v2548
        %v2579 = vpack.c.b16 %v2553, %v2551
        %v2580 = vpack.c.b16 %v2554, %v2552
        %v2581 = vpack.c.b16 %v2557, %v2555
        %v2582 = vpack.c.b16 %v2558, %v2556
        %v2583 = vpack.c.b16 %v2561, %v2559
        %v2584 = vpack.c.b16 %v2562, %v2560
        %v2585 = vpack.c.b16 %v2565, %v2563
        %v2586 = vpack.c.b16 %v2566, %v2564
        %v2587 = vpack.c.b16 %v2569, %v2567
        %v2588 = vpack.c.b16 %v2570, %v2568
        %v2589 = vpack.c.b16 %v2573, %v2571
        %v2590 = vpack.c.b16 %v2574, %v2572
        %2607 = vmatprep.subr.bf16.mxu0 %v2576
        %2608 = vmatpush1.bf16.msra.mxu0 %v2575
        %2609 = vmatprep.subr.bf16.mxu0 %v2578
        %2610 = vmatpush1.bf16.msra.mxu0 %v2577
        %2611 = vmatprep.subr.bf16.mxu0 %v2580
        %2612 = vmatpush1.bf16.msra.mxu0 %v2579
        %2613 = vmatprep.subr.bf16.mxu0 %v2582
        %2614 = vmatpush1.bf16.msra.mxu0 %v2581
        %2615 = vmatprep.subr.bf16.mxu0 %v2584
        %2616 = vmatpush1.bf16.msra.mxu0 %v2583
        %2617 = vmatprep.subr.bf16.mxu0 %v2586
        %2618 = vmatpush1.bf16.msra.mxu0 %v2585
        %2619 = vmatprep.subr.bf16.mxu0 %v2588
        %2620 = vmatpush1.bf16.msra.mxu0 %v2587
        %2621 = vmatprep.subr.bf16.mxu0 %v2590
        %2622 = vmatpush1.bf16.msra.mxu0 %v2589
        %2623 = vmatprep.subr.bf16.mxu0 0
        %2624 = vmatpush1.bf16.msra.mxu0 0
        %2625 = vmatprep.subr.bf16.mxu0 0
        %2626 = vmatpush1.bf16.msra.mxu0 0
        %2627 = vmatprep.subr.bf16.mxu0 0
        %2628 = vmatpush1.bf16.msra.mxu0 0
        %2629 = vmatprep.subr.bf16.mxu0 0
        %2630 = vmatpush1.bf16.msra.mxu0 0
        %2631 = vmatprep.subr.bf16.mxu0 0
        %2632 = vmatpush1.bf16.msra.mxu0 0
        %2633 = vmatprep.subr.bf16.mxu0 0
        %2634 = vmatpush1.bf16.msra.mxu0 0
        %2635 = vmatprep.subr.bf16.mxu0 0
        %2636 = vmatpush1.bf16.msra.mxu0 0
        %2637 = vmatprep.subr.bf16.mxu0 0
        %2638 = vmatpush1.bf16.msra.mxu0 0
        %2639 = vmatprep.mubr.bf16.mxu0 0
        %2640 = vmatmul.mubr.bf16.gmra.mrb[0].mxu0 %v2525
        %v2641 = vpop.f32.mrb[0].mxu0
        %v2642 = vadd.f32 %v2514, %v2641
        %v2643 = vpop.f32.mrb[0].mxu0
        %v2644 = vadd.f32 %v2518, %v2643
        %v2645 = vpop.f32.mrb[0].mxu0
        %v2646 = vadd.f32 %v2514, %v2645
        %v2647 = vpop.f32.mrb[0].mxu0
        %v2648 = vadd.f32 %v2518, %v2647
        %2649 = vdwg.mxu0
        %v2650 = vpack.c.bf16 %v2646, %v2642
        %v2651 = vpack.c.bf16 %v2648, %v2644
        %v2652 = vpack.c.bf16 %v2488, %v2485
        %2654 = vrot.lane.b32.xlu0 %v2652, 96
        %v2655 = vpop.permute.xlu0 %2654
        %2656 = vrot.lane.b32.xlu0 %v2652, 64
        %v2657 = vpop.permute.xlu0 %2656
        %2658 = vrot.lane.b32.xlu0 %v2652, 32
        %v2659 = vpop.permute.xlu0 %2658
        %2661 = vrot.lane.b32.xlu0 %v2650, 96
        %v2662 = vpop.permute.xlu0 %2661
        %2663 = vrot.lane.b32.xlu0 %v2650, 64
        %v2664 = vpop.permute.xlu0 %2663
        %2665 = vrot.lane.b32.xlu0 %v2650, 32
        %v2666 = vpop.permute.xlu0 %2665
        %2668 = vrot.lane.b32.xlu0 %v2651, 96
        %v2669 = vpop.permute.xlu0 %2668
        %2671 = vrot.lane.b32.xlu0 %v2651, 64
        %v2672 = vpop.permute.xlu0 %2671
        %2674 = vrot.lane.b32.xlu0 %v2651, 32
        %v2675 = vpop.permute.xlu0 %2674
        %v2678 = vsel %vm1610, %v2652, 0
        %v2681 = vsel %vm1610, %v2650, 0
        %2683 = vmatprep.subr.bf16.mxu0 0
        %2684 = vmatpush1.bf16.xpose.msra.mxu0 %v2681
        %2685 = vmatprep.subr.bf16.mxu0 0
        %2686 = vmatpush1.bf16.xpose.msra.mxu0 0
        %2687 = vmatprep.subr.bf16.mxu0 0
        %2688 = vmatpush1.bf16.xpose.msra.mxu0 0
        %2689 = vmatprep.subr.bf16.mxu0 0
        %2690 = vmatpush1.bf16.xpose.msra.mxu0 0
        %2691 = vmatprep.subr.bf16.mxu0 0
        %2692 = vmatpush1.bf16.xpose.msra.mxu0 0
        %2693 = vmatprep.subr.bf16.mxu0 0
        %2694 = vmatpush1.bf16.xpose.msra.mxu0 0
        %2695 = vmatprep.subr.bf16.mxu0 0
        %2696 = vmatpush1.bf16.xpose.msra.mxu0 0
        %2697 = vmatprep.subr.bf16.mxu0 0
        %2698 = vmatpush1.bf16.xpose.msra.mxu0 0
        %2699 = vmatprep.subr.bf16.mxu0 0
        %2700 = vmatpush1.bf16.xpose.msra.mxu0 0
        %2701 = vmatprep.subr.bf16.mxu0 0
        %2702 = vmatpush1.bf16.xpose.msra.mxu0 0
        %2703 = vmatprep.subr.bf16.mxu0 0
        %2704 = vmatpush1.bf16.xpose.msra.mxu0 0
        %2705 = vmatprep.subr.bf16.mxu0 0
        %2706 = vmatpush1.bf16.xpose.msra.mxu0 0
        %2707 = vmatprep.subr.bf16.mxu0 0
        %2708 = vmatpush1.bf16.xpose.msra.mxu0 0
        %2709 = vmatprep.subr.bf16.mxu0 0
        %2710 = vmatpush1.bf16.xpose.msra.mxu0 0
        %2711 = vmatprep.subr.bf16.mxu0 0
        %2712 = vmatpush1.bf16.xpose.msra.mxu0 0
        %2713 = vmatprep.subr.bf16.mxu0 0
        %2714 = vmatpush1.bf16.xpose.msra.mxu0 0
        %2715 = vmatprep.mubr.bf16.mxu0 0
        %2716 = vmatmul.mubr.bf16.gmra.mrb[0].mxu0 %v2678
        %v2717 = vpop.f32.mrb[0].mxu0
        %v2718 = vadd.f32 0.0, %v2717
        %v2719 = vpop.f32.mrb[0].mxu0
        %v2720 = vpop.f32.mrb[0].mxu0
        %v2721 = vadd.f32 0.0, %v2720
        %v2722 = vpop.f32.mrb[0].mxu0
        %2723 = vdwg.mxu0
        %v2725 = vsel %vm1610, %v2655, 0
        %v2728 = vsel %vm1610, %v2662, 0
        %2730 = vmatprep.subr.bf16.mxu0 0
        %2731 = vmatpush1.bf16.xpose.msra.mxu0 %v2728
        %2732 = vmatprep.subr.bf16.mxu0 0
        %2733 = vmatpush1.bf16.xpose.msra.mxu0 0
        %2734 = vmatprep.subr.bf16.mxu0 0
        %2735 = vmatpush1.bf16.xpose.msra.mxu0 0
        %2736 = vmatprep.subr.bf16.mxu0 0
        %2737 = vmatpush1.bf16.xpose.msra.mxu0 0
        %2738 = vmatprep.subr.bf16.mxu0 0
        %2739 = vmatpush1.bf16.xpose.msra.mxu0 0
        %2740 = vmatprep.subr.bf16.mxu0 0
        %2741 = vmatpush1.bf16.xpose.msra.mxu0 0
        %2742 = vmatprep.subr.bf16.mxu0 0
        %2743 = vmatpush1.bf16.xpose.msra.mxu0 0
        %2744 = vmatprep.subr.bf16.mxu0 0
        %2745 = vmatpush1.bf16.xpose.msra.mxu0 0
        %2746 = vmatprep.subr.bf16.mxu0 0
        %2747 = vmatpush1.bf16.xpose.msra.mxu0 0
        %2748 = vmatprep.subr.bf16.mxu0 0
        %2749 = vmatpush1.bf16.xpose.msra.mxu0 0
        %2750 = vmatprep.subr.bf16.mxu0 0
        %2751 = vmatpush1.bf16.xpose.msra.mxu0 0
        %2752 = vmatprep.subr.bf16.mxu0 0
        %2753 = vmatpush1.bf16.xpose.msra.mxu0 0
        %2754 = vmatprep.subr.bf16.mxu0 0
        %2755 = vmatpush1.bf16.xpose.msra.mxu0 0
        %2756 = vmatprep.subr.bf16.mxu0 0
        %2757 = vmatpush1.bf16.xpose.msra.mxu0 0
        %2758 = vmatprep.subr.bf16.mxu0 0
        %2759 = vmatpush1.bf16.xpose.msra.mxu0 0
        %2760 = vmatprep.subr.bf16.mxu0 0
        %2761 = vmatpush1.bf16.xpose.msra.mxu0 0
        %2762 = vmatprep.mubr.bf16.mxu0 0
        %2763 = vmatmul.mubr.bf16.gmra.mrb[0].mxu0 %v2725
        %v2764 = vpop.f32.mrb[0].mxu0
        %v2765 = vadd.f32 0.0, %v2764
        %v2766 = vpop.f32.mrb[0].mxu0
        %v2767 = vpop.f32.mrb[0].mxu0
        %v2768 = vadd.f32 0.0, %v2767
        %v2769 = vpop.f32.mrb[0].mxu0
        %2770 = vdwg.mxu0
        %v2772 = vsel %vm1610, %v2657, 0
        %v2775 = vsel %vm1610, %v2664, 0
        %2777 = vmatprep.subr.bf16.mxu0 0
        %2778 = vmatpush1.bf16.xpose.msra.mxu0 %v2775
        %2779 = vmatprep.subr.bf16.mxu0 0
        %2780 = vmatpush1.bf16.xpose.msra.mxu0 0
        %2781 = vmatprep.subr.bf16.mxu0 0
        %2782 = vmatpush1.bf16.xpose.msra.mxu0 0
        %2783 = vmatprep.subr.bf16.mxu0 0
        %2784 = vmatpush1.bf16.xpose.msra.mxu0 0
        %2785 = vmatprep.subr.bf16.mxu0 0
        %2786 = vmatpush1.bf16.xpose.msra.mxu0 0
        %2787 = vmatprep.subr.bf16.mxu0 0
        %2788 = vmatpush1.bf16.xpose.msra.mxu0 0
        %2789 = vmatprep.subr.bf16.mxu0 0
        %2790 = vmatpush1.bf16.xpose.msra.mxu0 0
        %2791 = vmatprep.subr.bf16.mxu0 0
        %2792 = vmatpush1.bf16.xpose.msra.mxu0 0
        %2793 = vmatprep.subr.bf16.mxu0 0
        %2794 = vmatpush1.bf16.xpose.msra.mxu0 0
        %2795 = vmatprep.subr.bf16.mxu0 0
        %2796 = vmatpush1.bf16.xpose.msra.mxu0 0
        %2797 = vmatprep.subr.bf16.mxu0 0
        %2798 = vmatpush1.bf16.xpose.msra.mxu0 0
        %2799 = vmatprep.subr.bf16.mxu0 0
        %2800 = vmatpush1.bf16.xpose.msra.mxu0 0
        %2801 = vmatprep.subr.bf16.mxu0 0
        %2802 = vmatpush1.bf16.xpose.msra.mxu0 0
        %2803 = vmatprep.subr.bf16.mxu0 0
        %2804 = vmatpush1.bf16.xpose.msra.mxu0 0
        %2805 = vmatprep.subr.bf16.mxu0 0
        %2806 = vmatpush1.bf16.xpose.msra.mxu0 0
        %2807 = vmatprep.subr.bf16.mxu0 0
        %2808 = vmatpush1.bf16.xpose.msra.mxu0 0
        %2809 = vmatprep.mubr.bf16.mxu0 0
        %2810 = vmatmul.mubr.bf16.gmra.mrb[0].mxu0 %v2772
        %v2811 = vpop.f32.mrb[0].mxu0
        %v2812 = vadd.f32 0.0, %v2811
        %v2813 = vpop.f32.mrb[0].mxu0
        %v2814 = vpop.f32.mrb[0].mxu0
        %v2815 = vadd.f32 0.0, %v2814
        %v2816 = vpop.f32.mrb[0].mxu0
        %2817 = vdwg.mxu0
        %v2819 = vsel %vm1610, %v2659, 0
        %v2822 = vsel %vm1610, %v2666, 0
        %2824 = vmatprep.subr.bf16.mxu0 0
        %2825 = vmatpush1.bf16.xpose.msra.mxu0 %v2822
        %2826 = vmatprep.subr.bf16.mxu0 0
        %2827 = vmatpush1.bf16.xpose.msra.mxu0 0
        %2828 = vmatprep.subr.bf16.mxu0 0
        %2829 = vmatpush1.bf16.xpose.msra.mxu0 0
        %2830 = vmatprep.subr.bf16.mxu0 0
        %2831 = vmatpush1.bf16.xpose.msra.mxu0 0
        %2832 = vmatprep.subr.bf16.mxu0 0
        %2833 = vmatpush1.bf16.xpose.msra.mxu0 0
        %2834 = vmatprep.subr.bf16.mxu0 0
        %2835 = vmatpush1.bf16.xpose.msra.mxu0 0
        %2836 = vmatprep.subr.bf16.mxu0 0
        %2837 = vmatpush1.bf16.xpose.msra.mxu0 0
        %2838 = vmatprep.subr.bf16.mxu0 0
        %2839 = vmatpush1.bf16.xpose.msra.mxu0 0
        %2840 = vmatprep.subr.bf16.mxu0 0
        %2841 = vmatpush1.bf16.xpose.msra.mxu0 0
        %2842 = vmatprep.subr.bf16.mxu0 0
        %2843 = vmatpush1.bf16.xpose.msra.mxu0 0
        %2844 = vmatprep.subr.bf16.mxu0 0
        %2845 = vmatpush1.bf16.xpose.msra.mxu0 0
        %2846 = vmatprep.subr.bf16.mxu0 0
        %2847 = vmatpush1.bf16.xpose.msra.mxu0 0
        %2848 = vmatprep.subr.bf16.mxu0 0
        %2849 = vmatpush1.bf16.xpose.msra.mxu0 0
        %2850 = vmatprep.subr.bf16.mxu0 0
        %2851 = vmatpush1.bf16.xpose.msra.mxu0 0
        %2852 = vmatprep.subr.bf16.mxu0 0
        %2853 = vmatpush1.bf16.xpose.msra.mxu0 0
        %2854 = vmatprep.subr.bf16.mxu0 0
        %2855 = vmatpush1.bf16.xpose.msra.mxu0 0
        %2856 = vmatprep.mubr.bf16.mxu0 0
        %2857 = vmatmul.mubr.bf16.gmra.mrb[0].mxu0 %v2819
        %v2858 = vpop.f32.mrb[0].mxu0
        %v2859 = vadd.f32 0.0, %v2858
        %v2860 = vpop.f32.mrb[0].mxu0
        %v2861 = vpop.f32.mrb[0].mxu0
        %v2862 = vadd.f32 0.0, %v2861
        %v2863 = vpop.f32.mrb[0].mxu0
        %2864 = vdwg.mxu0
        %v2866 = vlaneseq
        %v2867 = vshrl.u32 %v2866, 7
        %v2868 = vsub.s32 0, %v2867
        %v2869 = vrot.slane %v1320, %v2868
        %v2871 = vadd.f32 %v2718, %v2869
        %v2872 = vadd.f32 %v2721, %v2869
        %v2873 = vadd.f32 %v2765, %v2869
        %v2874 = vadd.f32 %v2768, %v2869
        %v2875 = vadd.f32 %v2812, %v2869
        %v2876 = vadd.f32 %v2815, %v2869
        %v2877 = vadd.f32 %v2859, %v2869
        %v2878 = vadd.f32 %v2862, %v2869
        %v2879 = vsel %vm1807, %v2871, -inf
        %2880 = vmax.xlane.f32.xlu0 %v2879
        %v2881 = vpop.xlane.xlu0 %2880
        %v2882 = vsel %vm1807, %v2872, -inf
        %2883 = vmax.xlane.f32.xlu0 %v2882
        %v2884 = vpop.xlane.xlu0 %2883
        %v2885 = vsel %vm1807, %v2873, -inf
        %2886 = vmax.xlane.f32.xlu0 %v2885
        %v2887 = vpop.xlane.xlu0 %2886
        %v2888 = vsel %vm1807, %v2874, -inf
        %2889 = vmax.xlane.f32.xlu0 %v2888
        %v2890 = vpop.xlane.xlu0 %2889
        %v2891 = vsel %vm1807, %v2875, -inf
        %2892 = vmax.xlane.f32.xlu0 %v2891
        %v2893 = vpop.xlane.xlu0 %2892
        %v2894 = vsel %vm1807, %v2876, -inf
        %2895 = vmax.xlane.f32.xlu0 %v2894
        %v2896 = vpop.xlane.xlu0 %2895
        %v2897 = vsel %vm1807, %v2877, -inf
        %2898 = vmax.xlane.f32.xlu0 %v2897
        %v2899 = vpop.xlane.xlu0 %2898
        %v2900 = vsel %vm1807, %v2878, -inf
        %2901 = vmax.xlane.f32.xlu0 %v2900
        %v2902 = vpop.xlane.xlu0 %2901
        %v2903 = vsub.f32 %v2871, %v2881
        %v2904 = vsub.f32 %v2872, %v2884
        %v2905 = vsub.f32 %v2873, %v2887
        %v2906 = vsub.f32 %v2874, %v2890
        %v2907 = vsub.f32 %v2875, %v2893
        %v2908 = vsub.f32 %v2876, %v2896
        %v2909 = vsub.f32 %v2877, %v2899
        %v2910 = vsub.f32 %v2878, %v2902
        %v2911 = vmul.f32 %v2903, 1.442695
        %v2912 = vpow.pop %v2911
        %v2913 = vmul.f32 %v2904, 1.442695
        %v2914 = vpow.pop %v2913
        %v2915 = vmul.f32 %v2905, 1.442695
        %v2916 = vpow.pop %v2915
        %v2917 = vmul.f32 %v2906, 1.442695
        %v2918 = vpow.pop %v2917
        %v2919 = vmul.f32 %v2907, 1.442695
        %v2920 = vpow.pop %v2919
        %v2921 = vmul.f32 %v2908, 1.442695
        %v2922 = vpow.pop %v2921
        %v2923 = vmul.f32 %v2909, 1.442695
        %v2924 = vpow.pop %v2923
        %v2925 = vmul.f32 %v2910, 1.442695
        %v2926 = vpow.pop %v2925
        %v2927 = vsel %vm1807, %v2912, 0.0
        %2928 = vadd.xlane.f32.xlu0 %v2927
        %v2929 = vpop.xlane.xlu0 %2928
        %v2930 = vsel %vm1807, %v2914, 0.0
        %2931 = vadd.xlane.f32.xlu0 %v2930
        %v2932 = vpop.xlane.xlu0 %2931
        %v2933 = vsel %vm1807, %v2916, 0.0
        %2934 = vadd.xlane.f32.xlu0 %v2933
        %v2935 = vpop.xlane.xlu0 %2934
        %v2936 = vsel %vm1807, %v2918, 0.0
        %2937 = vadd.xlane.f32.xlu0 %v2936
        %v2938 = vpop.xlane.xlu0 %2937
        %v2939 = vsel %vm1807, %v2920, 0.0
        %2940 = vadd.xlane.f32.xlu0 %v2939
        %v2941 = vpop.xlane.xlu0 %2940
        %v2942 = vsel %vm1807, %v2922, 0.0
        %2943 = vadd.xlane.f32.xlu0 %v2942
        %v2944 = vpop.xlane.xlu0 %2943
        %v2945 = vsel %vm1807, %v2924, 0.0
        %2946 = vadd.xlane.f32.xlu0 %v2945
        %v2947 = vpop.xlane.xlu0 %2946
        %v2948 = vsel %vm1807, %v2926, 0.0
        %2949 = vadd.xlane.f32.xlu0 %v2948
        %v2950 = vpop.xlane.xlu0 %2949
        %v2951 = vrcp.pop %v2929
        %v2952 = vrcp.pop %v2932
        %v2953 = vrcp.pop %v2935
        %v2954 = vrcp.pop %v2938
        %v2955 = vrcp.pop %v2941
        %v2956 = vrcp.pop %v2944
        %v2957 = vrcp.pop %v2947
        %v2958 = vrcp.pop %v2950
        %v2959 = vmul.f32 %v2912, %v2951
        %v2960 = vmul.f32 %v2914, %v2952
        %v2961 = vmul.f32 %v2916, %v2953
        %v2962 = vmul.f32 %v2918, %v2954
        %v2963 = vmul.f32 %v2920, %v2955
        %v2964 = vmul.f32 %v2922, %v2956
        %v2965 = vmul.f32 %v2924, %v2957
        %v2966 = vmul.f32 %v2926, %v2958
        %v2967 = vpack.c.bf16 %v2960, %v2959
        %v2968 = vpack.c.bf16 %v2962, %v2961
        %v2969 = vpack.c.bf16 %v2964, %v2963
        %v2970 = vpack.c.bf16 %v2966, %v2965
        %v2972 = vsel %vm1807, %v2967, 0
        %2974 = vmatprep.subr.bf16.mxu0 0
        %2975 = vmatpush1.bf16.msra.mxu0 %v2651
        %2976 = vmatprep.subr.bf16.mxu0 0
        %2977 = vmatpush1.bf16.msra.mxu0 0
        %2978 = vmatprep.subr.bf16.mxu0 0
        %2979 = vmatpush1.bf16.msra.mxu0 0
        %2980 = vmatprep.subr.bf16.mxu0 0
        %2981 = vmatpush1.bf16.msra.mxu0 0
        %2982 = vmatprep.subr.bf16.mxu0 0
        %2983 = vmatpush1.bf16.msra.mxu0 0
        %2984 = vmatprep.subr.bf16.mxu0 0
        %2985 = vmatpush1.bf16.msra.mxu0 0
        %2986 = vmatprep.subr.bf16.mxu0 0
        %2987 = vmatpush1.bf16.msra.mxu0 0
        %2988 = vmatprep.subr.bf16.mxu0 0
        %2989 = vmatpush1.bf16.msra.mxu0 0
        %2990 = vmatprep.subr.bf16.mxu0 0
        %2991 = vmatpush1.bf16.msra.mxu0 0
        %2992 = vmatprep.subr.bf16.mxu0 0
        %2993 = vmatpush1.bf16.msra.mxu0 0
        %2994 = vmatprep.subr.bf16.mxu0 0
        %2995 = vmatpush1.bf16.msra.mxu0 0
        %2996 = vmatprep.subr.bf16.mxu0 0
        %2997 = vmatpush1.bf16.msra.mxu0 0
        %2998 = vmatprep.subr.bf16.mxu0 0
        %2999 = vmatpush1.bf16.msra.mxu0 0
        %3000 = vmatprep.subr.bf16.mxu0 0
        %3001 = vmatpush1.bf16.msra.mxu0 0
        %3002 = vmatprep.subr.bf16.mxu0 0
        %3003 = vmatpush1.bf16.msra.mxu0 0
        %3004 = vmatprep.subr.bf16.mxu0 0
        %3005 = vmatpush1.bf16.msra.mxu0 0
        %3006 = vmatprep.mubr.bf16.mxu0 0
        %3007 = vmatmul.mubr.bf16.gmra.mrb[0].mxu0 %v2972
        %v3008 = vpop.f32.mrb[0].mxu0
        %v3009 = vadd.f32 0.0, %v3008
        %v3010 = vpop.f32.mrb[0].mxu0
        %v3011 = vpop.f32.mrb[0].mxu0
        %v3012 = vadd.f32 0.0, %v3011
        %v3013 = vpop.f32.mrb[0].mxu0
        %3014 = vdwg.mxu0
        %v3016 = vsel %vm1807, %v2968, 0
        %3018 = vmatprep.subr.bf16.mxu0 0
        %3019 = vmatpush1.bf16.msra.mxu0 %v2669
        %3020 = vmatprep.subr.bf16.mxu0 0
        %3021 = vmatpush1.bf16.msra.mxu0 0
        %3022 = vmatprep.subr.bf16.mxu0 0
        %3023 = vmatpush1.bf16.msra.mxu0 0
        %3024 = vmatprep.subr.bf16.mxu0 0
        %3025 = vmatpush1.bf16.msra.mxu0 0
        %3026 = vmatprep.subr.bf16.mxu0 0
        %3027 = vmatpush1.bf16.msra.mxu0 0
        %3028 = vmatprep.subr.bf16.mxu0 0
        %3029 = vmatpush1.bf16.msra.mxu0 0
        %3030 = vmatprep.subr.bf16.mxu0 0
        %3031 = vmatpush1.bf16.msra.mxu0 0
        %3032 = vmatprep.subr.bf16.mxu0 0
        %3033 = vmatpush1.bf16.msra.mxu0 0
        %3034 = vmatprep.subr.bf16.mxu0 0
        %3035 = vmatpush1.bf16.msra.mxu0 0
        %3036 = vmatprep.subr.bf16.mxu0 0
        %3037 = vmatpush1.bf16.msra.mxu0 0
        %3038 = vmatprep.subr.bf16.mxu0 0
        %3039 = vmatpush1.bf16.msra.mxu0 0
        %3040 = vmatprep.subr.bf16.mxu0 0
        %3041 = vmatpush1.bf16.msra.mxu0 0
        %3042 = vmatprep.subr.bf16.mxu0 0
        %3043 = vmatpush1.bf16.msra.mxu0 0
        %3044 = vmatprep.subr.bf16.mxu0 0
        %3045 = vmatpush1.bf16.msra.mxu0 0
        %3046 = vmatprep.subr.bf16.mxu0 0
        %3047 = vmatpush1.bf16.msra.mxu0 0
        %3048 = vmatprep.subr.bf16.mxu0 0
        %3049 = vmatpush1.bf16.msra.mxu0 0
        %3050 = vmatprep.mubr.bf16.mxu0 0
        %3051 = vmatmul.mubr.bf16.gmra.mrb[0].mxu0 %v3016
        %v3052 = vpop.f32.mrb[0].mxu0
        %v3053 = vadd.f32 0.0, %v3052
        %v3054 = vpop.f32.mrb[0].mxu0
        %v3055 = vpop.f32.mrb[0].mxu0
        %v3056 = vadd.f32 0.0, %v3055
        %v3057 = vpop.f32.mrb[0].mxu0
        %3058 = vdwg.mxu0
        %v3060 = vsel %vm1807, %v2969, 0
        %3062 = vmatprep.subr.bf16.mxu0 0
        %3063 = vmatpush1.bf16.msra.mxu0 %v2672
        %3064 = vmatprep.subr.bf16.mxu0 0
        %3065 = vmatpush1.bf16.msra.mxu0 0
        %3066 = vmatprep.subr.bf16.mxu0 0
        %3067 = vmatpush1.bf16.msra.mxu0 0
        %3068 = vmatprep.subr.bf16.mxu0 0
        %3069 = vmatpush1.bf16.msra.mxu0 0
        %3070 = vmatprep.subr.bf16.mxu0 0
        %3071 = vmatpush1.bf16.msra.mxu0 0
        %3072 = vmatprep.subr.bf16.mxu0 0
        %3073 = vmatpush1.bf16.msra.mxu0 0
        %3074 = vmatprep.subr.bf16.mxu0 0
        %3075 = vmatpush1.bf16.msra.mxu0 0
        %3076 = vmatprep.subr.bf16.mxu0 0
        %3077 = vmatpush1.bf16.msra.mxu0 0
        %3078 = vmatprep.subr.bf16.mxu0 0
        %3079 = vmatpush1.bf16.msra.mxu0 0
        %3080 = vmatprep.subr.bf16.mxu0 0
        %3081 = vmatpush1.bf16.msra.mxu0 0
        %3082 = vmatprep.subr.bf16.mxu0 0
        %3083 = vmatpush1.bf16.msra.mxu0 0
        %3084 = vmatprep.subr.bf16.mxu0 0
        %3085 = vmatpush1.bf16.msra.mxu0 0
        %3086 = vmatprep.subr.bf16.mxu0 0
        %3087 = vmatpush1.bf16.msra.mxu0 0
        %3088 = vmatprep.subr.bf16.mxu0 0
        %3089 = vmatpush1.bf16.msra.mxu0 0
        %3090 = vmatprep.subr.bf16.mxu0 0
        %3091 = vmatpush1.bf16.msra.mxu0 0
        %3092 = vmatprep.subr.bf16.mxu0 0
        %3093 = vmatpush1.bf16.msra.mxu0 0
        %3094 = vmatprep.mubr.bf16.mxu0 0
        %3095 = vmatmul.mubr.bf16.gmra.mrb[0].mxu0 %v3060
        %v3096 = vpop.f32.mrb[0].mxu0
        %v3097 = vadd.f32 0.0, %v3096
        %v3098 = vpop.f32.mrb[0].mxu0
        %v3099 = vpop.f32.mrb[0].mxu0
        %v3100 = vadd.f32 0.0, %v3099
        %v3101 = vpop.f32.mrb[0].mxu0
        %3102 = vdwg.mxu0
        %v3104 = vsel %vm1807, %v2970, 0
        %3106 = vmatprep.subr.bf16.mxu0 0
        %3107 = vmatpush1.bf16.msra.mxu0 %v2675
        %3108 = vmatprep.subr.bf16.mxu0 0
        %3109 = vmatpush1.bf16.msra.mxu0 0
        %3110 = vmatprep.subr.bf16.mxu0 0
        %3111 = vmatpush1.bf16.msra.mxu0 0
        %3112 = vmatprep.subr.bf16.mxu0 0
        %3113 = vmatpush1.bf16.msra.mxu0 0
        %3114 = vmatprep.subr.bf16.mxu0 0
        %3115 = vmatpush1.bf16.msra.mxu0 0
        %3116 = vmatprep.subr.bf16.mxu0 0
        %3117 = vmatpush1.bf16.msra.mxu0 0
        %3118 = vmatprep.subr.bf16.mxu0 0
        %3119 = vmatpush1.bf16.msra.mxu0 0
        %3120 = vmatprep.subr.bf16.mxu0 0
        %3121 = vmatpush1.bf16.msra.mxu0 0
        %3122 = vmatprep.subr.bf16.mxu0 0
        %3123 = vmatpush1.bf16.msra.mxu0 0
        %3124 = vmatprep.subr.bf16.mxu0 0
        %3125 = vmatpush1.bf16.msra.mxu0 0
        %3126 = vmatprep.subr.bf16.mxu0 0
        %3127 = vmatpush1.bf16.msra.mxu0 0
        %3128 = vmatprep.subr.bf16.mxu0 0
        %3129 = vmatpush1.bf16.msra.mxu0 0
        %3130 = vmatprep.subr.bf16.mxu0 0
        %3131 = vmatpush1.bf16.msra.mxu0 0
        %3132 = vmatprep.subr.bf16.mxu0 0
        %3133 = vmatpush1.bf16.msra.mxu0 0
        %3134 = vmatprep.subr.bf16.mxu0 0
        %3135 = vmatpush1.bf16.msra.mxu0 0
        %3136 = vmatprep.subr.bf16.mxu0 0
        %3137 = vmatpush1.bf16.msra.mxu0 0
        %3138 = vmatprep.mubr.bf16.mxu0 0
        %3139 = vmatmul.mubr.bf16.gmra.mrb[0].mxu0 %v3104
        %v3140 = vpop.f32.mrb[0].mxu0
        %v3141 = vadd.f32 0.0, %v3140
        %v3142 = vpop.f32.mrb[0].mxu0
        %v3143 = vpop.f32.mrb[0].mxu0
        %v3144 = vadd.f32 0.0, %v3143
        %v3145 = vpop.f32.mrb[0].mxu0
        %3146 = vdwg.mxu0
        %v3147 = vld [vmem:[%s1093] sm:$0xf]
        %v3148 = vld [vmem:[%s1093 + $0x4] sm:$0xf]
        %v3149 = vld [vmem:[%s1093 + $0x8] sm:$0xf]
        %v3150 = vld [vmem:[%s1093 + $0xc] sm:$0xf]
        %v3151 = vld [vmem:[%s1093 + $0x10] sm:$0xf]
        %v3152 = vld [vmem:[%s1093 + $0x14] sm:$0xf]
        %v3153 = vld [vmem:[%s1093 + $0x18] sm:$0xf]
        %v3154 = vld [vmem:[%s1093 + $0x1c] sm:$0xf]
        %v3155 = vld [vmem:[%s1093 + $0x20] sm:$0xf]
        %v3156 = vld [vmem:[%s1093 + $0x24] sm:$0xf]
        %v3157 = vld [vmem:[%s1093 + $0x28] sm:$0xf]
        %v3158 = vld [vmem:[%s1093 + $0x2c] sm:$0xf]
        %v3159 = vld [vmem:[%s1093 + $0x30] sm:$0xf]
        %v3160 = vld [vmem:[%s1093 + $0x34] sm:$0xf]
        %v3161 = vld [vmem:[%s1093 + $0x38] sm:$0xf]
        %v3162 = vld [vmem:[%s1093 + $0x3c] sm:$0xf]
        %v3163 = vld [vmem:[%s1286] sm:$0x1]
        %v3164 = vpack.c.bf16 %v3012, %v3009
        %v3165 = vpack.c.bf16 %v3056, %v3053
        %v3166 = vpack.c.bf16 %v3100, %v3097
        %v3167 = vpack.c.bf16 %v3144, %v3141
        %v3172 = vunpack.c.l.b16 %v3147
        %v3173 = vunpack.c.l.b16 %v3148
        %v3174 = vunpack.c.l.b16 %v3149
        %v3175 = vunpack.c.l.b16 %v3150
        %v3176 = vpack.c.b16 %v3173, %v3172
        %v3177 = vpack.c.b16 %v3175, %v3174
        %v3181 = vsel %vm1610, %v3164, 0
        %3183 = vmatprep.subr.bf16.mxu0 0
        %3184 = vmatpush1.bf16.msra.mxu0 %v3176
        %3185 = vmatprep.subr.bf16.mxu0 0
        %3186 = vmatpush1.bf16.msra.mxu0 %v3177
        %3187 = vmatprep.subr.bf16.mxu0 0
        %3188 = vmatpush1.bf16.msra.mxu0 0
        %3189 = vmatprep.subr.bf16.mxu0 0
        %3190 = vmatpush1.bf16.msra.mxu0 0
        %3191 = vmatprep.subr.bf16.mxu0 0
        %3192 = vmatpush1.bf16.msra.mxu0 0
        %3193 = vmatprep.subr.bf16.mxu0 0
        %3194 = vmatpush1.bf16.msra.mxu0 0
        %3195 = vmatprep.subr.bf16.mxu0 0
        %3196 = vmatpush1.bf16.msra.mxu0 0
        %3197 = vmatprep.subr.bf16.mxu0 0
        %3198 = vmatpush1.bf16.msra.mxu0 0
        %3199 = vmatprep.subr.bf16.mxu0 0
        %3200 = vmatpush1.bf16.msra.mxu0 0
        %3201 = vmatprep.subr.bf16.mxu0 0
        %3202 = vmatpush1.bf16.msra.mxu0 0
        %3203 = vmatprep.subr.bf16.mxu0 0
        %3204 = vmatpush1.bf16.msra.mxu0 0
        %3205 = vmatprep.subr.bf16.mxu0 0
        %3206 = vmatpush1.bf16.msra.mxu0 0
        %3207 = vmatprep.subr.bf16.mxu0 0
        %3208 = vmatpush1.bf16.msra.mxu0 0
        %3209 = vmatprep.subr.bf16.mxu0 0
        %3210 = vmatpush1.bf16.msra.mxu0 0
        %3211 = vmatprep.subr.bf16.mxu0 0
        %3212 = vmatpush1.bf16.msra.mxu0 0
        %3213 = vmatprep.subr.bf16.mxu0 0
        %3214 = vmatpush1.bf16.msra.mxu0 0
        %3215 = vmatprep.mubr.bf16.mxu0 0
        %3216 = vmatmul.mubr.bf16.gmra.mrb[0].mxu0 %v3181
        %v3217 = vpop.f32.mrb[0].mxu0
        %v3218 = vadd.f32 0.0, %v3217
        %v3219 = vpop.f32.mrb[0].mxu0
        %v3220 = vpop.f32.mrb[0].mxu0
        %v3221 = vadd.f32 0.0, %v3220
        %v3222 = vpop.f32.mrb[0].mxu0
        %3223 = vdwg.mxu0
        %v3228 = vunpack.c.l.b16 %v3151
        %v3229 = vunpack.c.l.b16 %v3152
        %v3230 = vunpack.c.l.b16 %v3153
        %v3231 = vunpack.c.l.b16 %v3154
        %v3232 = vpack.c.b16 %v3229, %v3228
        %v3233 = vpack.c.b16 %v3231, %v3230
        %v3237 = vsel %vm1610, %v3165, 0
        %3239 = vmatprep.subr.bf16.mxu0 0
        %3240 = vmatpush1.bf16.msra.mxu0 %v3232
        %3241 = vmatprep.subr.bf16.mxu0 0
        %3242 = vmatpush1.bf16.msra.mxu0 %v3233
        %3243 = vmatprep.subr.bf16.mxu0 0
        %3244 = vmatpush1.bf16.msra.mxu0 0
        %3245 = vmatprep.subr.bf16.mxu0 0
        %3246 = vmatpush1.bf16.msra.mxu0 0
        %3247 = vmatprep.subr.bf16.mxu0 0
        %3248 = vmatpush1.bf16.msra.mxu0 0
        %3249 = vmatprep.subr.bf16.mxu0 0
        %3250 = vmatpush1.bf16.msra.mxu0 0
        %3251 = vmatprep.subr.bf16.mxu0 0
        %3252 = vmatpush1.bf16.msra.mxu0 0
        %3253 = vmatprep.subr.bf16.mxu0 0
        %3254 = vmatpush1.bf16.msra.mxu0 0
        %3255 = vmatprep.subr.bf16.mxu0 0
        %3256 = vmatpush1.bf16.msra.mxu0 0
        %3257 = vmatprep.subr.bf16.mxu0 0
        %3258 = vmatpush1.bf16.msra.mxu0 0
        %3259 = vmatprep.subr.bf16.mxu0 0
        %3260 = vmatpush1.bf16.msra.mxu0 0
        %3261 = vmatprep.subr.bf16.mxu0 0
        %3262 = vmatpush1.bf16.msra.mxu0 0
        %3263 = vmatprep.subr.bf16.mxu0 0
        %3264 = vmatpush1.bf16.msra.mxu0 0
        %3265 = vmatprep.subr.bf16.mxu0 0
        %3266 = vmatpush1.bf16.msra.mxu0 0
        %3267 = vmatprep.subr.bf16.mxu0 0
        %3268 = vmatpush1.bf16.msra.mxu0 0
        %3269 = vmatprep.subr.bf16.mxu0 0
        %3270 = vmatpush1.bf16.msra.mxu0 0
        %3271 = vmatprep.mubr.bf16.mxu0 0
        %3272 = vmatmul.mubr.bf16.gmra.mrb[0].mxu0 %v3237
        %v3273 = vpop.f32.mrb[0].mxu0
        %v3274 = vadd.f32 0.0, %v3273
        %v3275 = vpop.f32.mrb[0].mxu0
        %v3276 = vpop.f32.mrb[0].mxu0
        %v3277 = vadd.f32 0.0, %v3276
        %v3278 = vpop.f32.mrb[0].mxu0
        %3279 = vdwg.mxu0
        %v3284 = vunpack.c.l.b16 %v3155
        %v3285 = vunpack.c.l.b16 %v3156
        %v3286 = vunpack.c.l.b16 %v3157
        %v3287 = vunpack.c.l.b16 %v3158
        %v3288 = vpack.c.b16 %v3285, %v3284
        %v3289 = vpack.c.b16 %v3287, %v3286
        %v3293 = vsel %vm1610, %v3166, 0
        %3295 = vmatprep.subr.bf16.mxu0 0
        %3296 = vmatpush1.bf16.msra.mxu0 %v3288
        %3297 = vmatprep.subr.bf16.mxu0 0
        %3298 = vmatpush1.bf16.msra.mxu0 %v3289
        %3299 = vmatprep.subr.bf16.mxu0 0
        %3300 = vmatpush1.bf16.msra.mxu0 0
        %3301 = vmatprep.subr.bf16.mxu0 0
        %3302 = vmatpush1.bf16.msra.mxu0 0
        %3303 = vmatprep.subr.bf16.mxu0 0
        %3304 = vmatpush1.bf16.msra.mxu0 0
        %3305 = vmatprep.subr.bf16.mxu0 0
        %3306 = vmatpush1.bf16.msra.mxu0 0
        %3307 = vmatprep.subr.bf16.mxu0 0
        %3308 = vmatpush1.bf16.msra.mxu0 0
        %3309 = vmatprep.subr.bf16.mxu0 0
        %3310 = vmatpush1.bf16.msra.mxu0 0
        %3311 = vmatprep.subr.bf16.mxu0 0
        %3312 = vmatpush1.bf16.msra.mxu0 0
        %3313 = vmatprep.subr.bf16.mxu0 0
        %3314 = vmatpush1.bf16.msra.mxu0 0
        %3315 = vmatprep.subr.bf16.mxu0 0
        %3316 = vmatpush1.bf16.msra.mxu0 0
        %3317 = vmatprep.subr.bf16.mxu0 0
        %3318 = vmatpush1.bf16.msra.mxu0 0
        %3319 = vmatprep.subr.bf16.mxu0 0
        %3320 = vmatpush1.bf16.msra.mxu0 0
        %3321 = vmatprep.subr.bf16.mxu0 0
        %3322 = vmatpush1.bf16.msra.mxu0 0
        %3323 = vmatprep.subr.bf16.mxu0 0
        %3324 = vmatpush1.bf16.msra.mxu0 0
        %3325 = vmatprep.subr.bf16.mxu0 0
        %3326 = vmatpush1.bf16.msra.mxu0 0
        %3327 = vmatprep.mubr.bf16.mxu0 0
        %3328 = vmatmul.mubr.bf16.gmra.mrb[0].mxu0 %v3293
        %v3329 = vpop.f32.mrb[0].mxu0
        %v3330 = vadd.f32 0.0, %v3329
        %v3331 = vpop.f32.mrb[0].mxu0
        %v3332 = vpop.f32.mrb[0].mxu0
        %v3333 = vadd.f32 0.0, %v3332
        %v3334 = vpop.f32.mrb[0].mxu0
        %3335 = vdwg.mxu0
        %v3340 = vunpack.c.l.b16 %v3159
        %v3341 = vunpack.c.l.b16 %v3160
        %v3342 = vunpack.c.l.b16 %v3161
        %v3343 = vunpack.c.l.b16 %v3162
        %v3344 = vpack.c.b16 %v3341, %v3340
        %v3345 = vpack.c.b16 %v3343, %v3342
        %v3349 = vsel %vm1610, %v3167, 0
        %3351 = vmatprep.subr.bf16.mxu0 0
        %3352 = vmatpush1.bf16.msra.mxu0 %v3344
        %3353 = vmatprep.subr.bf16.mxu0 0
        %3354 = vmatpush1.bf16.msra.mxu0 %v3345
        %3355 = vmatprep.subr.bf16.mxu0 0
        %3356 = vmatpush1.bf16.msra.mxu0 0
        %3357 = vmatprep.subr.bf16.mxu0 0
        %3358 = vmatpush1.bf16.msra.mxu0 0
        %3359 = vmatprep.subr.bf16.mxu0 0
        %3360 = vmatpush1.bf16.msra.mxu0 0
        %3361 = vmatprep.subr.bf16.mxu0 0
        %3362 = vmatpush1.bf16.msra.mxu0 0
        %3363 = vmatprep.subr.bf16.mxu0 0
        %3364 = vmatpush1.bf16.msra.mxu0 0
        %3365 = vmatprep.subr.bf16.mxu0 0
        %3366 = vmatpush1.bf16.msra.mxu0 0
        %3367 = vmatprep.subr.bf16.mxu0 0
        %3368 = vmatpush1.bf16.msra.mxu0 0
        %3369 = vmatprep.subr.bf16.mxu0 0
        %3370 = vmatpush1.bf16.msra.mxu0 0
        %3371 = vmatprep.subr.bf16.mxu0 0
        %3372 = vmatpush1.bf16.msra.mxu0 0
        %3373 = vmatprep.subr.bf16.mxu0 0
        %3374 = vmatpush1.bf16.msra.mxu0 0
        %3375 = vmatprep.subr.bf16.mxu0 0
        %3376 = vmatpush1.bf16.msra.mxu0 0
        %3377 = vmatprep.subr.bf16.mxu0 0
        %3378 = vmatpush1.bf16.msra.mxu0 0
        %3379 = vmatprep.subr.bf16.mxu0 0
        %3380 = vmatpush1.bf16.msra.mxu0 0
        %3381 = vmatprep.subr.bf16.mxu0 0
        %3382 = vmatpush1.bf16.msra.mxu0 0
        %3383 = vmatprep.mubr.bf16.mxu0 0
        %3384 = vmatmul.mubr.bf16.gmra.mrb[0].mxu0 %v3349
        %v3385 = vpop.f32.mrb[0].mxu0
        %v3386 = vadd.f32 0.0, %v3385
        %v3387 = vpop.f32.mrb[0].mxu0
        %v3388 = vpop.f32.mrb[0].mxu0
        %v3389 = vadd.f32 0.0, %v3388
        %v3390 = vpop.f32.mrb[0].mxu0
        %3391 = vdwg.mxu0
        %v3392 = vadd.f32 %v3218, %v3274
        %v3393 = vadd.f32 %v3392, %v3330
        %v3394 = vadd.f32 %v3393, %v3386
        %v3395 = vadd.f32 %v3221, %v3277
        %v3396 = vadd.f32 %v3395, %v3333
        %v3397 = vadd.f32 %v3396, %v3389
        %v3399 = vlaneseq
        %v3400 = vshrl.u32 %v3399, 7
        %v3401 = vsub.s32 0, %v3400
        %v3402 = vrot.slane %v3163, %v3401
        %v3404 = vadd.f32 %v3394, %v3402
        %v3405 = vadd.f32 %v3397, %v3402
        %v3406 = vadd.f32 %v2376, %v3404
        %v3407 = vadd.f32 %v2377, %v3405
        %v3408 = vld [vmem:[%s1289] sm:$0x1]
        %v3409 = vld [vmem:[%s1292] sm:$0x1]
        %3410 = vadd.xlane.f32.xlu0 %v3406
        %v3411 = vpop.xlane.xlu0 %3410
        %3412 = vadd.xlane.f32.xlu0 %v3407
        %v3413 = vpop.xlane.xlu0 %3412
        %v3414 = vmul.f32 %v3411, %v2343
        %v3415 = vmul.f32 %v3413, %v2343
        %v3416 = vsub.f32 %v3406, %v3414
        %v3417 = vsub.f32 %v3407, %v3415
        %v3418 = vmul.f32 %v3416, %v3416
        %v3419 = vmul.f32 %v3417, %v3417
        %3420 = vadd.xlane.f32.xlu0 %v3418
        %v3421 = vpop.xlane.xlu0 %3420
        %3422 = vadd.xlane.f32.xlu0 %v3419
        %v3423 = vpop.xlane.xlu0 %3422
        %v3424 = vmul.f32 %v3421, %v2343
        %v3425 = vmul.f32 %v3423, %v2343
        %v3426 = vadd.f32 %v3424, 1e-05
        %v3427 = vadd.f32 %v3425, 1e-05
        %v3428 = vrsqrt.pop %v3426
        %v3429 = vrsqrt.pop %v3427
        %v3430 = vmul.f32 %v3416, %v3428
        %v3431 = vmul.f32 %v3417, %v3429
        %v3433 = vlaneseq
        %v3434 = vshrl.u32 %v3433, 7
        %v3435 = vsub.s32 0, %v3434
        %v3436 = vrot.slane %v3408, %v3435
        %v3438 = vmul.f32 %v3430, %v3436
        %v3439 = vmul.f32 %v3431, %v3436
        %v3441 = vlaneseq
        %v3442 = vshrl.u32 %v3441, 7
        %v3443 = vsub.s32 0, %v3442
        %v3444 = vrot.slane %v3409, %v3443
        %v3446 = vadd.f32 %v3438, %v3444
        %v3447 = vadd.f32 %v3439, %v3444
        %v3448 = vpack.c.bf16 %v3447, %v3446
        %v3449 = vld [vmem:[%s1102] sm:$0xff]
        %v3450 = vld [vmem:[%s1102 + $0x8] sm:$0xff]
        %v3451 = vld [vmem:[%s1102 + $0x10] sm:$0xff]
        %v3452 = vld [vmem:[%s1102 + $0x18] sm:$0xff]
        %v3453 = vld [vmem:[%s1102 + $0x20] sm:$0xff]
        %v3454 = vld [vmem:[%s1102 + $0x28] sm:$0xff]
        %v3455 = vld [vmem:[%s1102 + $0x30] sm:$0xff]
        %v3456 = vld [vmem:[%s1102 + $0x38] sm:$0xff]
        %v3457 = vld [vmem:[%s1102 + $0x40] sm:$0xff]
        %v3458 = vld [vmem:[%s1102 + $0x48] sm:$0xff]
        %v3459 = vld [vmem:[%s1102 + $0x50] sm:$0xff]
        %v3460 = vld [vmem:[%s1102 + $0x58] sm:$0xff]
        %v3461 = vld [vmem:[%s1102 + $0x60] sm:$0xff]
        %v3462 = vld [vmem:[%s1102 + $0x68] sm:$0xff]
        %v3463 = vld [vmem:[%s1102 + $0x70] sm:$0xff]
        %v3464 = vld [vmem:[%s1102 + $0x78] sm:$0xff]
        %v3465 = vld [vmem:[%s1296] sm:$0x3]
        %v3467 = vlaneseq
        %v3468 = vshrl.u32 %v3467, 7
        %v3469 = vsub.s32 0, %v3468
        %v3470 = vrot.slane %v3465, %v3469
        %v3471 = vlaneseq
        %v3472 = vshrl.u32 %v3471, 7
        %v3473 = vsub.s32 1, %v3472
        %v3474 = vrot.slane %v3465, %v3473
        %v3493 = vunpack.c.l.b16 %v3449
        %v3494 = vunpack.c.h.b16 %v3449
        %v3495 = vunpack.c.l.b16 %v3450
        %v3496 = vunpack.c.h.b16 %v3450
        %v3497 = vunpack.c.l.b16 %v3451
        %v3498 = vunpack.c.h.b16 %v3451
        %v3499 = vunpack.c.l.b16 %v3452
        %v3500 = vunpack.c.h.b16 %v3452
        %v3501 = vunpack.c.l.b16 %v3453
        %v3502 = vunpack.c.h.b16 %v3453
        %v3503 = vunpack.c.l.b16 %v3454
        %v3504 = vunpack.c.h.b16 %v3454
        %v3505 = vunpack.c.l.b16 %v3455
        %v3506 = vunpack.c.h.b16 %v3455
        %v3507 = vunpack.c.l.b16 %v3456
        %v3508 = vunpack.c.h.b16 %v3456
        %v3509 = vunpack.c.l.b16 %v3457
        %v3510 = vunpack.c.h.b16 %v3457
        %v3511 = vunpack.c.l.b16 %v3458
        %v3512 = vunpack.c.h.b16 %v3458
        %v3513 = vunpack.c.l.b16 %v3459
        %v3514 = vunpack.c.h.b16 %v3459
        %v3515 = vunpack.c.l.b16 %v3460
        %v3516 = vunpack.c.h.b16 %v3460
        %v3517 = vunpack.c.l.b16 %v3461
        %v3518 = vunpack.c.h.b16 %v3461
        %v3519 = vunpack.c.l.b16 %v3462
        %v3520 = vunpack.c.h.b16 %v3462
        %v3521 = vunpack.c.l.b16 %v3463
        %v3522 = vunpack.c.h.b16 %v3463
        %v3523 = vunpack.c.l.b16 %v3464
        %v3524 = vunpack.c.h.b16 %v3464
        %v3525 = vpack.c.b16 %v3495, %v3493
        %v3526 = vpack.c.b16 %v3496, %v3494
        %v3527 = vpack.c.b16 %v3499, %v3497
        %v3528 = vpack.c.b16 %v3500, %v3498
        %v3529 = vpack.c.b16 %v3503, %v3501
        %v3530 = vpack.c.b16 %v3504, %v3502
        %v3531 = vpack.c.b16 %v3507, %v3505
        %v3532 = vpack.c.b16 %v3508, %v3506
        %v3533 = vpack.c.b16 %v3511, %v3509
        %v3534 = vpack.c.b16 %v3512, %v3510
        %v3535 = vpack.c.b16 %v3515, %v3513
        %v3536 = vpack.c.b16 %v3516, %v3514
        %v3537 = vpack.c.b16 %v3519, %v3517
        %v3538 = vpack.c.b16 %v3520, %v3518
        %v3539 = vpack.c.b16 %v3523, %v3521
        %v3540 = vpack.c.b16 %v3524, %v3522
        %3557 = vmatprep.subr.bf16.mxu0 %v3526
        %3558 = vmatpush1.bf16.msra.mxu0 %v3525
        %3559 = vmatprep.subr.bf16.mxu0 %v3528
        %3560 = vmatpush1.bf16.msra.mxu0 %v3527
        %3561 = vmatprep.subr.bf16.mxu0 %v3530
        %3562 = vmatpush1.bf16.msra.mxu0 %v3529
        %3563 = vmatprep.subr.bf16.mxu0 %v3532
        %3564 = vmatpush1.bf16.msra.mxu0 %v3531
        %3565 = vmatprep.subr.bf16.mxu0 %v3534
        %3566 = vmatpush1.bf16.msra.mxu0 %v3533
        %3567 = vmatprep.subr.bf16.mxu0 %v3536
        %3568 = vmatpush1.bf16.msra.mxu0 %v3535
        %3569 = vmatprep.subr.bf16.mxu0 %v3538
        %3570 = vmatpush1.bf16.msra.mxu0 %v3537
        %3571 = vmatprep.subr.bf16.mxu0 %v3540
        %3572 = vmatpush1.bf16.msra.mxu0 %v3539
        %3573 = vmatprep.subr.bf16.mxu0 0
        %3574 = vmatpush1.bf16.msra.mxu0 0
        %3575 = vmatprep.subr.bf16.mxu0 0
        %3576 = vmatpush1.bf16.msra.mxu0 0
        %3577 = vmatprep.subr.bf16.mxu0 0
        %3578 = vmatpush1.bf16.msra.mxu0 0
        %3579 = vmatprep.subr.bf16.mxu0 0
        %3580 = vmatpush1.bf16.msra.mxu0 0
        %3581 = vmatprep.subr.bf16.mxu0 0
        %3582 = vmatpush1.bf16.msra.mxu0 0
        %3583 = vmatprep.subr.bf16.mxu0 0
        %3584 = vmatpush1.bf16.msra.mxu0 0
        %3585 = vmatprep.subr.bf16.mxu0 0
        %3586 = vmatpush1.bf16.msra.mxu0 0
        %3587 = vmatprep.subr.bf16.mxu0 0
        %3588 = vmatpush1.bf16.msra.mxu0 0
        %3589 = vmatprep.mubr.bf16.mxu0 0
        %3590 = vmatmul.mubr.bf16.gmra.mrb[0].mxu0 %v3448
        %v3591 = vpop.f32.mrb[0].mxu0
        %v3592 = vadd.f32 %v3470, %v3591
        %v3593 = vpop.f32.mrb[0].mxu0
        %v3594 = vadd.f32 %v3474, %v3593
        %v3595 = vpop.f32.mrb[0].mxu0
        %v3596 = vadd.f32 %v3470, %v3595
        %v3597 = vpop.f32.mrb[0].mxu0
        %v3598 = vadd.f32 %v3474, %v3597
        %3599 = vdwg.mxu0
        %v3600 = vmax.f32 %v3592, 0.0
        %v3601 = vmax.f32 %v3594, 0.0
        %v3602 = vmax.f32 %v3596, 0.0
        %v3603 = vmax.f32 %v3598, 0.0
        %v3604 = vpack.c.bf16 %v3602, %v3600
        %v3605 = vpack.c.bf16 %v3603, %v3601
        %v3606 = vld [vmem:[%s1111] sm:$0xf]
        %v3607 = vld [vmem:[%s1111 + $0x4] sm:$0xf]
        %v3608 = vld [vmem:[%s1111 + $0x8] sm:$0xf]
        %v3609 = vld [vmem:[%s1111 + $0xc] sm:$0xf]
        %v3610 = vld [vmem:[%s1111 + $0x10] sm:$0xf]
        %v3611 = vld [vmem:[%s1111 + $0x14] sm:$0xf]
        %v3612 = vld [vmem:[%s1111 + $0x18] sm:$0xf]
        %v3613 = vld [vmem:[%s1111 + $0x1c] sm:$0xf]
        %v3614 = vld [vmem:[%s1111 + $0x20] sm:$0xf]
        %v3615 = vld [vmem:[%s1111 + $0x24] sm:$0xf]
        %v3616 = vld [vmem:[%s1111 + $0x28] sm:$0xf]
        %v3617 = vld [vmem:[%s1111 + $0x2c] sm:$0xf]
        %v3618 = vld [vmem:[%s1111 + $0x30] sm:$0xf]
        %v3619 = vld [vmem:[%s1111 + $0x34] sm:$0xf]
        %v3620 = vld [vmem:[%s1111 + $0x38] sm:$0xf]
        %v3621 = vld [vmem:[%s1111 + $0x3c] sm:$0xf]
        %v3622 = vld [vmem:[%s1111 + $0x40] sm:$0xf]
        %v3623 = vld [vmem:[%s1111 + $0x44] sm:$0xf]
        %v3624 = vld [vmem:[%s1111 + $0x48] sm:$0xf]
        %v3625 = vld [vmem:[%s1111 + $0x4c] sm:$0xf]
        %v3626 = vld [vmem:[%s1111 + $0x50] sm:$0xf]
        %v3627 = vld [vmem:[%s1111 + $0x54] sm:$0xf]
        %v3628 = vld [vmem:[%s1111 + $0x58] sm:$0xf]
        %v3629 = vld [vmem:[%s1111 + $0x5c] sm:$0xf]
        %v3630 = vld [vmem:[%s1111 + $0x60] sm:$0xf]
        %v3631 = vld [vmem:[%s1111 + $0x64] sm:$0xf]
        %v3632 = vld [vmem:[%s1111 + $0x68] sm:$0xf]
        %v3633 = vld [vmem:[%s1111 + $0x6c] sm:$0xf]
        %v3634 = vld [vmem:[%s1111 + $0x70] sm:$0xf]
        %v3635 = vld [vmem:[%s1111 + $0x74] sm:$0xf]
        %v3636 = vld [vmem:[%s1111 + $0x78] sm:$0xf]
        %v3637 = vld [vmem:[%s1111 + $0x7c] sm:$0xf]
        %v3638 = vld [vmem:[%s1299] sm:$0x1]
        %v3640 = vlaneseq
        %v3641 = vshrl.u32 %v3640, 7
        %v3642 = vsub.s32 0, %v3641
        %v3643 = vrot.slane %v3638, %v3642
        %v3677 = vunpack.c.l.b16 %v3606
        %v3678 = vunpack.c.l.b16 %v3607
        %v3679 = vunpack.c.l.b16 %v3608
        %v3680 = vunpack.c.l.b16 %v3609
        %v3681 = vunpack.c.l.b16 %v3610
        %v3682 = vunpack.c.l.b16 %v3611
        %v3683 = vunpack.c.l.b16 %v3612
        %v3684 = vunpack.c.l.b16 %v3613
        %v3685 = vunpack.c.l.b16 %v3614
        %v3686 = vunpack.c.l.b16 %v3615
        %v3687 = vunpack.c.l.b16 %v3616
        %v3688 = vunpack.c.l.b16 %v3617
        %v3689 = vunpack.c.l.b16 %v3618
        %v3690 = vunpack.c.l.b16 %v3619
        %v3691 = vunpack.c.l.b16 %v3620
        %v3692 = vunpack.c.l.b16 %v3621
        %v3693 = vunpack.c.l.b16 %v3622
        %v3694 = vunpack.c.l.b16 %v3623
        %v3695 = vunpack.c.l.b16 %v3624
        %v3696 = vunpack.c.l.b16 %v3625
        %v3697 = vunpack.c.l.b16 %v3626
        %v3698 = vunpack.c.l.b16 %v3627
        %v3699 = vunpack.c.l.b16 %v3628
        %v3700 = vunpack.c.l.b16 %v3629
        %v3701 = vunpack.c.l.b16 %v3630
        %v3702 = vunpack.c.l.b16 %v3631
        %v3703 = vunpack.c.l.b16 %v3632
        %v3704 = vunpack.c.l.b16 %v3633
        %v3705 = vunpack.c.l.b16 %v3634
        %v3706 = vunpack.c.l.b16 %v3635
        %v3707 = vunpack.c.l.b16 %v3636
        %v3708 = vunpack.c.l.b16 %v3637
        %v3709 = vpack.c.b16 %v3678, %v3677
        %v3710 = vpack.c.b16 %v3680, %v3679
        %v3711 = vpack.c.b16 %v3682, %v3681
        %v3712 = vpack.c.b16 %v3684, %v3683
        %v3713 = vpack.c.b16 %v3686, %v3685
        %v3714 = vpack.c.b16 %v3688, %v3687
        %v3715 = vpack.c.b16 %v3690, %v3689
        %v3716 = vpack.c.b16 %v3692, %v3691
        %v3717 = vpack.c.b16 %v3694, %v3693
        %v3718 = vpack.c.b16 %v3696, %v3695
        %v3719 = vpack.c.b16 %v3698, %v3697
        %v3720 = vpack.c.b16 %v3700, %v3699
        %v3721 = vpack.c.b16 %v3702, %v3701
        %v3722 = vpack.c.b16 %v3704, %v3703
        %v3723 = vpack.c.b16 %v3706, %v3705
        %v3724 = vpack.c.b16 %v3708, %v3707
        %3741 = vmatprep.subr.bf16.mxu0 0
        %3742 = vmatpush1.bf16.msra.mxu0 %v3709
        %3743 = vmatprep.subr.bf16.mxu0 0
        %3744 = vmatpush1.bf16.msra.mxu0 %v3710
        %3745 = vmatprep.subr.bf16.mxu0 0
        %3746 = vmatpush1.bf16.msra.mxu0 %v3711
        %3747 = vmatprep.subr.bf16.mxu0 0
        %3748 = vmatpush1.bf16.msra.mxu0 %v3712
        %3749 = vmatprep.subr.bf16.mxu0 0
        %3750 = vmatpush1.bf16.msra.mxu0 %v3713
        %3751 = vmatprep.subr.bf16.mxu0 0
        %3752 = vmatpush1.bf16.msra.mxu0 %v3714
        %3753 = vmatprep.subr.bf16.mxu0 0
        %3754 = vmatpush1.bf16.msra.mxu0 %v3715
        %3755 = vmatprep.subr.bf16.mxu0 0
        %3756 = vmatpush1.bf16.msra.mxu0 %v3716
        %3757 = vmatprep.subr.bf16.mxu0 0
        %3758 = vmatpush1.bf16.msra.mxu0 %v3717
        %3759 = vmatprep.subr.bf16.mxu0 0
        %3760 = vmatpush1.bf16.msra.mxu0 %v3718
        %3761 = vmatprep.subr.bf16.mxu0 0
        %3762 = vmatpush1.bf16.msra.mxu0 %v3719
        %3763 = vmatprep.subr.bf16.mxu0 0
        %3764 = vmatpush1.bf16.msra.mxu0 %v3720
        %3765 = vmatprep.subr.bf16.mxu0 0
        %3766 = vmatpush1.bf16.msra.mxu0 %v3721
        %3767 = vmatprep.subr.bf16.mxu0 0
        %3768 = vmatpush1.bf16.msra.mxu0 %v3722
        %3769 = vmatprep.subr.bf16.mxu0 0
        %3770 = vmatpush1.bf16.msra.mxu0 %v3723
        %3771 = vmatprep.subr.bf16.mxu0 0
        %3772 = vmatpush1.bf16.msra.mxu0 %v3724
        %3773 = vmatprep.mubr.bf16.mxu0 %v3605
        %3774 = vmatmul.mubr.bf16.gmra.mrb[0].mxu0 %v3604
        %v3775 = vpop.f32.mrb[0].mxu0
        %v3776 = vadd.f32 %v3643, %v3775
        %v3777 = vpop.f32.mrb[0].mxu0
        %v3778 = vpop.f32.mrb[0].mxu0
        %v3779 = vadd.f32 %v3643, %v3778
        %v3780 = vpop.f32.mrb[0].mxu0
        %3781 = vdwg.mxu0
        %v3782 = vadd.f32 %v3446, %v3776
        %v3783 = vadd.f32 %v3447, %v3779
        %v3784 = vld [vmem:[%s1302] sm:$0x1]
        %v3785 = vld [vmem:[%s1305] sm:$0x1]
        %3786 = vadd.xlane.f32.xlu0 %v3782
        %v3787 = vpop.xlane.xlu0 %3786
        %3788 = vadd.xlane.f32.xlu0 %v3783
        %v3789 = vpop.xlane.xlu0 %3788
        %v3790 = vmul.f32 %v3787, %v2343
        %v3791 = vmul.f32 %v3789, %v2343
        %v3792 = vsub.f32 %v3782, %v3790
        %v3793 = vsub.f32 %v3783, %v3791
        %v3794 = vmul.f32 %v3792, %v3792
        %v3795 = vmul.f32 %v3793, %v3793
        %3796 = vadd.xlane.f32.xlu0 %v3794
        %v3797 = vpop.xlane.xlu0 %3796
        %3798 = vadd.xlane.f32.xlu0 %v3795
        %v3799 = vpop.xlane.xlu0 %3798
        %v3800 = vmul.f32 %v3797, %v2343
        %v3801 = vmul.f32 %v3799, %v2343
        %v3802 = vadd.f32 %v3800, 1e-05
        %v3803 = vadd.f32 %v3801, 1e-05
        %v3804 = vrsqrt.pop %v3802
        %v3805 = vrsqrt.pop %v3803
        %v3806 = vmul.f32 %v3792, %v3804
        %v3807 = vmul.f32 %v3793, %v3805
        %v3809 = vlaneseq
        %v3810 = vshrl.u32 %v3809, 7
        %v3811 = vsub.s32 0, %v3810
        %v3812 = vrot.slane %v3784, %v3811
        %v3814 = vmul.f32 %v3806, %v3812
        %v3815 = vmul.f32 %v3807, %v3812
        %v3817 = vlaneseq
        %v3818 = vshrl.u32 %v3817, 7
        %v3819 = vsub.s32 0, %v3818
        %v3820 = vrot.slane %v3785, %v3819
        %v3822 = vadd.f32 %v3814, %v3820
        %v3823 = vadd.f32 %v3815, %v3820
        %3824 = vst [vmem:[%s1261] sm:$0xff] %v3822
        %3825 = vst [vmem:[%s1261 + $0x8] sm:$0xff] %v3823
        %s3826 = sand.u32 %s684, 1
        %s3827 = scalar_lea.sflag [#allocation4], %s3826
        %s3828 = sand.u32 %s684, 1
        %s3829 = smul.addr %s3828, 16
        %s3830 = scalar_lea.vmem [#allocation17], %s3829
        // Predicated region
        $region165: #{tpu_custom_call.1} parent=115 // pred_check
          %p3831 = pneg %p694
        $region166: #{tpu_custom_call.1} parent=115 // pred_check_branch
          %3833 = sbr.rel (%p3831) target = $region168
        $region167: #{tpu_custom_call.1} parent=115 // pred_region
          %s3834 = smul.u32 2, %s49
          %s3836 = ssub.s32 256, 256
          %3837 = vsyncadd %s3827, %s3836
          %s3838 = smul.addr %s3834, 128
          %s3839 = scalar_lea.hbm %s24, %s3838
          %s3840 = sshll.u32 %s3830, 4
          %s3841 = int_to_ptr.vmem [resolvable:$true] %s3840
          %3846 = dma.vmem_to_hbm [thread:$0]  %s3841, 256, %s3839, %s3827, 128, 128, 8
        $region168: #{tpu_custom_call.1} parent=115 // pred_fallthru
          _
      $region116: #{tpu_custom_call.1} parent=5 // pred_fallthru
        _
      %p3847 = scmp.le.s32.totalorder 2, %s40
      // Predicated region
      $region169: #{tpu_custom_call.1} parent=5 // pred_check
        %p3848 = pneg %p3847
      $region170: #{tpu_custom_call.1} parent=5 // pred_check_branch
        %3850 = sbr.rel (%p3848) target = $region172
      $region171: #{tpu_custom_call.1} parent=5 // pred_region
        %s3851 = ssub.s32 %s40, 2
        // Predicated region
        $region173: #{tpu_custom_call.1} parent=171 // pred_check
          %p3852 = pneg %p700
        $region174: #{tpu_custom_call.1} parent=171 // pred_check_branch
          %3854 = sbr.rel (%p3852) target = $region176
        $region175: #{tpu_custom_call.1} parent=171 // pred_region
          %s3855 = sand.u32 %s685, 1
          %s3856 = scalar_lea.sflag [#allocation4], %s3855
          %s3857 = sand.u32 %s685, 1
          %s3858 = smul.addr %s3857, 16
          %s3859 = scalar_lea.vmem [#allocation17], %s3858
          %3860 = dma.done %s3856, 256
        $region176: #{tpu_custom_call.1} parent=171 // pred_fallthru
          _
      $region172: #{tpu_custom_call.1} parent=5 // pred_fallthru
        _
    $region6: #{tpu_custom_call.1} parent=1 // loop_footer
      %s44 = sadd.s32 1, %s40
    $region7: #{tpu_custom_call.1} parent=1 // loop_footer_branch
      %39 = sbr.rel target = $region3
    $region8: #{tpu_custom_call.1} parent=1 // loop_exit
      _
    %3861 = vsyncpa [#allocation3], 1
    %s3862 = scalar_lea.sflag [#allocation3], 1
    %3863 = vsyncpa %s3862, 1
    %3864 = vsyncpa [#allocation6], 1
    %s3865 = scalar_lea.sflag [#allocation6], 1
    %3866 = vsyncpa %s3865, 1
    %3867 = vsyncpa [#allocation9], 1
    %3868 = vsyncpa [#allocation4], 1
    %s3869 = scalar_lea.sflag [#allocation4], 1
    %3870 = vsyncpa %s3869, 1

</llo_original>
